<compile_context>
chip_gen: v6e
topology: v6e:2x2x1
jax: 0.10.0
libtpu: 0.0.40
codegen_flags: <defaults>
</compile_context>

<pallas_src>
import functools

import jax
import jax.numpy as jnp
from jax.experimental import pallas as pl
from jax.experimental.pallas import tpu as pltpu


def _round_up(v, m):
    return -(-v // m) * m


def _sigmoid_eup(x):
    # sigmoid(x) = 0.5 * (1 + tanh(x/2)): a single EUP op per element instead
    # of exp + reciprocal + divide.
    return 0.5 * (1.0 + jnp.tanh(0.5 * x))


def _lstm_kernel(num_layers, *refs):
    """refs = (x, [w_ih, w_hh, b] * L, outputs, h_n, c_n, buf, gx, h_st, c_st)

    x        : (S, bt, E)      time-major batch tile (compute dtype)
    w_ih_l   : (in_l, 4Hp)     in_0 = E, in_{l>0} = Hp; gate order (i, f, g, o)
    w_hh_l   : (Hp, 4Hp)
    b_l      : (1, 4Hp)        fused b_ih + b_hh (f32), zero in padded lanes
    outputs  : (S, bt, Hp)     last-layer hidden states (f32)
    h_n, c_n : (L, bt, Hp)     final hidden / cell state per layer (f32)
    buf      : (S, bt, Hp)     VMEM, intermediate-layer output sequence
    gx       : (S, bt, 4Hp)    VMEM, hoisted x @ W_ih + b for current layer
    h_st/c_st: (bt, Hp)        VMEM, recurrent state (f32)
    """
    x_ref = refs[0]
    idx = 1
    layers = []
    for _ in range(num_layers):
        layers.append((refs[idx], refs[idx + 1], refs[idx + 2]))
        idx += 3
    out_ref, hn_ref, cn_ref = refs[idx], refs[idx + 1], refs[idx + 2]
    buf_ref, gx_ref, h_ref, c_ref = (refs[idx + 3], refs[idx + 4],
                                     refs[idx + 5], refs[idx + 6])

    seq_len, bt, _ = x_ref.shape
    Hp = h_ref.shape[-1]

    # TODO(synk): a layer/time wavefront (layer l step t alongside layer l+1
    # step t-1) would further hide the small recurrent matmul's latency.
    for l, (w_ih_ref, w_hh_ref, b_ref) in enumerate(layers):
        src = x_ref if l == 0 else buf_ref
        dst = out_ref if l == num_layers - 1 else buf_ref
        in_dim = src.shape[-1]

        # ---- hoisted input projection: one big MXU matmul, M = S * bt ----
        src_mat = src[...].astype(w_ih_ref.dtype).reshape(seq_len * bt, in_dim)
        gx = jnp.dot(src_mat, w_ih_ref[...],
                     preferred_element_type=jnp.float32) + b_ref[...]
        gx_ref[...] = gx.reshape(seq_len, bt, 4 * Hp)

        h_ref[...] = jnp.zeros_like(h_ref)
        c_ref[...] = jnp.zeros_like(c_ref)

        # ---- recurrence: only the (bt,Hp)@(Hp,4Hp) matmul + gate tail left ----
        @pl.loop(0, seq_len)
        def _(t):
            gates = gx_ref[t] + jnp.dot(
                h_ref[...].astype(w_hh_ref.dtype), w_hh_ref[...],
                preferred_element_type=jnp.float32)
            # Hp is a multiple of 128 -> the gate slices are lane-aligned.
            i_g = _sigmoid_eup(gates[:, 0 * Hp:1 * Hp])
            f_g = _sigmoid_eup(gates[:, 1 * Hp:2 * Hp])
            g_g = jnp.tanh(gates[:, 2 * Hp:3 * Hp])
            o_g = _sigmoid_eup(gates[:, 3 * Hp:4 * Hp])
            c_new = f_g * c_ref[...] + i_g * g_g
            h_new = o_g * jnp.tanh(c_new)
            c_ref[...] = c_new
            h_ref[...] = h_new
            dst[t] = h_new.astype(dst.dtype)

        hn_ref[l] = h_ref[...].astype(hn_ref.dtype)
        cn_ref[l] = c_ref[...].astype(cn_ref.dtype)


def _resident_spec(arr, single_buffer):
    """Full-array block with a constant index_map -> stays VMEM-resident
    across every batch-grid step; single-buffered when supported (a block
    that never changes gains nothing from double-buffering)."""
    n = arr.ndim
    if single_buffer:
        return pl.BlockSpec(arr.shape, lambda b, n=n: (0,) * n,
                            pipeline_mode=pl.Buffered(1))
    return pl.BlockSpec(arr.shape, lambda b, n=n: (0,) * n)


def _pad_gate_axis(w, h, hp):
    """(..., 4h) -> (..., 4hp): zero-pad each of the 4 gate blocks to hp."""
    if hp == h:
        return w
    lead = w.shape[:-1]
    w4 = w.reshape(lead + (4, h))
    pad = [(0, 0)] * len(lead) + [(0, 0), (0, hp - h)]
    return jnp.pad(w4, pad).reshape(lead + (4 * hp,))


def _pad_rows(w, rows):
    if w.shape[0] == rows:
        return w
    return jnp.pad(w, ((0, rows - w.shape[0]),) + ((0, 0),) * (w.ndim - 1))


def _vmem_bytes_estimate(seq, bt, e, hp, num_layers, padded_layers, c_itemsize):
    """Conservative per-grid-step VMEM footprint (lane/sublane padded,
    double-buffered pipeline blocks, double-buffered weights)."""
    def pb(shape, itemsize):
        s = list(shape)
        s[-1] = _round_up(s[-1], 128)
        if len(s) >= 2:
            s[-2] = _round_up(s[-2], 8)
        n = 1
        for d in s:
            n *= d
        return n * itemsize

    total = 0
    for (w_ih, w_hh, b) in padded_layers:
        total += 2 * (pb(w_ih.shape, c_itemsize) + pb(w_hh.shape, c_itemsize)
                      + pb(b.shape, 4))
    total += 2 * pb((seq, bt, e), c_itemsize)          # x input blocks
    total += 2 * pb((seq, bt, hp), 4)                  # output blocks
    total += 2 * 2 * pb((num_layers, bt, hp), 4)       # h_n / c_n blocks
    total += pb((seq, bt, hp), c_itemsize)             # buf scratch
    total += pb((seq, bt, 4 * hp), 4)                  # gx scratch
    total += 2 * pb((bt, hp), 4)                       # h / c scratch
    return total


def lstm_encoder_forward(x, params, *, batch_tile=128,
                         compute_dtype=jnp.bfloat16):
    """x: (B, S, E) batch-first. Returns (outputs, (h_n, c_n)) matching
    PyTorch nn.LSTM(batch_first=True) with zero initial state.

    MXU operands (x, weights, layer-to-layer activations) use `compute_dtype`
    (default bf16 for the MXU's native rate); accumulation, gate math and the
    recurrent h/c state are float32.  Pass compute_dtype=jnp.float32 for a
    tighter match to an f32 reference.  On v6e, batch_tile=256 amortizes the
    recurrent matmul better (128 MiB VMEM allows it)."""
    layers = params["layers"]
    num_layers = len(layers)
    H = layers[0][1].shape[0]
    B, S, E = x.shape
    Hp = _round_up(H, 128)                       # lane-aligned hidden dim
    c_itemsize = jnp.dtype(compute_dtype).itemsize

    # ---- pad weights: per-gate (i,f,g,o) H->Hp and recurrent rows H->Hp ----
    padded_layers = []
    for li, (w_ih, w_hh, b) in enumerate(layers):
        w_ih_p = _pad_gate_axis(w_ih, H, Hp)
        if li > 0:
            w_ih_p = _pad_rows(w_ih_p, Hp)
        w_hh_p = _pad_rows(_pad_gate_axis(w_hh, H, Hp), Hp)
        b_p = _pad_gate_axis(b, H, Hp)
        padded_layers.append((w_ih_p.astype(compute_dtype),
                              w_hh_p.astype(compute_dtype),
                              b_p.astype(jnp.float32)))

    # ---- batch tile: >= 2 tiles when the batch allows it (feeds both v7x
    # TensorCores and lets the x/output DMAs double-buffer), then shrink until
    # the per-tile VMEM estimate fits a v7x-safe budget. ----
    B8 = _round_up(B, 8)
    if B8 >= 16:
        bt = min(batch_tile, _round_up(-(-B8 // 2), 8))
    else:
        bt = 8
    bt = max(8, _round_up(bt, 8))

    VMEM_BUDGET = 40 * 1024 * 1024   # headroom under v7x's 64 MiB physical
    while bt > 8 and _vmem_bytes_estimate(
            S, bt, E, Hp, num_layers, padded_layers, c_itemsize) > VMEM_BUDGET:
        bt = max(8, _round_up(bt // 2, 8))
    # TODO(synk): for very long sequences the (S, bt, *) blocks should also be
    # chunked along time (every per-tile buffer scales linearly with S).

    B_pad = _round_up(B, bt)
    num_tiles = B_pad // bt
    est = _vmem_bytes_estimate(S, bt, E, Hp, num_layers, padded_layers,
                               c_itemsize)
    vmem_limit = int(min(64 * 1024 * 1024,
                         max(32 * 1024 * 1024, int(1.5 * est))))

    # Time-major (S, B_pad, E): the per-step slice is a cheap leading-axis
    # index; batch sits on sublanes, features on lanes.
    # TODO(synk): the transpose+pad is an extra HBM pass; could be folded into
    # the kernel's index_map for memory-bound shapes.
    xt = jnp.transpose(x, (1, 0, 2)).astype(compute_dtype)
    if B_pad != B:
        xt = jnp.pad(xt, ((0, 0), (0, B_pad - B), (0, 0)))

    flat_inputs = [xt]
    for (w_ih, w_hh, b) in padded_layers:
        flat_inputs += [w_ih, w_hh, b]

    out_shape = (
        jax.ShapeDtypeStruct((S, B_pad, Hp), jnp.float32),
        jax.ShapeDtypeStruct((num_layers, B_pad, Hp), jnp.float32),
        jax.ShapeDtypeStruct((num_layers, B_pad, Hp), jnp.float32),
    )
    out_specs = (
        pl.BlockSpec((S, bt, Hp), lambda b: (0, b, 0)),
        pl.BlockSpec((num_layers, bt, Hp), lambda b: (0, b, 0)),
        pl.BlockSpec((num_layers, bt, Hp), lambda b: (0, b, 0)),
    )
    scratch_shapes = [
        pltpu.VMEM((S, bt, Hp), compute_dtype),     # intermediate-layer seq
        pltpu.VMEM((S, bt, 4 * Hp), jnp.float32),   # hoisted x @ W_ih + b
        pltpu.VMEM((bt, Hp), jnp.float32),          # h state
        pltpu.VMEM((bt, Hp), jnp.float32),          # c state
    ]

    # Cost hint so XLA schedules/overlaps the call correctly in a larger jit.
    flops = 0
    bytes_accessed = xt.size * c_itemsize
    for (w_ih, w_hh, b) in padded_layers:
        flops += 2 * B_pad * S * (w_ih.shape[0] + Hp) * 4 * Hp
        bytes_accessed += (w_ih.size + w_hh.size) * c_itemsize + b.size * 4
    bytes_accessed += (S * B_pad * Hp + 2 * num_layers * B_pad * Hp) * 4
    cost = pl.CostEstimate(
        flops=int(flops),
        transcendentals=int(B_pad * S * num_layers * 5 * Hp),
        bytes_accessed=int(bytes_accessed),
    )

    def build(single_buffer_weights):
        in_specs = [pl.BlockSpec((S, bt, E), lambda b: (0, b, 0))]
        for (w_ih, w_hh, b) in padded_layers:
            in_specs += [_resident_spec(w_ih, single_buffer_weights),
                         _resident_spec(w_hh, single_buffer_weights),
                         _resident_spec(b, single_buffer_weights)]
        return pl.pallas_call(
            functools.partial(_lstm_kernel, num_layers),
            out_shape=out_shape,
            grid=(num_tiles,),
            in_specs=in_specs,
            out_specs=out_specs,
            scratch_shapes=scratch_shapes,
            compiler_params=pltpu.CompilerParams(
                dimension_semantics=("parallel",),
                vmem_limit_bytes=vmem_limit),
            cost_estimate=cost,
        )

    try:
        result = jax.block_until_ready(build(True)(*flat_inputs))
    except Exception:
        # pl.Buffered(1) single-buffering unsupported on this jax version:
        # fall back to default (double-buffered) resident weights.
        result = jax.block_until_ready(build(False)(*flat_inputs))
    outputs_t, h_n, c_n = result

    outputs = jnp.transpose(outputs_t[:, :B, :H], (1, 0, 2))
    return outputs, (h_n[:, :B, :H], c_n[:, :B, :H])


def init_lstm_params(key, embedding_dim, hidden_dim, num_layers=2):
    """PyTorch-style uniform(-1/sqrt(H), 1/sqrt(H)) init.

    Weights stored transposed, (in, 4H) / (H, 4H), gate order (i, f, g, o);
    the two PyTorch biases are fused into one (1, 4H) row."""
    bound = 1.0 / (hidden_dim ** 0.5)
    keys = jax.random.split(key, num_layers * 4)
    ki = iter(keys)
    layers = []
    in_dim = embedding_dim
    for _ in range(num_layers):
        w_ih = jax.random.uniform(next(ki), (in_dim, 4 * hidden_dim),
                                  jnp.float32, -bound, bound)
        w_hh = jax.random.uniform(next(ki), (hidden_dim, 4 * hidden_dim),
                                  jnp.float32, -bound, bound)
        b_ih = jax.random.uniform(next(ki), (4 * hidden_dim,),
                                  jnp.float32, -bound, bound)
        b_hh = jax.random.uniform(next(ki), (4 * hidden_dim,),
                                  jnp.float32, -bound, bound)
        layers.append((w_ih, w_hh, (b_ih + b_hh).reshape(1, 4 * hidden_dim)))
        in_dim = hidden_dim
    return {"layers": layers}


def lstm_encoder_forward_ref(x, params):
    """Pure-JAX reference (high-precision dots) for validation."""
    B, S, _ = x.shape
    hp = jax.lax.Precision.HIGHEST
    layer_in = x
    hs, cs = [], []
    for (w_ih, w_hh, b) in params["layers"]:
        H = w_hh.shape[0]
        h = jnp.zeros((B, H), jnp.float32)
        c = jnp.zeros((B, H), jnp.float32)
        outs = []
        for t in range(S):
            gates = (jnp.dot(layer_in[:, t, :], w_ih, precision=hp)
                     + jnp.dot(h, w_hh, precision=hp) + b)
            i_g = jax.nn.sigmoid(gates[:, 0 * H:1 * H])
            f_g = jax.nn.sigmoid(gates[:, 1 * H:2 * H])
            g_g = jnp.tanh(gates[:, 2 * H:3 * H])
            o_g = jax.nn.sigmoid(gates[:, 3 * H:4 * H])
            c = f_g * c + i_g * g_g
            h = o_g * jnp.tanh(c)
            outs.append(h)
        layer_in = jnp.stack(outs, axis=1)
        hs.append(h)
        cs.append(c)
    return layer_in, (jnp.stack(hs, axis=0), jnp.stack(cs, axis=0))


if __name__ == "__main__":
    batch, seq, embedding_dim, hidden_dim, num_layers = 8, 8, 32, 32, 2

    key = jax.random.PRNGKey(0)
    kx, kp = jax.random.split(key)
    x = jax.random.normal(kx, (batch, seq, embedding_dim), jnp.float32)
    params = init_lstm_params(kp, embedding_dim, hidden_dim, num_layers)

    out_ref, (h_ref, c_ref) = lstm_encoder_forward_ref(x, params)

    # Default path: bf16 MXU operands, f32 accumulation / recurrent state.
    outputs, (h_n, c_n) = lstm_encoder_forward(x, params)
    outputs, h_n, c_n = jax.block_until_ready((outputs, h_n, c_n))
    assert outputs.shape == (batch, seq, hidden_dim)
    assert h_n.shape == (num_layers, batch, hidden_dim)
    assert c_n.shape == (num_layers, batch, hidden_dim)
    assert jnp.allclose(outputs, out_ref, atol=1e-1, rtol=1e-1)
    assert jnp.allclose(h_n, h_ref, atol=1e-1, rtol=1e-1)
    assert jnp.allclose(c_n, c_ref, atol=1e-1, rtol=1e-1)

    # f32-operand path: tight match to the f32 reference.
    outputs32, (h32, c32) = lstm_encoder_forward(x, params,
                                                 compute_dtype=jnp.float32)
    outputs32, h32, c32 = jax.block_until_ready((outputs32, h32, c32))
    assert jnp.allclose(outputs32, out_ref, atol=5e-3, rtol=5e-3)
    assert jnp.allclose(h32, h_ref, atol=5e-3, rtol=5e-3)
    assert jnp.allclose(c32, c_ref, atol=5e-3, rtol=5e-3)

    print("KERNEL_OK")
</pallas_src>

<mosaic_0001>
module attributes {stable_mosaic.version = 11 : i64} {
  func.func @_lstm_kernel(%arg0: i32, %arg1: memref<8x8x32xbf16, #tpu.memory_space<vmem>>, %arg2: memref<32x512xbf16, #tpu.memory_space<vmem>>, %arg3: memref<128x512xbf16, #tpu.memory_space<vmem>>, %arg4: memref<1x512xf32, #tpu.memory_space<vmem>>, %arg5: memref<128x512xbf16, #tpu.memory_space<vmem>>, %arg6: memref<128x512xbf16, #tpu.memory_space<vmem>>, %arg7: memref<1x512xf32, #tpu.memory_space<vmem>>, %arg8: memref<8x8x128xf32, #tpu.memory_space<vmem>>, %arg9: memref<2x8x128xf32, #tpu.memory_space<vmem>>, %arg10: memref<2x8x128xf32, #tpu.memory_space<vmem>>, %arg11: memref<8x8x128xbf16, #tpu.memory_space<vmem>>, %arg12: memref<8x8x512xf32, #tpu.memory_space<vmem>>, %arg13: memref<8x128xf32, #tpu.memory_space<vmem>>, %arg14: memref<8x128xf32, #tpu.memory_space<vmem>>) attributes {dimension_semantics = [#tpu.dimension_semantics<parallel>], iteration_bounds = array<i64: 1>, scalar_prefetch = 0 : i64, scratch_operands = 4 : i64, tpu.core_type = #tpu.core_type<tc>, window_params = [{transform_indices = @transform_0, window_bounds = array<i64: 8, 8, 32>}, {pipeline_mode = #tpu.pipeline_mode<synchronous>, transform_indices = @transform_1, window_bounds = array<i64: 32, 512>}, {pipeline_mode = #tpu.pipeline_mode<synchronous>, transform_indices = @transform_2, window_bounds = array<i64: 128, 512>}, {pipeline_mode = #tpu.pipeline_mode<synchronous>, transform_indices = @transform_3, window_bounds = array<i64: 1, 512>}, {pipeline_mode = #tpu.pipeline_mode<synchronous>, transform_indices = @transform_4, window_bounds = array<i64: 128, 512>}, {pipeline_mode = #tpu.pipeline_mode<synchronous>, transform_indices = @transform_5, window_bounds = array<i64: 128, 512>}, {pipeline_mode = #tpu.pipeline_mode<synchronous>, transform_indices = @transform_6, window_bounds = array<i64: 1, 512>}, {transform_indices = @transform_7, window_bounds = array<i64: 8, 8, 128>}, {transform_indices = @transform_8, window_bounds = array<i64: 2, 8, 128>}, {transform_indices = @transform_9, window_bounds = array<i64: 2, 8, 128>}]} {
    %c0 = arith.constant 0 : index
    %c0_0 = arith.constant 0 : index
    %c0_1 = arith.constant 0 : index
    %0 = vector.load %arg1[%c0, %c0_0, %c0_1] : memref<8x8x32xbf16, #tpu.memory_space<vmem>>, vector<8x8x32xbf16>
    %1 = vector.shape_cast %0 : vector<8x8x32xbf16> to vector<64x32xbf16>
    %c0_2 = arith.constant 0 : index
    %c0_3 = arith.constant 0 : index
    %2 = vector.load %arg2[%c0_2, %c0_3] : memref<32x512xbf16, #tpu.memory_space<vmem>>, vector<32x512xbf16>
    %cst = arith.constant dense<0.000000e+00> : vector<64x512xf32>
    %3 = tpu.matmul %1, %2, %cst {dimension_numbers = #tpu.dot_dimension_numbers<[1], [0], [0], [1], [0, 0, 1, 1], [], []>} : vector<64x32xbf16>, vector<32x512xbf16>, vector<64x512xf32> -> vector<64x512xf32>
    %c0_4 = arith.constant 0 : index
    %c0_5 = arith.constant 0 : index
    %4 = vector.load %arg4[%c0_4, %c0_5] : memref<1x512xf32, #tpu.memory_space<vmem>>, vector<1x512xf32>
    %5 = vector.broadcast %4 : vector<1x512xf32> to vector<64x512xf32>
    %6 = arith.addf %3, %5 : vector<64x512xf32>
    %7 = vector.shape_cast %6 : vector<64x512xf32> to vector<8x8x512xf32>
    %c0_6 = arith.constant 0 : index
    %c0_7 = arith.constant 0 : index
    %c0_8 = arith.constant 0 : index
    %8 = vector.load %arg12[%c0_6, %c0_7, %c0_8] : memref<8x8x512xf32, #tpu.memory_space<vmem>>, vector<8x8x512xf32>
    tpu.vector_store %arg12[%c0_6, %c0_7, %c0_8], %7 {strides = array<i32>} : memref<8x8x512xf32, #tpu.memory_space<vmem>>, vector<8x8x512xf32>,
    %cst_9 = arith.constant 0.000000e+00 : f32
    %9 = vector.broadcast %cst_9 : f32 to vector<8x128xf32>
    %c0_10 = arith.constant 0 : index
    %c0_11 = arith.constant 0 : index
    %10 = vector.load %arg13[%c0_10, %c0_11] : memref<8x128xf32, #tpu.memory_space<vmem>>, vector<8x128xf32>
    tpu.vector_store %arg13[%c0_10, %c0_11], %9 {strides = array<i32>} : memref<8x128xf32, #tpu.memory_space<vmem>>, vector<8x128xf32>,
    %cst_12 = arith.constant 0.000000e+00 : f32
    %11 = vector.broadcast %cst_12 : f32 to vector<8x128xf32>
    %c0_13 = arith.constant 0 : index
    %c0_14 = arith.constant 0 : index
    %12 = vector.load %arg14[%c0_13, %c0_14] : memref<8x128xf32, #tpu.memory_space<vmem>>, vector<8x128xf32>
    tpu.vector_store %arg14[%c0_13, %c0_14], %11 {strides = array<i32>} : memref<8x128xf32, #tpu.memory_space<vmem>>, vector<8x128xf32>,
    %c0_i32 = arith.constant 0 : i32
    %c8_i32 = arith.constant 8 : i32
    %13 = arith.addi %c0_i32, %c8_i32 : i32
    %c1_i32 = arith.constant 1 : i32
    scf.for %arg15 = %c0_i32 to %13 step %c1_i32  : i32 {
      %c1_i32_56 = arith.constant 1 : i32
      %44 = arith.muli %arg15, %c1_i32_56 : i32
      %c0_i32_57 = arith.constant 0 : i32
      %45 = arith.addi %c0_i32_57, %44 : i32
      %46 = arith.index_cast %45 : i32 to index
      %c0_58 = arith.constant 0 : index
      %c0_59 = arith.constant 0 : index
      %47 = vector.load %arg12[%46, %c0_58, %c0_59] : memref<8x8x512xf32, #tpu.memory_space<vmem>>, vector<1x8x512xf32>
      %48 = vector.shape_cast %47 : vector<1x8x512xf32> to vector<8x512xf32>
      %c0_60 = arith.constant 0 : index
      %c0_61 = arith.constant 0 : index
      %49 = vector.load %arg13[%c0_60, %c0_61] : memref<8x128xf32, #tpu.memory_space<vmem>>, vector<8x128xf32>
      %50 = arith.truncf %49 : vector<8x128xf32> to vector<8x128xbf16>
      %c0_62 = arith.constant 0 : index
      %c0_63 = arith.constant 0 : index
      %51 = vector.load %arg3[%c0_62, %c0_63] : memref<128x512xbf16, #tpu.memory_space<vmem>>, vector<128x512xbf16>
      %cst_64 = arith.constant dense<0.000000e+00> : vector<8x512xf32>
      %52 = tpu.matmul %50, %51, %cst_64 {dimension_numbers = #tpu.dot_dimension_numbers<[1], [0], [0], [1], [0, 0, 1, 1], [], []>} : vector<8x128xbf16>, vector<128x512xbf16>, vector<8x512xf32> -> vector<8x512xf32>
      %53 = arith.addf %48, %52 : vector<8x512xf32>
      %54 = vector.extract_strided_slice %53 {offsets = [0, 0], sizes = [8, 128], strides = [1, 1]} : vector<8x512xf32> to vector<8x128xf32>
      %cst_65 = arith.constant 5.000000e-01 : f32
      %55 = vector.broadcast %cst_65 : f32 to vector<8x128xf32>
      %56 = arith.mulf %55, %54 : vector<8x128xf32>
      %57 = math.tanh %56 : vector<8x128xf32>
      %cst_66 = arith.constant 1.000000e+00 : f32
      %58 = vector.broadcast %cst_66 : f32 to vector<8x128xf32>
      %59 = arith.addf %58, %57 : vector<8x128xf32>
      %cst_67 = arith.constant 5.000000e-01 : f32
      %60 = vector.broadcast %cst_67 : f32 to vector<8x128xf32>
      %61 = arith.mulf %60, %59 : vector<8x128xf32>
      %62 = vector.extract_strided_slice %53 {offsets = [0, 128], sizes = [8, 128], strides = [1, 1]} : vector<8x512xf32> to vector<8x128xf32>
      %cst_68 = arith.constant 5.000000e-01 : f32
      %63 = vector.broadcast %cst_68 : f32 to vector<8x128xf32>
      %64 = arith.mulf %63, %62 : vector<8x128xf32>
      %65 = math.tanh %64 : vector<8x128xf32>
      %cst_69 = arith.constant 1.000000e+00 : f32
      %66 = vector.broadcast %cst_69 : f32 to vector<8x128xf32>
      %67 = arith.addf %66, %65 : vector<8x128xf32>
      %cst_70 = arith.constant 5.000000e-01 : f32
      %68 = vector.broadcast %cst_70 : f32 to vector<8x128xf32>
      %69 = arith.mulf %68, %67 : vector<8x128xf32>
      %70 = vector.extract_strided_slice %53 {offsets = [0, 256], sizes = [8, 128], strides = [1, 1]} : vector<8x512xf32> to vector<8x128xf32>
      %71 = math.tanh %70 : vector<8x128xf32>
      %72 = vector.extract_strided_slice %53 {offsets = [0, 384], sizes = [8, 128], strides = [1, 1]} : vector<8x512xf32> to vector<8x128xf32>
      %cst_71 = arith.constant 5.000000e-01 : f32
      %73 = vector.broadcast %cst_71 : f32 to vector<8x128xf32>
      %74 = arith.mulf %73, %72 : vector<8x128xf32>
      %75 = math.tanh %74 : vector<8x128xf32>
      %cst_72 = arith.constant 1.000000e+00 : f32
      %76 = vector.broadcast %cst_72 : f32 to vector<8x128xf32>
      %77 = arith.addf %76, %75 : vector<8x128xf32>
      %cst_73 = arith.constant 5.000000e-01 : f32
      %78 = vector.broadcast %cst_73 : f32 to vector<8x128xf32>
      %79 = arith.mulf %78, %77 : vector<8x128xf32>
      %c0_74 = arith.constant 0 : index
      %c0_75 = arith.constant 0 : index
      %80 = vector.load %arg14[%c0_74, %c0_75] : memref<8x128xf32, #tpu.memory_space<vmem>>, vector<8x128xf32>
      %81 = arith.mulf %69, %80 : vector<8x128xf32>
      %82 = arith.mulf %61, %71 : vector<8x128xf32>
      %83 = arith.addf %81, %82 : vector<8x128xf32>
      %84 = math.tanh %83 : vector<8x128xf32>
      %85 = arith.mulf %79, %84 : vector<8x128xf32>
      %c0_76 = arith.constant 0 : index
      %c0_77 = arith.constant 0 : index
      %86 = vector.load %arg14[%c0_76, %c0_77] : memref<8x128xf32, #tpu.memory_space<vmem>>, vector<8x128xf32>
      tpu.vector_store %arg14[%c0_76, %c0_77], %83 {strides = array<i32>} : memref<8x128xf32, #tpu.memory_space<vmem>>, vector<8x128xf32>,
      %c0_78 = arith.constant 0 : index
      %c0_79 = arith.constant 0 : index
      %87 = vector.load %arg13[%c0_78, %c0_79] : memref<8x128xf32, #tpu.memory_space<vmem>>, vector<8x128xf32>
      tpu.vector_store %arg13[%c0_78, %c0_79], %85 {strides = array<i32>} : memref<8x128xf32, #tpu.memory_space<vmem>>, vector<8x128xf32>,
      %88 = arith.truncf %85 : vector<8x128xf32> to vector<8x128xbf16>
      %89 = arith.index_cast %45 : i32 to index
      %c0_80 = arith.constant 0 : index
      %c0_81 = arith.constant 0 : index
      %90 = vector.load %arg11[%89, %c0_80, %c0_81] : memref<8x8x128xbf16, #tpu.memory_space<vmem>>, vector<1x8x128xbf16>
      %91 = vector.shape_cast %90 : vector<1x8x128xbf16> to vector<8x128xbf16>
      %92 = vector.shape_cast %88 : vector<8x128xbf16> to vector<1x8x128xbf16>
      tpu.vector_store %arg11[%89, %c0_80, %c0_81], %92 {strides = array<i32>} : memref<8x8x128xbf16, #tpu.memory_space<vmem>>, vector<1x8x128xbf16>,
    }
    %c8_i32_15 = arith.constant 8 : i32
    %c0_16 = arith.constant 0 : index
    %c0_17 = arith.constant 0 : index
    %14 = vector.load %arg13[%c0_16, %c0_17] : memref<8x128xf32, #tpu.memory_space<vmem>>, vector<8x128xf32>
    %c0_18 = arith.constant 0 : index
    %c0_19 = arith.constant 0 : index
    %c0_20 = arith.constant 0 : index
    %15 = vector.load %arg9[%c0_18, %c0_19, %c0_20] : memref<2x8x128xf32, #tpu.memory_space<vmem>>, vector<1x8x128xf32>
    %16 = vector.shape_cast %15 : vector<1x8x128xf32> to vector<8x128xf32>
    %17 = vector.shape_cast %14 : vector<8x128xf32> to vector<1x8x128xf32>
    tpu.vector_store %arg9[%c0_18, %c0_19, %c0_20], %17 {strides = array<i32>} : memref<2x8x128xf32, #tpu.memory_space<vmem>>, vector<1x8x128xf32>,
    %c0_21 = arith.constant 0 : index
    %c0_22 = arith.constant 0 : index
    %18 = vector.load %arg14[%c0_21, %c0_22] : memref<8x128xf32, #tpu.memory_space<vmem>>, vector<8x128xf32>
    %c0_23 = arith.constant 0 : index
    %c0_24 = arith.constant 0 : index
    %c0_25 = arith.constant 0 : index
    %19 = vector.load %arg10[%c0_23, %c0_24, %c0_25] : memref<2x8x128xf32, #tpu.memory_space<vmem>>, vector<1x8x128xf32>
    %20 = vector.shape_cast %19 : vector<1x8x128xf32> to vector<8x128xf32>
    %21 = vector.shape_cast %18 : vector<8x128xf32> to vector<1x8x128xf32>
    tpu.vector_store %arg10[%c0_23, %c0_24, %c0_25], %21 {strides = array<i32>} : memref<2x8x128xf32, #tpu.memory_space<vmem>>, vector<1x8x128xf32>,
    %c0_26 = arith.constant 0 : index
    %c0_27 = arith.constant 0 : index
    %c0_28 = arith.constant 0 : index
    %22 = vector.load %arg11[%c0_26, %c0_27, %c0_28] : memref<8x8x128xbf16, #tpu.memory_space<vmem>>, vector<8x8x128xbf16>
    %23 = vector.shape_cast %22 : vector<8x8x128xbf16> to vector<64x128xbf16>
    %c0_29 = arith.constant 0 : index
    %c0_30 = arith.constant 0 : index
    %24 = vector.load %arg5[%c0_29, %c0_30] : memref<128x512xbf16, #tpu.memory_space<vmem>>, vector<128x512xbf16>
    %cst_31 = arith.constant dense<0.000000e+00> : vector<64x512xf32>
    %25 = tpu.matmul %23, %24, %cst_31 {dimension_numbers = #tpu.dot_dimension_numbers<[1], [0], [0], [1], [0, 0, 1, 1], [], []>} : vector<64x128xbf16>, vector<128x512xbf16>, vector<64x512xf32> -> vector<64x512xf32>
    %c0_32 = arith.constant 0 : index
    %c0_33 = arith.constant 0 : index
    %26 = vector.load %arg7[%c0_32, %c0_33] : memref<1x512xf32, #tpu.memory_space<vmem>>, vector<1x512xf32>
    %27 = vector.broadcast %26 : vector<1x512xf32> to vector<64x512xf32>
    %28 = arith.addf %25, %27 : vector<64x512xf32>
    %29 = vector.shape_cast %28 : vector<64x512xf32> to vector<8x8x512xf32>
    %c0_34 = arith.constant 0 : index
    %c0_35 = arith.constant 0 : index
    %c0_36 = arith.constant 0 : index
    %30 = vector.load %arg12[%c0_34, %c0_35, %c0_36] : memref<8x8x512xf32, #tpu.memory_space<vmem>>, vector<8x8x512xf32>
    tpu.vector_store %arg12[%c0_34, %c0_35, %c0_36], %29 {strides = array<i32>} : memref<8x8x512xf32, #tpu.memory_space<vmem>>, vector<8x8x512xf32>,
    %cst_37 = arith.constant 0.000000e+00 : f32
    %31 = vector.broadcast %cst_37 : f32 to vector<8x128xf32>
    %c0_38 = arith.constant 0 : index
    %c0_39 = arith.constant 0 : index
    %32 = vector.load %arg13[%c0_38, %c0_39] : memref<8x128xf32, #tpu.memory_space<vmem>>, vector<8x128xf32>
    tpu.vector_store %arg13[%c0_38, %c0_39], %31 {strides = array<i32>} : memref<8x128xf32, #tpu.memory_space<vmem>>, vector<8x128xf32>,
    %cst_40 = arith.constant 0.000000e+00 : f32
    %33 = vector.broadcast %cst_40 : f32 to vector<8x128xf32>
    %c0_41 = arith.constant 0 : index
    %c0_42 = arith.constant 0 : index
    %34 = vector.load %arg14[%c0_41, %c0_42] : memref<8x128xf32, #tpu.memory_space<vmem>>, vector<8x128xf32>
    tpu.vector_store %arg14[%c0_41, %c0_42], %33 {strides = array<i32>} : memref<8x128xf32, #tpu.memory_space<vmem>>, vector<8x128xf32>,
    %c0_i32_43 = arith.constant 0 : i32
    %c8_i32_44 = arith.constant 8 : i32
    %35 = arith.addi %c0_i32_43, %c8_i32_44 : i32
    %c1_i32_45 = arith.constant 1 : i32
    scf.for %arg15 = %c0_i32_43 to %35 step %c1_i32_45  : i32 {
      %c1_i32_56 = arith.constant 1 : i32
      %44 = arith.muli %arg15, %c1_i32_56 : i32
      %c0_i32_57 = arith.constant 0 : i32
      %45 = arith.addi %c0_i32_57, %44 : i32
      %46 = arith.index_cast %45 : i32 to index
      %c0_58 = arith.constant 0 : index
      %c0_59 = arith.constant 0 : index
      %47 = vector.load %arg12[%46, %c0_58, %c0_59] : memref<8x8x512xf32, #tpu.memory_space<vmem>>, vector<1x8x512xf32>
      %48 = vector.shape_cast %47 : vector<1x8x512xf32> to vector<8x512xf32>
      %c0_60 = arith.constant 0 : index
      %c0_61 = arith.constant 0 : index
      %49 = vector.load %arg13[%c0_60, %c0_61] : memref<8x128xf32, #tpu.memory_space<vmem>>, vector<8x128xf32>
      %50 = arith.truncf %49 : vector<8x128xf32> to vector<8x128xbf16>
      %c0_62 = arith.constant 0 : index
      %c0_63 = arith.constant 0 : index
      %51 = vector.load %arg6[%c0_62, %c0_63] : memref<128x512xbf16, #tpu.memory_space<vmem>>, vector<128x512xbf16>
      %cst_64 = arith.constant dense<0.000000e+00> : vector<8x512xf32>
      %52 = tpu.matmul %50, %51, %cst_64 {dimension_numbers = #tpu.dot_dimension_numbers<[1], [0], [0], [1], [0, 0, 1, 1], [], []>} : vector<8x128xbf16>, vector<128x512xbf16>, vector<8x512xf32> -> vector<8x512xf32>
      %53 = arith.addf %48, %52 : vector<8x512xf32>
      %54 = vector.extract_strided_slice %53 {offsets = [0, 0], sizes = [8, 128], strides = [1, 1]} : vector<8x512xf32> to vector<8x128xf32>
      %cst_65 = arith.constant 5.000000e-01 : f32
      %55 = vector.broadcast %cst_65 : f32 to vector<8x128xf32>
      %56 = arith.mulf %55, %54 : vector<8x128xf32>
      %57 = math.tanh %56 : vector<8x128xf32>
      %cst_66 = arith.constant 1.000000e+00 : f32
      %58 = vector.broadcast %cst_66 : f32 to vector<8x128xf32>
      %59 = arith.addf %58, %57 : vector<8x128xf32>
      %cst_67 = arith.constant 5.000000e-01 : f32
      %60 = vector.broadcast %cst_67 : f32 to vector<8x128xf32>
      %61 = arith.mulf %60, %59 : vector<8x128xf32>
      %62 = vector.extract_strided_slice %53 {offsets = [0, 128], sizes = [8, 128], strides = [1, 1]} : vector<8x512xf32> to vector<8x128xf32>
      %cst_68 = arith.constant 5.000000e-01 : f32
      %63 = vector.broadcast %cst_68 : f32 to vector<8x128xf32>
      %64 = arith.mulf %63, %62 : vector<8x128xf32>
      %65 = math.tanh %64 : vector<8x128xf32>
      %cst_69 = arith.constant 1.000000e+00 : f32
      %66 = vector.broadcast %cst_69 : f32 to vector<8x128xf32>
      %67 = arith.addf %66, %65 : vector<8x128xf32>
      %cst_70 = arith.constant 5.000000e-01 : f32
      %68 = vector.broadcast %cst_70 : f32 to vector<8x128xf32>
      %69 = arith.mulf %68, %67 : vector<8x128xf32>
      %70 = vector.extract_strided_slice %53 {offsets = [0, 256], sizes = [8, 128], strides = [1, 1]} : vector<8x512xf32> to vector<8x128xf32>
      %71 = math.tanh %70 : vector<8x128xf32>
      %72 = vector.extract_strided_slice %53 {offsets = [0, 384], sizes = [8, 128], strides = [1, 1]} : vector<8x512xf32> to vector<8x128xf32>
      %cst_71 = arith.constant 5.000000e-01 : f32
      %73 = vector.broadcast %cst_71 : f32 to vector<8x128xf32>
      %74 = arith.mulf %73, %72 : vector<8x128xf32>
      %75 = math.tanh %74 : vector<8x128xf32>
      %cst_72 = arith.constant 1.000000e+00 : f32
      %76 = vector.broadcast %cst_72 : f32 to vector<8x128xf32>
      %77 = arith.addf %76, %75 : vector<8x128xf32>
      %cst_73 = arith.constant 5.000000e-01 : f32
      %78 = vector.broadcast %cst_73 : f32 to vector<8x128xf32>
      %79 = arith.mulf %78, %77 : vector<8x128xf32>
      %c0_74 = arith.constant 0 : index
      %c0_75 = arith.constant 0 : index
      %80 = vector.load %arg14[%c0_74, %c0_75] : memref<8x128xf32, #tpu.memory_space<vmem>>, vector<8x128xf32>
      %81 = arith.mulf %69, %80 : vector<8x128xf32>
      %82 = arith.mulf %61, %71 : vector<8x128xf32>
      %83 = arith.addf %81, %82 : vector<8x128xf32>
      %84 = math.tanh %83 : vector<8x128xf32>
      %85 = arith.mulf %79, %84 : vector<8x128xf32>
      %c0_76 = arith.constant 0 : index
      %c0_77 = arith.constant 0 : index
      %86 = vector.load %arg14[%c0_76, %c0_77] : memref<8x128xf32, #tpu.memory_space<vmem>>, vector<8x128xf32>
      tpu.vector_store %arg14[%c0_76, %c0_77], %83 {strides = array<i32>} : memref<8x128xf32, #tpu.memory_space<vmem>>, vector<8x128xf32>,
      %c0_78 = arith.constant 0 : index
      %c0_79 = arith.constant 0 : index
      %87 = vector.load %arg13[%c0_78, %c0_79] : memref<8x128xf32, #tpu.memory_space<vmem>>, vector<8x128xf32>
      tpu.vector_store %arg13[%c0_78, %c0_79], %85 {strides = array<i32>} : memref<8x128xf32, #tpu.memory_space<vmem>>, vector<8x128xf32>,
      %88 = arith.index_cast %45 : i32 to index
      %c0_80 = arith.constant 0 : index
      %c0_81 = arith.constant 0 : index
      %89 = vector.load %arg8[%88, %c0_80, %c0_81] : memref<8x8x128xf32, #tpu.memory_space<vmem>>, vector<1x8x128xf32>
      %90 = vector.shape_cast %89 : vector<1x8x128xf32> to vector<8x128xf32>
      %91 = vector.shape_cast %85 : vector<8x128xf32> to vector<1x8x128xf32>
      tpu.vector_store %arg8[%88, %c0_80, %c0_81], %91 {strides = array<i32>} : memref<8x8x128xf32, #tpu.memory_space<vmem>>, vector<1x8x128xf32>,
    }
    %c8_i32_46 = arith.constant 8 : i32
    %c0_47 = arith.constant 0 : index
    %c0_48 = arith.constant 0 : index
    %36 = vector.load %arg13[%c0_47, %c0_48] : memref<8x128xf32, #tpu.memory_space<vmem>>, vector<8x128xf32>
    %c1 = arith.constant 1 : index
    %c0_49 = arith.constant 0 : index
    %c0_50 = arith.constant 0 : index
    %37 = vector.load %arg9[%c1, %c0_49, %c0_50] : memref<2x8x128xf32, #tpu.memory_space<vmem>>, vector<1x8x128xf32>
    %38 = vector.shape_cast %37 : vector<1x8x128xf32> to vector<8x128xf32>
    %39 = vector.shape_cast %36 : vector<8x128xf32> to vector<1x8x128xf32>
    tpu.vector_store %arg9[%c1, %c0_49, %c0_50], %39 {strides = array<i32>} : memref<2x8x128xf32, #tpu.memory_space<vmem>>, vector<1x8x128xf32>,
    %c0_51 = arith.constant 0 : index
    %c0_52 = arith.constant 0 : index
    %40 = vector.load %arg14[%c0_51, %c0_52] : memref<8x128xf32, #tpu.memory_space<vmem>>, vector<8x128xf32>
    %c1_53 = arith.constant 1 : index
    %c0_54 = arith.constant 0 : index
    %c0_55 = arith.constant 0 : index
    %41 = vector.load %arg10[%c1_53, %c0_54, %c0_55] : memref<2x8x128xf32, #tpu.memory_space<vmem>>, vector<1x8x128xf32>
    %42 = vector.shape_cast %41 : vector<1x8x128xf32> to vector<8x128xf32>
    %43 = vector.shape_cast %40 : vector<8x128xf32> to vector<1x8x128xf32>
    tpu.vector_store %arg10[%c1_53, %c0_54, %c0_55], %43 {strides = array<i32>} : memref<2x8x128xf32, #tpu.memory_space<vmem>>, vector<1x8x128xf32>,
    return
  }
  func.func @transform_0(%arg0: i32) -> (i32, i32, i32) {
    %c0_i32 = arith.constant 0 : i32
    %c0_i32_0 = arith.constant 0 : i32
    %c0_i32_1 = arith.constant 0 : i32
    return %c0_i32, %arg0, %c0_i32_0 : i32, i32, i32
  }
  func.func @transform_1(%arg0: i32) -> (i32, i32) {
    %c0_i32 = arith.constant 0 : i32
    %c0_i32_0 = arith.constant 0 : i32
    %c0_i32_1 = arith.constant 0 : i32
    return %c0_i32, %c0_i32_0 : i32, i32
  }
  func.func @transform_2(%arg0: i32) -> (i32, i32) {
    %c0_i32 = arith.constant 0 : i32
    %c0_i32_0 = arith.constant 0 : i32
    %c0_i32_1 = arith.constant 0 : i32
    return %c0_i32, %c0_i32_0 : i32, i32
  }
  func.func @transform_3(%arg0: i32) -> (i32, i32) {
    %c0_i32 = arith.constant 0 : i32
    %c0_i32_0 = arith.constant 0 : i32
    %c0_i32_1 = arith.constant 0 : i32
    return %c0_i32, %c0_i32_0 : i32, i32
  }
  func.func @transform_4(%arg0: i32) -> (i32, i32) {
    %c0_i32 = arith.constant 0 : i32
    %c0_i32_0 = arith.constant 0 : i32
    %c0_i32_1 = arith.constant 0 : i32
    return %c0_i32, %c0_i32_0 : i32, i32
  }
  func.func @transform_5(%arg0: i32) -> (i32, i32) {
    %c0_i32 = arith.constant 0 : i32
    %c0_i32_0 = arith.constant 0 : i32
    %c0_i32_1 = arith.constant 0 : i32
    return %c0_i32, %c0_i32_0 : i32, i32
  }
  func.func @transform_6(%arg0: i32) -> (i32, i32) {
    %c0_i32 = arith.constant 0 : i32
    %c0_i32_0 = arith.constant 0 : i32
    %c0_i32_1 = arith.constant 0 : i32
    return %c0_i32, %c0_i32_0 : i32, i32
  }
  func.func @transform_7(%arg0: i32) -> (i32, i32, i32) {
    %c0_i32 = arith.constant 0 : i32
    %c0_i32_0 = arith.constant 0 : i32
    %c0_i32_1 = arith.constant 0 : i32
    return %c0_i32, %arg0, %c0_i32_0 : i32, i32, i32
  }
  func.func @transform_8(%arg0: i32) -> (i32, i32, i32) {
    %c0_i32 = arith.constant 0 : i32
    %c0_i32_0 = arith.constant 0 : i32
    %c0_i32_1 = arith.constant 0 : i32
    return %c0_i32, %arg0, %c0_i32_0 : i32, i32, i32
  }
  func.func @transform_9(%arg0: i32) -> (i32, i32, i32) {
    %c0_i32 = arith.constant 0 : i32
    %c0_i32_0 = arith.constant 0 : i32
    %c0_i32_1 = arith.constant 0 : i32
    return %c0_i32, %arg0, %c0_i32_0 : i32, i32, i32
  }
}

module attributes {stable_mosaic.version = 11 : i64} {
  func.func @_lstm_kernel(%arg0: i32, %arg1: memref<8x8x32xbf16, #tpu.memory_space<vmem>>, %arg2: memref<32x512xbf16, #tpu.memory_space<vmem>>, %arg3: memref<128x512xbf16, #tpu.memory_space<vmem>>, %arg4: memref<1x512xf32, #tpu.memory_space<vmem>>, %arg5: memref<128x512xbf16, #tpu.memory_space<vmem>>, %arg6: memref<128x512xbf16, #tpu.memory_space<vmem>>, %arg7: memref<1x512xf32, #tpu.memory_space<vmem>>, %arg8: memref<8x8x128xf32, #tpu.memory_space<vmem>>, %arg9: memref<2x8x128xf32, #tpu.memory_space<vmem>>, %arg10: memref<2x8x128xf32, #tpu.memory_space<vmem>>, %arg11: memref<8x8x128xbf16, #tpu.memory_space<vmem>>, %arg12: memref<8x8x512xf32, #tpu.memory_space<vmem>>, %arg13: memref<8x128xf32, #tpu.memory_space<vmem>>, %arg14: memref<8x128xf32, #tpu.memory_space<vmem>>) attributes {dimension_semantics = [#tpu.dimension_semantics<parallel>], iteration_bounds = array<i64: 1>, scalar_prefetch = 0 : i64, scratch_operands = 4 : i64, tpu.core_type = #tpu.core_type<tc>, window_params = [{transform_indices = @transform_0, window_bounds = array<i64: 8, 8, 32>}, {pipeline_mode = #tpu.pipeline_mode<synchronous>, transform_indices = @transform_1, window_bounds = array<i64: 32, 512>}, {pipeline_mode = #tpu.pipeline_mode<synchronous>, transform_indices = @transform_2, window_bounds = array<i64: 128, 512>}, {pipeline_mode = #tpu.pipeline_mode<synchronous>, transform_indices = @transform_3, window_bounds = array<i64: 1, 512>}, {pipeline_mode = #tpu.pipeline_mode<synchronous>, transform_indices = @transform_4, window_bounds = array<i64: 128, 512>}, {pipeline_mode = #tpu.pipeline_mode<synchronous>, transform_indices = @transform_5, window_bounds = array<i64: 128, 512>}, {pipeline_mode = #tpu.pipeline_mode<synchronous>, transform_indices = @transform_6, window_bounds = array<i64: 1, 512>}, {transform_indices = @transform_7, window_bounds = array<i64: 8, 8, 128>}, {transform_indices = @transform_8, window_bounds = array<i64: 2, 8, 128>}, {transform_indices = @transform_9, window_bounds = array<i64: 2, 8, 128>}]} {
    %c0 = arith.constant 0 : index
    %c0_0 = arith.constant 0 : index
    %c0_1 = arith.constant 0 : index
    %0 = vector.load %arg1[%c0, %c0_0, %c0_1] : memref<8x8x32xbf16, #tpu.memory_space<vmem>>, vector<8x8x32xbf16>
    %1 = vector.shape_cast %0 : vector<8x8x32xbf16> to vector<64x32xbf16>
    %c0_2 = arith.constant 0 : index
    %c0_3 = arith.constant 0 : index
    %2 = vector.load %arg2[%c0_2, %c0_3] : memref<32x512xbf16, #tpu.memory_space<vmem>>, vector<32x512xbf16>
    %cst = arith.constant dense<0.000000e+00> : vector<64x512xf32>
    %3 = tpu.matmul %1, %2, %cst {dimension_numbers = #tpu.dot_dimension_numbers<[1], [0], [0], [1], [0, 0, 1, 1], [], []>} : vector<64x32xbf16>, vector<32x512xbf16>, vector<64x512xf32> -> vector<64x512xf32>
    %c0_4 = arith.constant 0 : index
    %c0_5 = arith.constant 0 : index
    %4 = vector.load %arg4[%c0_4, %c0_5] : memref<1x512xf32, #tpu.memory_space<vmem>>, vector<1x512xf32>
    %5 = vector.broadcast %4 : vector<1x512xf32> to vector<64x512xf32>
    %6 = arith.addf %3, %5 : vector<64x512xf32>
    %7 = vector.shape_cast %6 : vector<64x512xf32> to vector<8x8x512xf32>
    %c0_6 = arith.constant 0 : index
    %c0_7 = arith.constant 0 : index
    %c0_8 = arith.constant 0 : index
    %8 = vector.load %arg12[%c0_6, %c0_7, %c0_8] : memref<8x8x512xf32, #tpu.memory_space<vmem>>, vector<8x8x512xf32>
    tpu.vector_store %arg12[%c0_6, %c0_7, %c0_8], %7 {strides = array<i32>} : memref<8x8x512xf32, #tpu.memory_space<vmem>>, vector<8x8x512xf32>,
    %cst_9 = arith.constant 0.000000e+00 : f32
    %9 = vector.broadcast %cst_9 : f32 to vector<8x128xf32>
    %c0_10 = arith.constant 0 : index
    %c0_11 = arith.constant 0 : index
    %10 = vector.load %arg13[%c0_10, %c0_11] : memref<8x128xf32, #tpu.memory_space<vmem>>, vector<8x128xf32>
    tpu.vector_store %arg13[%c0_10, %c0_11], %9 {strides = array<i32>} : memref<8x128xf32, #tpu.memory_space<vmem>>, vector<8x128xf32>,
    %cst_12 = arith.constant 0.000000e+00 : f32
    %11 = vector.broadcast %cst_12 : f32 to vector<8x128xf32>
    %c0_13 = arith.constant 0 : index
    %c0_14 = arith.constant 0 : index
    %12 = vector.load %arg14[%c0_13, %c0_14] : memref<8x128xf32, #tpu.memory_space<vmem>>, vector<8x128xf32>
    tpu.vector_store %arg14[%c0_13, %c0_14], %11 {strides = array<i32>} : memref<8x128xf32, #tpu.memory_space<vmem>>, vector<8x128xf32>,
    %c0_i32 = arith.constant 0 : i32
    %c8_i32 = arith.constant 8 : i32
    %13 = arith.addi %c0_i32, %c8_i32 : i32
    %c1_i32 = arith.constant 1 : i32
    scf.for %arg15 = %c0_i32 to %13 step %c1_i32  : i32 {
      %c1_i32_56 = arith.constant 1 : i32
      %44 = arith.muli %arg15, %c1_i32_56 : i32
      %c0_i32_57 = arith.constant 0 : i32
      %45 = arith.addi %c0_i32_57, %44 : i32
      %46 = arith.index_cast %45 : i32 to index
      %c0_58 = arith.constant 0 : index
      %c0_59 = arith.constant 0 : index
      %47 = vector.load %arg12[%46, %c0_58, %c0_59] : memref<8x8x512xf32, #tpu.memory_space<vmem>>, vector<1x8x512xf32>
      %48 = vector.shape_cast %47 : vector<1x8x512xf32> to vector<8x512xf32>
      %c0_60 = arith.constant 0 : index
      %c0_61 = arith.constant 0 : index
      %49 = vector.load %arg13[%c0_60, %c0_61] : memref<8x128xf32, #tpu.memory_space<vmem>>, vector<8x128xf32>
      %50 = arith.truncf %49 : vector<8x128xf32> to vector<8x128xbf16>
      %c0_62 = arith.constant 0 : index
      %c0_63 = arith.constant 0 : index
      %51 = vector.load %arg3[%c0_62, %c0_63] : memref<128x512xbf16, #tpu.memory_space<vmem>>, vector<128x512xbf16>
      %cst_64 = arith.constant dense<0.000000e+00> : vector<8x512xf32>
      %52 = tpu.matmul %50, %51, %cst_64 {dimension_numbers = #tpu.dot_dimension_numbers<[1], [0], [0], [1], [0, 0, 1, 1], [], []>} : vector<8x128xbf16>, vector<128x512xbf16>, vector<8x512xf32> -> vector<8x512xf32>
      %53 = arith.addf %48, %52 : vector<8x512xf32>
      %54 = vector.extract_strided_slice %53 {offsets = [0, 0], sizes = [8, 128], strides = [1, 1]} : vector<8x512xf32> to vector<8x128xf32>
      %cst_65 = arith.constant 5.000000e-01 : f32
      %55 = vector.broadcast %cst_65 : f32 to vector<8x128xf32>
      %56 = arith.mulf %55, %54 : vector<8x128xf32>
      %57 = math.tanh %56 : vector<8x128xf32>
      %cst_66 = arith.constant 1.000000e+00 : f32
      %58 = vector.broadcast %cst_66 : f32 to vector<8x128xf32>
      %59 = arith.addf %58, %57 : vector<8x128xf32>
      %cst_67 = arith.constant 5.000000e-01 : f32
      %60 = vector.broadcast %cst_67 : f32 to vector<8x128xf32>
      %61 = arith.mulf %60, %59 : vector<8x128xf32>
      %62 = vector.extract_strided_slice %53 {offsets = [0, 128], sizes = [8, 128], strides = [1, 1]} : vector<8x512xf32> to vector<8x128xf32>
      %cst_68 = arith.constant 5.000000e-01 : f32
      %63 = vector.broadcast %cst_68 : f32 to vector<8x128xf32>
      %64 = arith.mulf %63, %62 : vector<8x128xf32>
      %65 = math.tanh %64 : vector<8x128xf32>
      %cst_69 = arith.constant 1.000000e+00 : f32
      %66 = vector.broadcast %cst_69 : f32 to vector<8x128xf32>
      %67 = arith.addf %66, %65 : vector<8x128xf32>
      %cst_70 = arith.constant 5.000000e-01 : f32
      %68 = vector.broadcast %cst_70 : f32 to vector<8x128xf32>
      %69 = arith.mulf %68, %67 : vector<8x128xf32>
      %70 = vector.extract_strided_slice %53 {offsets = [0, 256], sizes = [8, 128], strides = [1, 1]} : vector<8x512xf32> to vector<8x128xf32>
      %71 = math.tanh %70 : vector<8x128xf32>
      %72 = vector.extract_strided_slice %53 {offsets = [0, 384], sizes = [8, 128], strides = [1, 1]} : vector<8x512xf32> to vector<8x128xf32>
      %cst_71 = arith.constant 5.000000e-01 : f32
      %73 = vector.broadcast %cst_71 : f32 to vector<8x128xf32>
      %74 = arith.mulf %73, %72 : vector<8x128xf32>
      %75 = math.tanh %74 : vector<8x128xf32>
      %cst_72 = arith.constant 1.000000e+00 : f32
      %76 = vector.broadcast %cst_72 : f32 to vector<8x128xf32>
      %77 = arith.addf %76, %75 : vector<8x128xf32>
      %cst_73 = arith.constant 5.000000e-01 : f32
      %78 = vector.broadcast %cst_73 : f32 to vector<8x128xf32>
      %79 = arith.mulf %78, %77 : vector<8x128xf32>
      %c0_74 = arith.constant 0 : index
      %c0_75 = arith.constant 0 : index
      %80 = vector.load %arg14[%c0_74, %c0_75] : memref<8x128xf32, #tpu.memory_space<vmem>>, vector<8x128xf32>
      %81 = arith.mulf %69, %80 : vector<8x128xf32>
      %82 = arith.mulf %61, %71 : vector<8x128xf32>
      %83 = arith.addf %81, %82 : vector<8x128xf32>
      %84 = math.tanh %83 : vector<8x128xf32>
      %85 = arith.mulf %79, %84 : vector<8x128xf32>
      %c0_76 = arith.constant 0 : index
      %c0_77 = arith.constant 0 : index
      %86 = vector.load %arg14[%c0_76, %c0_77] : memref<8x128xf32, #tpu.memory_space<vmem>>, vector<8x128xf32>
      tpu.vector_store %arg14[%c0_76, %c0_77], %83 {strides = array<i32>} : memref<8x128xf32, #tpu.memory_space<vmem>>, vector<8x128xf32>,
      %c0_78 = arith.constant 0 : index
      %c0_79 = arith.constant 0 : index
      %87 = vector.load %arg13[%c0_78, %c0_79] : memref<8x128xf32, #tpu.memory_space<vmem>>, vector<8x128xf32>
      tpu.vector_store %arg13[%c0_78, %c0_79], %85 {strides = array<i32>} : memref<8x128xf32, #tpu.memory_space<vmem>>, vector<8x128xf32>,
      %88 = arith.truncf %85 : vector<8x128xf32> to vector<8x128xbf16>
      %89 = arith.index_cast %45 : i32 to index
      %c0_80 = arith.constant 0 : index
      %c0_81 = arith.constant 0 : index
      %90 = vector.load %arg11[%89, %c0_80, %c0_81] : memref<8x8x128xbf16, #tpu.memory_space<vmem>>, vector<1x8x128xbf16>
      %91 = vector.shape_cast %90 : vector<1x8x128xbf16> to vector<8x128xbf16>
      %92 = vector.shape_cast %88 : vector<8x128xbf16> to vector<1x8x128xbf16>
      tpu.vector_store %arg11[%89, %c0_80, %c0_81], %92 {strides = array<i32>} : memref<8x8x128xbf16, #tpu.memory_space<vmem>>, vector<1x8x128xbf16>,
    }
    %c8_i32_15 = arith.constant 8 : i32
    %c0_16 = arith.constant 0 : index
    %c0_17 = arith.constant 0 : index
    %14 = vector.load %arg13[%c0_16, %c0_17] : memref<8x128xf32, #tpu.memory_space<vmem>>, vector<8x128xf32>
    %c0_18 = arith.constant 0 : index
    %c0_19 = arith.constant 0 : index
    %c0_20 = arith.constant 0 : index
    %15 = vector.load %arg9[%c0_18, %c0_19, %c0_20] : memref<2x8x128xf32, #tpu.memory_space<vmem>>, vector<1x8x128xf32>
    %16 = vector.shape_cast %15 : vector<1x8x128xf32> to vector<8x128xf32>
    %17 = vector.shape_cast %14 : vector<8x128xf32> to vector<1x8x128xf32>
    tpu.vector_store %arg9[%c0_18, %c0_19, %c0_20], %17 {strides = array<i32>} : memref<2x8x128xf32, #tpu.memory_space<vmem>>, vector<1x8x128xf32>,
    %c0_21 = arith.constant 0 : index
    %c0_22 = arith.constant 0 : index
    %18 = vector.load %arg14[%c0_21, %c0_22] : memref<8x128xf32, #tpu.memory_space<vmem>>, vector<8x128xf32>
    %c0_23 = arith.constant 0 : index
    %c0_24 = arith.constant 0 : index
    %c0_25 = arith.constant 0 : index
    %19 = vector.load %arg10[%c0_23, %c0_24, %c0_25] : memref<2x8x128xf32, #tpu.memory_space<vmem>>, vector<1x8x128xf32>
    %20 = vector.shape_cast %19 : vector<1x8x128xf32> to vector<8x128xf32>
    %21 = vector.shape_cast %18 : vector<8x128xf32> to vector<1x8x128xf32>
    tpu.vector_store %arg10[%c0_23, %c0_24, %c0_25], %21 {strides = array<i32>} : memref<2x8x128xf32, #tpu.memory_space<vmem>>, vector<1x8x128xf32>,
    %c0_26 = arith.constant 0 : index
    %c0_27 = arith.constant 0 : index
    %c0_28 = arith.constant 0 : index
    %22 = vector.load %arg11[%c0_26, %c0_27, %c0_28] : memref<8x8x128xbf16, #tpu.memory_space<vmem>>, vector<8x8x128xbf16>
    %23 = vector.shape_cast %22 : vector<8x8x128xbf16> to vector<64x128xbf16>
    %c0_29 = arith.constant 0 : index
    %c0_30 = arith.constant 0 : index
    %24 = vector.load %arg5[%c0_29, %c0_30] : memref<128x512xbf16, #tpu.memory_space<vmem>>, vector<128x512xbf16>
    %cst_31 = arith.constant dense<0.000000e+00> : vector<64x512xf32>
    %25 = tpu.matmul %23, %24, %cst_31 {dimension_numbers = #tpu.dot_dimension_numbers<[1], [0], [0], [1], [0, 0, 1, 1], [], []>} : vector<64x128xbf16>, vector<128x512xbf16>, vector<64x512xf32> -> vector<64x512xf32>
    %c0_32 = arith.constant 0 : index
    %c0_33 = arith.constant 0 : index
    %26 = vector.load %arg7[%c0_32, %c0_33] : memref<1x512xf32, #tpu.memory_space<vmem>>, vector<1x512xf32>
    %27 = vector.broadcast %26 : vector<1x512xf32> to vector<64x512xf32>
    %28 = arith.addf %25, %27 : vector<64x512xf32>
    %29 = vector.shape_cast %28 : vector<64x512xf32> to vector<8x8x512xf32>
    %c0_34 = arith.constant 0 : index
    %c0_35 = arith.constant 0 : index
    %c0_36 = arith.constant 0 : index
    %30 = vector.load %arg12[%c0_34, %c0_35, %c0_36] : memref<8x8x512xf32, #tpu.memory_space<vmem>>, vector<8x8x512xf32>
    tpu.vector_store %arg12[%c0_34, %c0_35, %c0_36], %29 {strides = array<i32>} : memref<8x8x512xf32, #tpu.memory_space<vmem>>, vector<8x8x512xf32>,
    %cst_37 = arith.constant 0.000000e+00 : f32
    %31 = vector.broadcast %cst_37 : f32 to vector<8x128xf32>
    %c0_38 = arith.constant 0 : index
    %c0_39 = arith.constant 0 : index
    %32 = vector.load %arg13[%c0_38, %c0_39] : memref<8x128xf32, #tpu.memory_space<vmem>>, vector<8x128xf32>
    tpu.vector_store %arg13[%c0_38, %c0_39], %31 {strides = array<i32>} : memref<8x128xf32, #tpu.memory_space<vmem>>, vector<8x128xf32>,
    %cst_40 = arith.constant 0.000000e+00 : f32
    %33 = vector.broadcast %cst_40 : f32 to vector<8x128xf32>
    %c0_41 = arith.constant 0 : index
    %c0_42 = arith.constant 0 : index
    %34 = vector.load %arg14[%c0_41, %c0_42] : memref<8x128xf32, #tpu.memory_space<vmem>>, vector<8x128xf32>
    tpu.vector_store %arg14[%c0_41, %c0_42], %33 {strides = array<i32>} : memref<8x128xf32, #tpu.memory_space<vmem>>, vector<8x128xf32>,
    %c0_i32_43 = arith.constant 0 : i32
    %c8_i32_44 = arith.constant 8 : i32
    %35 = arith.addi %c0_i32_43, %c8_i32_44 : i32
    %c1_i32_45 = arith.constant 1 : i32
    scf.for %arg15 = %c0_i32_43 to %35 step %c1_i32_45  : i32 {
      %c1_i32_56 = arith.constant 1 : i32
      %44 = arith.muli %arg15, %c1_i32_56 : i32
      %c0_i32_57 = arith.constant 0 : i32
      %45 = arith.addi %c0_i32_57, %44 : i32
      %46 = arith.index_cast %45 : i32 to index
      %c0_58 = arith.constant 0 : index
      %c0_59 = arith.constant 0 : index
      %47 = vector.load %arg12[%46, %c0_58, %c0_59] : memref<8x8x512xf32, #tpu.memory_space<vmem>>, vector<1x8x512xf32>
      %48 = vector.shape_cast %47 : vector<1x8x512xf32> to vector<8x512xf32>
      %c0_60 = arith.constant 0 : index
      %c0_61 = arith.constant 0 : index
      %49 = vector.load %arg13[%c0_60, %c0_61] : memref<8x128xf32, #tpu.memory_space<vmem>>, vector<8x128xf32>
      %50 = arith.truncf %49 : vector<8x128xf32> to vector<8x128xbf16>
      %c0_62 = arith.constant 0 : index
      %c0_63 = arith.constant 0 : index
      %51 = vector.load %arg6[%c0_62, %c0_63] : memref<128x512xbf16, #tpu.memory_space<vmem>>, vector<128x512xbf16>
      %cst_64 = arith.constant dense<0.000000e+00> : vector<8x512xf32>
      %52 = tpu.matmul %50, %51, %cst_64 {dimension_numbers = #tpu.dot_dimension_numbers<[1], [0], [0], [1], [0, 0, 1, 1], [], []>} : vector<8x128xbf16>, vector<128x512xbf16>, vector<8x512xf32> -> vector<8x512xf32>
      %53 = arith.addf %48, %52 : vector<8x512xf32>
      %54 = vector.extract_strided_slice %53 {offsets = [0, 0], sizes = [8, 128], strides = [1, 1]} : vector<8x512xf32> to vector<8x128xf32>
      %cst_65 = arith.constant 5.000000e-01 : f32
      %55 = vector.broadcast %cst_65 : f32 to vector<8x128xf32>
      %56 = arith.mulf %55, %54 : vector<8x128xf32>
      %57 = math.tanh %56 : vector<8x128xf32>
      %cst_66 = arith.constant 1.000000e+00 : f32
      %58 = vector.broadcast %cst_66 : f32 to vector<8x128xf32>
      %59 = arith.addf %58, %57 : vector<8x128xf32>
      %cst_67 = arith.constant 5.000000e-01 : f32
      %60 = vector.broadcast %cst_67 : f32 to vector<8x128xf32>
      %61 = arith.mulf %60, %59 : vector<8x128xf32>
      %62 = vector.extract_strided_slice %53 {offsets = [0, 128], sizes = [8, 128], strides = [1, 1]} : vector<8x512xf32> to vector<8x128xf32>
      %cst_68 = arith.constant 5.000000e-01 : f32
      %63 = vector.broadcast %cst_68 : f32 to vector<8x128xf32>
      %64 = arith.mulf %63, %62 : vector<8x128xf32>
      %65 = math.tanh %64 : vector<8x128xf32>
      %cst_69 = arith.constant 1.000000e+00 : f32
      %66 = vector.broadcast %cst_69 : f32 to vector<8x128xf32>
      %67 = arith.addf %66, %65 : vector<8x128xf32>
      %cst_70 = arith.constant 5.000000e-01 : f32
      %68 = vector.broadcast %cst_70 : f32 to vector<8x128xf32>
      %69 = arith.mulf %68, %67 : vector<8x128xf32>
      %70 = vector.extract_strided_slice %53 {offsets = [0, 256], sizes = [8, 128], strides = [1, 1]} : vector<8x512xf32> to vector<8x128xf32>
      %71 = math.tanh %70 : vector<8x128xf32>
      %72 = vector.extract_strided_slice %53 {offsets = [0, 384], sizes = [8, 128], strides = [1, 1]} : vector<8x512xf32> to vector<8x128xf32>
      %cst_71 = arith.constant 5.000000e-01 : f32
      %73 = vector.broadcast %cst_71 : f32 to vector<8x128xf32>
      %74 = arith.mulf %73, %72 : vector<8x128xf32>
      %75 = math.tanh %74 : vector<8x128xf32>
      %cst_72 = arith.constant 1.000000e+00 : f32
      %76 = vector.broadcast %cst_72 : f32 to vector<8x128xf32>
      %77 = arith.addf %76, %75 : vector<8x128xf32>
      %cst_73 = arith.constant 5.000000e-01 : f32
      %78 = vector.broadcast %cst_73 : f32 to vector<8x128xf32>
      %79 = arith.mulf %78, %77 : vector<8x128xf32>
      %c0_74 = arith.constant 0 : index
      %c0_75 = arith.constant 0 : index
      %80 = vector.load %arg14[%c0_74, %c0_75] : memref<8x128xf32, #tpu.memory_space<vmem>>, vector<8x128xf32>
      %81 = arith.mulf %69, %80 : vector<8x128xf32>
      %82 = arith.mulf %61, %71 : vector<8x128xf32>
      %83 = arith.addf %81, %82 : vector<8x128xf32>
      %84 = math.tanh %83 : vector<8x128xf32>
      %85 = arith.mulf %79, %84 : vector<8x128xf32>
      %c0_76 = arith.constant 0 : index
      %c0_77 = arith.constant 0 : index
      %86 = vector.load %arg14[%c0_76, %c0_77] : memref<8x128xf32, #tpu.memory_space<vmem>>, vector<8x128xf32>
      tpu.vector_store %arg14[%c0_76, %c0_77], %83 {strides = array<i32>} : memref<8x128xf32, #tpu.memory_space<vmem>>, vector<8x128xf32>,
      %c0_78 = arith.constant 0 : index
      %c0_79 = arith.constant 0 : index
      %87 = vector.load %arg13[%c0_78, %c0_79] : memref<8x128xf32, #tpu.memory_space<vmem>>, vector<8x128xf32>
      tpu.vector_store %arg13[%c0_78, %c0_79], %85 {strides = array<i32>} : memref<8x128xf32, #tpu.memory_space<vmem>>, vector<8x128xf32>,
      %88 = arith.index_cast %45 : i32 to index
      %c0_80 = arith.constant 0 : index
      %c0_81 = arith.constant 0 : index
      %89 = vector.load %arg8[%88, %c0_80, %c0_81] : memref<8x8x128xf32, #tpu.memory_space<vmem>>, vector<1x8x128xf32>
      %90 = vector.shape_cast %89 : vector<1x8x128xf32> to vector<8x128xf32>
      %91 = vector.shape_cast %85 : vector<8x128xf32> to vector<1x8x128xf32>
      tpu.vector_store %arg8[%88, %c0_80, %c0_81], %91 {strides = array<i32>} : memref<8x8x128xf32, #tpu.memory_space<vmem>>, vector<1x8x128xf32>,
    }
    %c8_i32_46 = arith.constant 8 : i32
    %c0_47 = arith.constant 0 : index
    %c0_48 = arith.constant 0 : index
    %36 = vector.load %arg13[%c0_47, %c0_48] : memref<8x128xf32, #tpu.memory_space<vmem>>, vector<8x128xf32>
    %c1 = arith.constant 1 : index
    %c0_49 = arith.constant 0 : index
    %c0_50 = arith.constant 0 : index
    %37 = vector.load %arg9[%c1, %c0_49, %c0_50] : memref<2x8x128xf32, #tpu.memory_space<vmem>>, vector<1x8x128xf32>
    %38 = vector.shape_cast %37 : vector<1x8x128xf32> to vector<8x128xf32>
    %39 = vector.shape_cast %36 : vector<8x128xf32> to vector<1x8x128xf32>
    tpu.vector_store %arg9[%c1, %c0_49, %c0_50], %39 {strides = array<i32>} : memref<2x8x128xf32, #tpu.memory_space<vmem>>, vector<1x8x128xf32>,
    %c0_51 = arith.constant 0 : index
    %c0_52 = arith.constant 0 : index
    %40 = vector.load %arg14[%c0_51, %c0_52] : memref<8x128xf32, #tpu.memory_space<vmem>>, vector<8x128xf32>
    %c1_53 = arith.constant 1 : index
    %c0_54 = arith.constant 0 : index
    %c0_55 = arith.constant 0 : index
    %41 = vector.load %arg10[%c1_53, %c0_54, %c0_55] : memref<2x8x128xf32, #tpu.memory_space<vmem>>, vector<1x8x128xf32>
    %42 = vector.shape_cast %41 : vector<1x8x128xf32> to vector<8x128xf32>
    %43 = vector.shape_cast %40 : vector<8x128xf32> to vector<1x8x128xf32>
    tpu.vector_store %arg10[%c1_53, %c0_54, %c0_55], %43 {strides = array<i32>} : memref<2x8x128xf32, #tpu.memory_space<vmem>>, vector<1x8x128xf32>,
    return
  }
  func.func @transform_0(%arg0: i32) -> (i32, i32, i32) {
    %c0_i32 = arith.constant 0 : i32
    %c0_i32_0 = arith.constant 0 : i32
    %c0_i32_1 = arith.constant 0 : i32
    return %c0_i32, %arg0, %c0_i32_0 : i32, i32, i32
  }
  func.func @transform_1(%arg0: i32) -> (i32, i32) {
    %c0_i32 = arith.constant 0 : i32
    %c0_i32_0 = arith.constant 0 : i32
    %c0_i32_1 = arith.constant 0 : i32
    return %c0_i32, %c0_i32_0 : i32, i32
  }
  func.func @transform_2(%arg0: i32) -> (i32, i32) {
    %c0_i32 = arith.constant 0 : i32
    %c0_i32_0 = arith.constant 0 : i32
    %c0_i32_1 = arith.constant 0 : i32
    return %c0_i32, %c0_i32_0 : i32, i32
  }
  func.func @transform_3(%arg0: i32) -> (i32, i32) {
    %c0_i32 = arith.constant 0 : i32
    %c0_i32_0 = arith.constant 0 : i32
    %c0_i32_1 = arith.constant 0 : i32
    return %c0_i32, %c0_i32_0 : i32, i32
  }
  func.func @transform_4(%arg0: i32) -> (i32, i32) {
    %c0_i32 = arith.constant 0 : i32
    %c0_i32_0 = arith.constant 0 : i32
    %c0_i32_1 = arith.constant 0 : i32
    return %c0_i32, %c0_i32_0 : i32, i32
  }
  func.func @transform_5(%arg0: i32) -> (i32, i32) {
    %c0_i32 = arith.constant 0 : i32
    %c0_i32_0 = arith.constant 0 : i32
    %c0_i32_1 = arith.constant 0 : i32
    return %c0_i32, %c0_i32_0 : i32, i32
  }
  func.func @transform_6(%arg0: i32) -> (i32, i32) {
    %c0_i32 = arith.constant 0 : i32
    %c0_i32_0 = arith.constant 0 : i32
    %c0_i32_1 = arith.constant 0 : i32
    return %c0_i32, %c0_i32_0 : i32, i32
  }
  func.func @transform_7(%arg0: i32) -> (i32, i32, i32) {
    %c0_i32 = arith.constant 0 : i32
    %c0_i32_0 = arith.constant 0 : i32
    %c0_i32_1 = arith.constant 0 : i32
    return %c0_i32, %arg0, %c0_i32_0 : i32, i32, i32
  }
  func.func @transform_8(%arg0: i32) -> (i32, i32, i32) {
    %c0_i32 = arith.constant 0 : i32
    %c0_i32_0 = arith.constant 0 : i32
    %c0_i32_1 = arith.constant 0 : i32
    return %c0_i32, %arg0, %c0_i32_0 : i32, i32, i32
  }
  func.func @transform_9(%arg0: i32) -> (i32, i32, i32) {
    %c0_i32 = arith.constant 0 : i32
    %c0_i32_0 = arith.constant 0 : i32
    %c0_i32_1 = arith.constant 0 : i32
    return %c0_i32, %arg0, %c0_i32_0 : i32, i32, i32
  }
}

</mosaic_0001>

<llo_original>
// kernel: tpu_custom_call.1
$region0: #{tpu_custom_call.1}
  #allocation0 [shape = 'u32[]', space=smem, size = 0x4, offset = 0x4, fixed_abs, tag = 'smem constant byte address 0x4 - core index']
  #allocation1 [shape = 'u32[144,128]{1,0:T(1,128)}', space=vmem, size = 0x12000, scoped, tag = 'internal scratch']
  #allocation2 [shape = 'bf16[8,8,128]{2,1,0:T(8,128)(2,1)}', space=vmem, size = 0x4000, scoped, tag = 'scratch operand']
  #allocation3 [shape = 'f32[8,8,512]{2,1,0:T(8,128)}', space=vmem, size = 0x20000, scoped, tag = 'scratch operand']
  #allocation4 [shape = 'f32[8,128]{1,0:T(8,128)}', space=vmem, size = 0x1000, scoped, tag = 'scratch operand']
  #allocation5 [shape = 'f32[8,128]{1,0:T(8,128)}', space=vmem, size = 0x1000, scoped, tag = 'scratch operand']
  %s0 = inlined_call_operand.hbm [shape: bf16[8,8,32], index: 0, kind: input, shape index: {}]
  %s1 = inlined_call_operand.hbm [shape: bf16[32,512], index: 1, kind: input, shape index: {}]
  %s2 = inlined_call_operand.hbm [shape: bf16[128,512], index: 2, kind: input, shape index: {}]
  %s3 = inlined_call_operand.vmem [shape: f32[1,512], index: 3, kind: input, shape index: {}]
  %s4 = inlined_call_operand.hbm [shape: bf16[128,512], index: 4, kind: input, shape index: {}]
  %s5 = inlined_call_operand.hbm [shape: bf16[128,512], index: 5, kind: input, shape index: {}]
  %s6 = inlined_call_operand.vmem [shape: f32[1,512], index: 6, kind: input, shape index: {}]
  %s7 = inlined_call_operand.hbm [shape: f32[8,8,128], index: 7, kind: output, shape index: {0}]
  %s8 = inlined_call_operand.hbm [shape: f32[2,8,128], index: 8, kind: output, shape index: {1}]
  %s9 = inlined_call_operand.hbm [shape: f32[2,8,128], index: 9, kind: output, shape index: {2}]
  %10 = xla_tuple %s7, %s8, %s9
  %s11 = sld [smem:[#allocation0]]
  $region88: #{tpu_custom_call.1} parent=0
    _
  %s13 = ssub.s32 1, %s11
  %s14 = scalar_select 0, %s13, %s11
  $region1: #{tpu_custom_call.1} parent=0
    #allocation6 [shape = 'u8[16384]{0}', space=vmem, size = 0x4000, scoped, tag = 'input window, operand 0, single buffered']
    #allocation7 [shape = 's32[1]{0}', space=sflag, size = 0x4, scoped, tag = 'scoped memory for tpu_custom_call.1']
    #allocation8 [shape = 's32[1]{0}', space=sflag, size = 0x4, scoped, tag = 'scoped memory for tpu_custom_call.1']
    #allocation9 [shape = 'u8[32768]{0}', space=vmem, size = 0x8000, scoped, tag = 'input window, operand 1, single buffered']
    #allocation10 [shape = 's32[1]{0}', space=sflag, size = 0x4, scoped, tag = 'scoped memory for tpu_custom_call.1']
    #allocation11 [shape = 'u8[131072]{0}', space=vmem, size = 0x20000, scoped, tag = 'input window, operand 2, single buffered']
    #allocation12 [shape = 'u8[131072]{0}', space=vmem, size = 0x20000, scoped, tag = 'input window, operand 4, single buffered']
    #allocation13 [shape = 's32[1]{0}', space=sflag, size = 0x4, scoped, tag = 'scoped memory for tpu_custom_call.1']
    #allocation14 [shape = 'u8[131072]{0}', space=vmem, size = 0x20000, scoped, tag = 'input window, operand 5, single buffered']
    #allocation15 [shape = 'u8[32768]{0}', space=vmem, size = 0x8000, scoped, tag = 'output window, operand 0, single buffered']
    #allocation16 [shape = 'u8[8192]{0}', space=vmem, size = 0x2000, scoped, tag = 'output window, operand 1, single buffered']
    #allocation17 [shape = 's32[1]{0}', space=sflag, size = 0x4, scoped, tag = 'scoped memory for tpu_custom_call.1']
    #allocation18 [shape = 'u8[8192]{0}', space=vmem, size = 0x2000, scoped, tag = 'output window, operand 2, single buffered']
    %15 = vsyncpa [#allocation7], 0
    %16 = vsyncpa [#allocation10], 0
    %17 = vsyncpa [#allocation13], 0
    %18 = vsyncpa [#allocation8], 0
    %19 = vsyncpa [#allocation17], 0
    // Predicated region
    $region2: #{tpu_custom_call.1} parent=1 // pred_check
      _
    $region3: #{tpu_custom_call.1} parent=1 // pred_check_branch
      %21 = sbr.rel (0) target = $region5
    $region4: #{tpu_custom_call.1} parent=1 // pred_region
      %s23 = ssub.s32 512, 512
      %24 = vsyncadd [#allocation7], %s23
      %s25 = sshll.u32 [#allocation6], 4
      %s26 = int_to_ptr.vmem [resolvable:$true] %s25
      %31 = dma.hbm_to_vmem [thread:$0]  %s0, 512, %s26, [#allocation7], 64, 64, 4
    $region5: #{tpu_custom_call.1} parent=1 // pred_fallthru
      _
    // Predicated region
    $region6: #{tpu_custom_call.1} parent=1 // pred_check
      _
    $region7: #{tpu_custom_call.1} parent=1 // pred_check_branch
      %33 = sbr.rel (0) target = $region9
    $region8: #{tpu_custom_call.1} parent=1 // pred_region
      %s35 = ssub.s32 1024, 1024
      %36 = vsyncadd [#allocation10], %s35
      %s37 = sshll.u32 [#allocation9], 4
      %s38 = int_to_ptr.vmem [resolvable:$true] %s37
      %43 = dma.hbm_to_vmem [thread:$0]  %s1, 1024, %s38, [#allocation10], 256, 256, 16
    $region9: #{tpu_custom_call.1} parent=1 // pred_fallthru
      _
    // Predicated region
    $region10: #{tpu_custom_call.1} parent=1 // pred_check
      _
    $region11: #{tpu_custom_call.1} parent=1 // pred_check_branch
      %45 = sbr.rel (0) target = $region13
    $region12: #{tpu_custom_call.1} parent=1 // pred_region
      %s47 = ssub.s32 4096, 4096
      %48 = vsyncadd [#allocation10], %s47
      %s49 = sshll.u32 [#allocation11], 4
      %s50 = int_to_ptr.vmem [resolvable:$true] %s49
      %55 = dma.hbm_to_vmem [thread:$0]  %s2, 4096, %s50, [#allocation10], 256, 256, 16
    $region13: #{tpu_custom_call.1} parent=1 // pred_fallthru
      _
    // Predicated region
    $region14: #{tpu_custom_call.1} parent=1 // pred_check
      _
    $region15: #{tpu_custom_call.1} parent=1 // pred_check_branch
      %57 = sbr.rel (0) target = $region17
    $region16: #{tpu_custom_call.1} parent=1 // pred_region
      _
    $region17: #{tpu_custom_call.1} parent=1 // pred_fallthru
      _
    // Predicated region
    $region18: #{tpu_custom_call.1} parent=1 // pred_check
      _
    $region19: #{tpu_custom_call.1} parent=1 // pred_check_branch
      %59 = sbr.rel (0) target = $region21
    $region20: #{tpu_custom_call.1} parent=1 // pred_region
      %s61 = ssub.s32 4096, 4096
      %62 = vsyncadd [#allocation13], %s61
      %s63 = sshll.u32 [#allocation12], 4
      %s64 = int_to_ptr.vmem [resolvable:$true] %s63
      %69 = dma.hbm_to_vmem [thread:$0]  %s4, 4096, %s64, [#allocation13], 256, 256, 16
    $region21: #{tpu_custom_call.1} parent=1 // pred_fallthru
      _
    // Predicated region
    $region22: #{tpu_custom_call.1} parent=1 // pred_check
      _
    $region23: #{tpu_custom_call.1} parent=1 // pred_check_branch
      %71 = sbr.rel (0) target = $region25
    $region24: #{tpu_custom_call.1} parent=1 // pred_region
      %s73 = ssub.s32 4096, 4096
      %74 = vsyncadd [#allocation13], %s73
      %s75 = sshll.u32 [#allocation14], 4
      %s76 = int_to_ptr.vmem [resolvable:$true] %s75
      %81 = dma.hbm_to_vmem [thread:$0]  %s5, 4096, %s76, [#allocation13], 256, 256, 16
    $region25: #{tpu_custom_call.1} parent=1 // pred_fallthru
      _
    // Predicated region
    $region26: #{tpu_custom_call.1} parent=1 // pred_check
      _
    $region27: #{tpu_custom_call.1} parent=1 // pred_check_branch
      %83 = sbr.rel (0) target = $region29
    $region28: #{tpu_custom_call.1} parent=1 // pred_region
      _
    $region29: #{tpu_custom_call.1} parent=1 // pred_fallthru
      _
    // Predicated region
    $region30: #{tpu_custom_call.1} parent=1 // pred_check
      _
    $region31: #{tpu_custom_call.1} parent=1 // pred_check_branch
      %85 = sbr.rel (0) target = $region33
    $region32: #{tpu_custom_call.1} parent=1 // pred_region
      %86 = dma.done [#allocation7], 512
    $region33: #{tpu_custom_call.1} parent=1 // pred_fallthru
      _
    // Predicated region
    $region34: #{tpu_custom_call.1} parent=1 // pred_check
      _
    $region35: #{tpu_custom_call.1} parent=1 // pred_check_branch
      %88 = sbr.rel (0) target = $region37
    $region36: #{tpu_custom_call.1} parent=1 // pred_region
      %89 = dma.done [#allocation10], 1024
    $region37: #{tpu_custom_call.1} parent=1 // pred_fallthru
      _
    // Predicated region
    $region38: #{tpu_custom_call.1} parent=1 // pred_check
      _
    $region39: #{tpu_custom_call.1} parent=1 // pred_check_branch
      %91 = sbr.rel (0) target = $region41
    $region40: #{tpu_custom_call.1} parent=1 // pred_region
      %92 = dma.done [#allocation10], 4096
    $region41: #{tpu_custom_call.1} parent=1 // pred_fallthru
      _
    // Predicated region
    $region42: #{tpu_custom_call.1} parent=1 // pred_check
      _
    $region43: #{tpu_custom_call.1} parent=1 // pred_check_branch
      %94 = sbr.rel (0) target = $region45
    $region44: #{tpu_custom_call.1} parent=1 // pred_region
      %95 = dma.done [#allocation13], 4096
    $region45: #{tpu_custom_call.1} parent=1 // pred_fallthru
      _
    // Predicated region
    $region46: #{tpu_custom_call.1} parent=1 // pred_check
      _
    $region47: #{tpu_custom_call.1} parent=1 // pred_check_branch
      %97 = sbr.rel (0) target = $region49
    $region48: #{tpu_custom_call.1} parent=1 // pred_region
      %98 = dma.done [#allocation13], 4096
    $region49: #{tpu_custom_call.1} parent=1 // pred_fallthru
      _
    %v100 = vld [vmem:[#allocation6] sm:$0xf]
    %v101 = vld [vmem:[#allocation6 + $0x4] sm:$0xf]
    %v102 = vld [vmem:[#allocation6 + $0x8] sm:$0xf]
    %v103 = vld [vmem:[#allocation6 + $0xc] sm:$0xf]
    %v104 = vld [vmem:[#allocation6 + $0x10] sm:$0xf]
    %v105 = vld [vmem:[#allocation6 + $0x14] sm:$0xf]
    %v106 = vld [vmem:[#allocation6 + $0x18] sm:$0xf]
    %v107 = vld [vmem:[#allocation6 + $0x1c] sm:$0xf]
    %v108 = vld [vmem:[#allocation9] sm:$0xff]
    %v109 = vld [vmem:[#allocation9 + $0x8] sm:$0xff]
    %v110 = vld [vmem:[#allocation9 + $0x10] sm:$0xff]
    %v111 = vld [vmem:[#allocation9 + $0x18] sm:$0xff]
    %v112 = vld [vmem:[#allocation9 + $0x20] sm:$0xff]
    %v113 = vld [vmem:[#allocation9 + $0x28] sm:$0xff]
    %v114 = vld [vmem:[#allocation9 + $0x30] sm:$0xff]
    %v115 = vld [vmem:[#allocation9 + $0x38] sm:$0xff]
    %v116 = vld [vmem:[%s3] sm:$0xf]
    %v118 = vlaneseq
    %v119 = vshrl.u32 %v118, 7
    %v120 = vsub.s32 0, %v119
    %v121 = vrot.slane %v116, %v120
    %v122 = vlaneseq
    %v123 = vshrl.u32 %v122, 7
    %v124 = vsub.s32 1, %v123
    %v125 = vrot.slane %v116, %v124
    %v126 = vlaneseq
    %v127 = vshrl.u32 %v126, 7
    %v128 = vsub.s32 2, %v127
    %v129 = vrot.slane %v116, %v128
    %v130 = vlaneseq
    %v131 = vshrl.u32 %v130, 7
    %v132 = vsub.s32 3, %v131
    %v133 = vrot.slane %v116, %v132
    %v146 = vunpack.c.l.b16 %v100
    %v147 = vunpack.c.l.b16 %v101
    %v148 = vunpack.c.l.b16 %v102
    %v149 = vunpack.c.l.b16 %v103
    %v150 = vunpack.c.l.b16 %v104
    %v151 = vunpack.c.l.b16 %v105
    %v152 = vunpack.c.l.b16 %v106
    %v153 = vunpack.c.l.b16 %v107
    %v154 = vpack.c.b16 %v147, %v146
    %v155 = vpack.c.b16 %v149, %v148
    %v156 = vpack.c.b16 %v151, %v150
    %v157 = vpack.c.b16 %v153, %v152
    %v166 = vunpack.c.l.b16 %v108
    %v167 = vunpack.c.h.b16 %v108
    %v168 = vunpack.c.l.b16 %v109
    %v169 = vunpack.c.h.b16 %v109
    %v170 = vunpack.c.l.b16 %v110
    %v171 = vunpack.c.h.b16 %v110
    %v172 = vunpack.c.l.b16 %v111
    %v173 = vunpack.c.h.b16 %v111
    %v174 = vunpack.c.l.b16 %v112
    %v175 = vunpack.c.h.b16 %v112
    %v176 = vunpack.c.l.b16 %v113
    %v177 = vunpack.c.h.b16 %v113
    %v178 = vunpack.c.l.b16 %v114
    %v179 = vunpack.c.h.b16 %v114
    %v180 = vunpack.c.l.b16 %v115
    %v181 = vunpack.c.h.b16 %v115
    %v182 = vpack.c.b16 %v170, %v166
    %v183 = vpack.c.b16 %v171, %v167
    %v184 = vpack.c.b16 %v172, %v168
    %v185 = vpack.c.b16 %v173, %v169
    %v186 = vpack.c.b16 %v178, %v174
    %v187 = vpack.c.b16 %v179, %v175
    %v188 = vpack.c.b16 %v180, %v176
    %v189 = vpack.c.b16 %v181, %v177
    %vm198 = vcmask 261120
    %v200 = vsel %vm198, %v154, 0
    %v203 = vsel %vm198, %v155, 0
    %v206 = vsel %vm198, %v156, 0
    %v209 = vsel %vm198, %v157, 0
    %211 = vmatprep.subr.bf16.mxu0 0
    %212 = vmatpush1.bf16.msra.mxu0 0
    %213 = vmatprep.subr.bf16.mxu0 0
    %214 = vmatpush1.bf16.msra.mxu0 0
    %215 = vmatprep.subr.bf16.mxu0 0
    %216 = vmatpush1.bf16.msra.mxu0 0
    %217 = vmatprep.subr.bf16.mxu0 0
    %218 = vmatpush1.bf16.msra.mxu0 0
    %219 = vmatprep.subr.bf16.mxu0 0
    %220 = vmatpush1.bf16.msra.mxu0 0
    %221 = vmatprep.subr.bf16.mxu0 0
    %222 = vmatpush1.bf16.msra.mxu0 0
    %223 = vmatprep.subr.bf16.mxu0 %v187
    %224 = vmatpush1.bf16.msra.mxu0 %v186
    %225 = vmatprep.subr.bf16.mxu0 %v183
    %226 = vmatpush1.bf16.msra.mxu0 %v182
    %227 = vmatprep.subr.bf16.mxu0 0
    %228 = vmatpush2.bf16.msra.mxu0 0
    %229 = vmatprep.subr.bf16.mxu0 0
    %230 = vmatpush2.bf16.msra.mxu0 0
    %231 = vmatprep.subr.bf16.mxu0 0
    %232 = vmatpush2.bf16.msra.mxu0 0
    %233 = vmatprep.subr.bf16.mxu0 0
    %234 = vmatpush2.bf16.msra.mxu0 0
    %235 = vmatprep.subr.bf16.mxu0 0
    %236 = vmatpush2.bf16.msra.mxu0 0
    %237 = vmatprep.subr.bf16.mxu0 0
    %238 = vmatpush2.bf16.msra.mxu0 0
    %239 = vmatprep.subr.bf16.mxu0 0
    %240 = vmatpush2.bf16.msra.mxu0 0
    %241 = vmatprep.subr.bf16.mxu0 0
    %242 = vmatpush2.bf16.msra.mxu0 0
    %243 = vmatprep.mubr.bf16.mxu0 0
    %244 = vmatmul.mubr.bf16.gmra.mxu0 %v200
    %v245 = vpop.f32.mrf.mxu0
    %v246 = vadd.f32 %v121, %v245
    %v247 = vpop.f32.mrf.mxu0
    %v248 = vadd.f32 %v125, %v247
    %v249 = vpop.f32.mrf.mxu0
    %v250 = vadd.f32 %v121, %v249
    %v251 = vpop.f32.mrf.mxu0
    %v252 = vadd.f32 %v125, %v251
    %253 = vmatprep.mubr.bf16.mxu0 0
    %254 = vmatmul.mubr.bf16.gmra.mxu0 %v203
    %v255 = vpop.f32.mrf.mxu0
    %v256 = vadd.f32 %v121, %v255
    %v257 = vpop.f32.mrf.mxu0
    %v258 = vadd.f32 %v125, %v257
    %v259 = vpop.f32.mrf.mxu0
    %v260 = vadd.f32 %v121, %v259
    %v261 = vpop.f32.mrf.mxu0
    %v262 = vadd.f32 %v125, %v261
    %263 = vmatprep.mubr.bf16.mxu0 0
    %264 = vmatmul.mubr.bf16.gmra.mxu0 %v206
    %v265 = vpop.f32.mrf.mxu0
    %v266 = vadd.f32 %v121, %v265
    %v267 = vpop.f32.mrf.mxu0
    %v268 = vadd.f32 %v125, %v267
    %v269 = vpop.f32.mrf.mxu0
    %v270 = vadd.f32 %v121, %v269
    %v271 = vpop.f32.mrf.mxu0
    %v272 = vadd.f32 %v125, %v271
    %273 = vmatprep.mubr.bf16.mxu0 0
    %274 = vmatmul.mubr.bf16.gmra.mxu0 %v209
    %v275 = vpop.f32.mrf.mxu0
    %v276 = vadd.f32 %v121, %v275
    %v277 = vpop.f32.mrf.mxu0
    %v278 = vadd.f32 %v125, %v277
    %v279 = vpop.f32.mrf.mxu0
    %v280 = vadd.f32 %v121, %v279
    %v281 = vpop.f32.mrf.mxu0
    %v282 = vadd.f32 %v125, %v281
    %283 = vdwg.mxu0
    %284 = vmatprep.subr.bf16.mxu0 0
    %285 = vmatpush1.bf16.msra.mxu0 0
    %286 = vmatprep.subr.bf16.mxu0 0
    %287 = vmatpush1.bf16.msra.mxu0 0
    %288 = vmatprep.subr.bf16.mxu0 0
    %289 = vmatpush1.bf16.msra.mxu0 0
    %290 = vmatprep.subr.bf16.mxu0 0
    %291 = vmatpush1.bf16.msra.mxu0 0
    %292 = vmatprep.subr.bf16.mxu0 0
    %293 = vmatpush1.bf16.msra.mxu0 0
    %294 = vmatprep.subr.bf16.mxu0 0
    %295 = vmatpush1.bf16.msra.mxu0 0
    %296 = vmatprep.subr.bf16.mxu0 %v189
    %297 = vmatpush1.bf16.msra.mxu0 %v188
    %298 = vmatprep.subr.bf16.mxu0 %v185
    %299 = vmatpush1.bf16.msra.mxu0 %v184
    %300 = vmatprep.subr.bf16.mxu0 0
    %301 = vmatpush2.bf16.msra.mxu0 0
    %302 = vmatprep.subr.bf16.mxu0 0
    %303 = vmatpush2.bf16.msra.mxu0 0
    %304 = vmatprep.subr.bf16.mxu0 0
    %305 = vmatpush2.bf16.msra.mxu0 0
    %306 = vmatprep.subr.bf16.mxu0 0
    %307 = vmatpush2.bf16.msra.mxu0 0
    %308 = vmatprep.subr.bf16.mxu0 0
    %309 = vmatpush2.bf16.msra.mxu0 0
    %310 = vmatprep.subr.bf16.mxu0 0
    %311 = vmatpush2.bf16.msra.mxu0 0
    %312 = vmatprep.subr.bf16.mxu0 0
    %313 = vmatpush2.bf16.msra.mxu0 0
    %314 = vmatprep.subr.bf16.mxu0 0
    %315 = vmatpush2.bf16.msra.mxu0 0
    %316 = vmatprep.mubr.bf16.mxu0 0
    %317 = vmatmul.mubr.bf16.gmra.mxu0 %v200
    %v318 = vpop.f32.mrf.mxu0
    %v319 = vadd.f32 %v129, %v318
    %v320 = vpop.f32.mrf.mxu0
    %v321 = vadd.f32 %v133, %v320
    %v322 = vpop.f32.mrf.mxu0
    %v323 = vadd.f32 %v129, %v322
    %v324 = vpop.f32.mrf.mxu0
    %v325 = vadd.f32 %v133, %v324
    %326 = vmatprep.mubr.bf16.mxu0 0
    %327 = vmatmul.mubr.bf16.gmra.mxu0 %v203
    %v328 = vpop.f32.mrf.mxu0
    %v329 = vadd.f32 %v129, %v328
    %v330 = vpop.f32.mrf.mxu0
    %v331 = vadd.f32 %v133, %v330
    %v332 = vpop.f32.mrf.mxu0
    %v333 = vadd.f32 %v129, %v332
    %v334 = vpop.f32.mrf.mxu0
    %v335 = vadd.f32 %v133, %v334
    %336 = vmatprep.mubr.bf16.mxu0 0
    %337 = vmatmul.mubr.bf16.gmra.mxu0 %v206
    %v338 = vpop.f32.mrf.mxu0
    %v339 = vadd.f32 %v129, %v338
    %v340 = vpop.f32.mrf.mxu0
    %v341 = vadd.f32 %v133, %v340
    %v342 = vpop.f32.mrf.mxu0
    %v343 = vadd.f32 %v129, %v342
    %v344 = vpop.f32.mrf.mxu0
    %v345 = vadd.f32 %v133, %v344
    %346 = vmatprep.mubr.bf16.mxu0 0
    %347 = vmatmul.mubr.bf16.gmra.mxu0 %v209
    %v348 = vpop.f32.mrf.mxu0
    %v349 = vadd.f32 %v129, %v348
    %v350 = vpop.f32.mrf.mxu0
    %v351 = vadd.f32 %v133, %v350
    %v352 = vpop.f32.mrf.mxu0
    %v353 = vadd.f32 %v129, %v352
    %v354 = vpop.f32.mrf.mxu0
    %v355 = vadd.f32 %v133, %v354
    %356 = vdwg.mxu0
    %357 = vst [vmem:[#allocation3] sm:$0xff] %v246
    %358 = vst [vmem:[#allocation3 + $0x8] sm:$0xff] %v248
    %359 = vst [vmem:[#allocation3 + $0x10] sm:$0xff] %v319
    %360 = vst [vmem:[#allocation3 + $0x18] sm:$0xff] %v321
    %361 = vst [vmem:[#allocation3 + $0x20] sm:$0xff] %v250
    %362 = vst [vmem:[#allocation3 + $0x28] sm:$0xff] %v252
    %363 = vst [vmem:[#allocation3 + $0x30] sm:$0xff] %v323
    %364 = vst [vmem:[#allocation3 + $0x38] sm:$0xff] %v325
    %365 = vst [vmem:[#allocation3 + $0x40] sm:$0xff] %v256
    %366 = vst [vmem:[#allocation3 + $0x48] sm:$0xff] %v258
    %367 = vst [vmem:[#allocation3 + $0x50] sm:$0xff] %v329
    %368 = vst [vmem:[#allocation3 + $0x58] sm:$0xff] %v331
    %369 = vst [vmem:[#allocation3 + $0x60] sm:$0xff] %v260
    %370 = vst [vmem:[#allocation3 + $0x68] sm:$0xff] %v262
    %371 = vst [vmem:[#allocation3 + $0x70] sm:$0xff] %v333
    %372 = vst [vmem:[#allocation3 + $0x78] sm:$0xff] %v335
    %373 = vst [vmem:[#allocation3 + $0x80] sm:$0xff] %v266
    %374 = vst [vmem:[#allocation3 + $0x88] sm:$0xff] %v268
    %375 = vst [vmem:[#allocation3 + $0x90] sm:$0xff] %v339
    %376 = vst [vmem:[#allocation3 + $0x98] sm:$0xff] %v341
    %377 = vst [vmem:[#allocation3 + $0xa0] sm:$0xff] %v270
    %378 = vst [vmem:[#allocation3 + $0xa8] sm:$0xff] %v272
    %379 = vst [vmem:[#allocation3 + $0xb0] sm:$0xff] %v343
    %380 = vst [vmem:[#allocation3 + $0xb8] sm:$0xff] %v345
    %381 = vst [vmem:[#allocation3 + $0xc0] sm:$0xff] %v276
    %382 = vst [vmem:[#allocation3 + $0xc8] sm:$0xff] %v278
    %383 = vst [vmem:[#allocation3 + $0xd0] sm:$0xff] %v349
    %384 = vst [vmem:[#allocation3 + $0xd8] sm:$0xff] %v351
    %385 = vst [vmem:[#allocation3 + $0xe0] sm:$0xff] %v280
    %386 = vst [vmem:[#allocation3 + $0xe8] sm:$0xff] %v282
    %387 = vst [vmem:[#allocation3 + $0xf0] sm:$0xff] %v353
    %388 = vst [vmem:[#allocation3 + $0xf8] sm:$0xff] %v355
    %389 = vst [vmem:[#allocation4] sm:$0xff] 0.0
    %390 = vst [vmem:[#allocation5] sm:$0xff] 0.0
    loop: start=0, step=1, limit=8
    $region50: #{tpu_custom_call.1} parent=1 // loop_pre_header
      _
    $region51: #{tpu_custom_call.1} parent=1 // loop_header
      %s392 = sphi 0, %s396
      %p393 = scmp.ge.s32.totalorder %s392, 8
    $region52: #{tpu_custom_call.1} parent=1 // loop_header_branch
      %395 = sbr.rel (%p393) target = $region56
    $region53: #{tpu_custom_call.1} parent=1 // loop_body
      %s397 = smul.u32 %s392, 4
      %s398 = smul.addr %s397, 8
      %s399 = scalar_lea.vmem [#allocation3], %s398
      %v400 = vld [vmem:[%s399] sm:$0xff]
      %v401 = vld [vmem:[%s399 + $0x8] sm:$0xff]
      %v402 = vld [vmem:[%s399 + $0x10] sm:$0xff]
      %v403 = vld [vmem:[%s399 + $0x18] sm:$0xff]
      %v404 = vld [vmem:[#allocation4] sm:$0xff]
      %v405 = vpack.c.bf16 %v404, %v404
      %v406 = vld [vmem:[#allocation11] sm:$0xff]
      %v407 = vld [vmem:[#allocation11 + $0x8] sm:$0xff]
      %v408 = vld [vmem:[#allocation11 + $0x10] sm:$0xff]
      %v409 = vld [vmem:[#allocation11 + $0x18] sm:$0xff]
      %v410 = vld [vmem:[#allocation11 + $0x20] sm:$0xff]
      %v411 = vld [vmem:[#allocation11 + $0x28] sm:$0xff]
      %v412 = vld [vmem:[#allocation11 + $0x30] sm:$0xff]
      %v413 = vld [vmem:[#allocation11 + $0x38] sm:$0xff]
      %v414 = vld [vmem:[#allocation11 + $0x40] sm:$0xff]
      %v415 = vld [vmem:[#allocation11 + $0x48] sm:$0xff]
      %v416 = vld [vmem:[#allocation11 + $0x50] sm:$0xff]
      %v417 = vld [vmem:[#allocation11 + $0x58] sm:$0xff]
      %v418 = vld [vmem:[#allocation11 + $0x60] sm:$0xff]
      %v419 = vld [vmem:[#allocation11 + $0x68] sm:$0xff]
      %v420 = vld [vmem:[#allocation11 + $0x70] sm:$0xff]
      %v421 = vld [vmem:[#allocation11 + $0x78] sm:$0xff]
      %v422 = vld [vmem:[#allocation11 + $0x80] sm:$0xff]
      %v423 = vld [vmem:[#allocation11 + $0x88] sm:$0xff]
      %v424 = vld [vmem:[#allocation11 + $0x90] sm:$0xff]
      %v425 = vld [vmem:[#allocation11 + $0x98] sm:$0xff]
      %v426 = vld [vmem:[#allocation11 + $0xa0] sm:$0xff]
      %v427 = vld [vmem:[#allocation11 + $0xa8] sm:$0xff]
      %v428 = vld [vmem:[#allocation11 + $0xb0] sm:$0xff]
      %v429 = vld [vmem:[#allocation11 + $0xb8] sm:$0xff]
      %v430 = vld [vmem:[#allocation11 + $0xc0] sm:$0xff]
      %v431 = vld [vmem:[#allocation11 + $0xc8] sm:$0xff]
      %v432 = vld [vmem:[#allocation11 + $0xd0] sm:$0xff]
      %v433 = vld [vmem:[#allocation11 + $0xd8] sm:$0xff]
      %v434 = vld [vmem:[#allocation11 + $0xe0] sm:$0xff]
      %v435 = vld [vmem:[#allocation11 + $0xe8] sm:$0xff]
      %v436 = vld [vmem:[#allocation11 + $0xf0] sm:$0xff]
      %v437 = vld [vmem:[#allocation11 + $0xf8] sm:$0xff]
      %v470 = vunpack.c.l.b16 %v406
      %v471 = vunpack.c.h.b16 %v406
      %v472 = vunpack.c.l.b16 %v407
      %v473 = vunpack.c.h.b16 %v407
      %v474 = vunpack.c.l.b16 %v408
      %v475 = vunpack.c.h.b16 %v408
      %v476 = vunpack.c.l.b16 %v409
      %v477 = vunpack.c.h.b16 %v409
      %v478 = vunpack.c.l.b16 %v410
      %v479 = vunpack.c.h.b16 %v410
      %v480 = vunpack.c.l.b16 %v411
      %v481 = vunpack.c.h.b16 %v411
      %v482 = vunpack.c.l.b16 %v412
      %v483 = vunpack.c.h.b16 %v412
      %v484 = vunpack.c.l.b16 %v413
      %v485 = vunpack.c.h.b16 %v413
      %v486 = vunpack.c.l.b16 %v414
      %v487 = vunpack.c.h.b16 %v414
      %v488 = vunpack.c.l.b16 %v415
      %v489 = vunpack.c.h.b16 %v415
      %v490 = vunpack.c.l.b16 %v416
      %v491 = vunpack.c.h.b16 %v416
      %v492 = vunpack.c.l.b16 %v417
      %v493 = vunpack.c.h.b16 %v417
      %v494 = vunpack.c.l.b16 %v418
      %v495 = vunpack.c.h.b16 %v418
      %v496 = vunpack.c.l.b16 %v419
      %v497 = vunpack.c.h.b16 %v419
      %v498 = vunpack.c.l.b16 %v420
      %v499 = vunpack.c.h.b16 %v420
      %v500 = vunpack.c.l.b16 %v421
      %v501 = vunpack.c.h.b16 %v421
      %v502 = vunpack.c.l.b16 %v422
      %v503 = vunpack.c.h.b16 %v422
      %v504 = vunpack.c.l.b16 %v423
      %v505 = vunpack.c.h.b16 %v423
      %v506 = vunpack.c.l.b16 %v424
      %v507 = vunpack.c.h.b16 %v424
      %v508 = vunpack.c.l.b16 %v425
      %v509 = vunpack.c.h.b16 %v425
      %v510 = vunpack.c.l.b16 %v426
      %v511 = vunpack.c.h.b16 %v426
      %v512 = vunpack.c.l.b16 %v427
      %v513 = vunpack.c.h.b16 %v427
      %v514 = vunpack.c.l.b16 %v428
      %v515 = vunpack.c.h.b16 %v428
      %v516 = vunpack.c.l.b16 %v429
      %v517 = vunpack.c.h.b16 %v429
      %v518 = vunpack.c.l.b16 %v430
      %v519 = vunpack.c.h.b16 %v430
      %v520 = vunpack.c.l.b16 %v431
      %v521 = vunpack.c.h.b16 %v431
      %v522 = vunpack.c.l.b16 %v432
      %v523 = vunpack.c.h.b16 %v432
      %v524 = vunpack.c.l.b16 %v433
      %v525 = vunpack.c.h.b16 %v433
      %v526 = vunpack.c.l.b16 %v434
      %v527 = vunpack.c.h.b16 %v434
      %v528 = vunpack.c.l.b16 %v435
      %v529 = vunpack.c.h.b16 %v435
      %v530 = vunpack.c.l.b16 %v436
      %v531 = vunpack.c.h.b16 %v436
      %v532 = vunpack.c.l.b16 %v437
      %v533 = vunpack.c.h.b16 %v437
      %v534 = vpack.c.b16 %v474, %v470
      %v535 = vpack.c.b16 %v475, %v471
      %v536 = vpack.c.b16 %v476, %v472
      %v537 = vpack.c.b16 %v477, %v473
      %v538 = vpack.c.b16 %v482, %v478
      %v539 = vpack.c.b16 %v483, %v479
      %v540 = vpack.c.b16 %v484, %v480
      %v541 = vpack.c.b16 %v485, %v481
      %v542 = vpack.c.b16 %v490, %v486
      %v543 = vpack.c.b16 %v491, %v487
      %v544 = vpack.c.b16 %v492, %v488
      %v545 = vpack.c.b16 %v493, %v489
      %v546 = vpack.c.b16 %v498, %v494
      %v547 = vpack.c.b16 %v499, %v495
      %v548 = vpack.c.b16 %v500, %v496
      %v549 = vpack.c.b16 %v501, %v497
      %v550 = vpack.c.b16 %v506, %v502
      %v551 = vpack.c.b16 %v507, %v503
      %v552 = vpack.c.b16 %v508, %v504
      %v553 = vpack.c.b16 %v509, %v505
      %v554 = vpack.c.b16 %v514, %v510
      %v555 = vpack.c.b16 %v515, %v511
      %v556 = vpack.c.b16 %v516, %v512
      %v557 = vpack.c.b16 %v517, %v513
      %v558 = vpack.c.b16 %v522, %v518
      %v559 = vpack.c.b16 %v523, %v519
      %v560 = vpack.c.b16 %v524, %v520
      %v561 = vpack.c.b16 %v525, %v521
      %v562 = vpack.c.b16 %v530, %v526
      %v563 = vpack.c.b16 %v531, %v527
      %v564 = vpack.c.b16 %v532, %v528
      %v565 = vpack.c.b16 %v533, %v529
      %598 = vmatprep.subr.bf16.mxu0 %v563
      %599 = vmatpush1.bf16.msra.mxu0 %v562
      %600 = vmatprep.subr.bf16.mxu0 %v559
      %601 = vmatpush1.bf16.msra.mxu0 %v558
      %602 = vmatprep.subr.bf16.mxu0 %v555
      %603 = vmatpush1.bf16.msra.mxu0 %v554
      %604 = vmatprep.subr.bf16.mxu0 %v551
      %605 = vmatpush1.bf16.msra.mxu0 %v550
      %606 = vmatprep.subr.bf16.mxu0 %v547
      %607 = vmatpush1.bf16.msra.mxu0 %v546
      %608 = vmatprep.subr.bf16.mxu0 %v543
      %609 = vmatpush1.bf16.msra.mxu0 %v542
      %610 = vmatprep.subr.bf16.mxu0 %v539
      %611 = vmatpush1.bf16.msra.mxu0 %v538
      %612 = vmatprep.subr.bf16.mxu0 %v535
      %613 = vmatpush1.bf16.msra.mxu0 %v534
      %614 = vmatprep.subr.bf16.mxu0 0
      %615 = vmatpush2.bf16.msra.mxu0 0
      %616 = vmatprep.subr.bf16.mxu0 0
      %617 = vmatpush2.bf16.msra.mxu0 0
      %618 = vmatprep.subr.bf16.mxu0 0
      %619 = vmatpush2.bf16.msra.mxu0 0
      %620 = vmatprep.subr.bf16.mxu0 0
      %621 = vmatpush2.bf16.msra.mxu0 0
      %622 = vmatprep.subr.bf16.mxu0 0
      %623 = vmatpush2.bf16.msra.mxu0 0
      %624 = vmatprep.subr.bf16.mxu0 0
      %625 = vmatpush2.bf16.msra.mxu0 0
      %626 = vmatprep.subr.bf16.mxu0 0
      %627 = vmatpush2.bf16.msra.mxu0 0
      %628 = vmatprep.subr.bf16.mxu0 0
      %629 = vmatpush2.bf16.msra.mxu0 0
      %630 = vmatprep.mubr.bf16.mxu0 0
      %631 = vmatmul.mubr.bf16.gmra.mxu0 %v405
      %v632 = vpop.f32.mrf.mxu0
      %v633 = vadd.f32 0.0, %v632
      %v634 = vpop.f32.mrf.mxu0
      %v635 = vadd.f32 0.0, %v634
      %v636 = vpop.f32.mrf.mxu0
      %v637 = vpop.f32.mrf.mxu0
      %638 = vdwg.mxu0
      %639 = vmatprep.subr.bf16.mxu0 %v565
      %640 = vmatpush1.bf16.msra.mxu0 %v564
      %641 = vmatprep.subr.bf16.mxu0 %v561
      %642 = vmatpush1.bf16.msra.mxu0 %v560
      %643 = vmatprep.subr.bf16.mxu0 %v557
      %644 = vmatpush1.bf16.msra.mxu0 %v556
      %645 = vmatprep.subr.bf16.mxu0 %v553
      %646 = vmatpush1.bf16.msra.mxu0 %v552
      %647 = vmatprep.subr.bf16.mxu0 %v549
      %648 = vmatpush1.bf16.msra.mxu0 %v548
      %649 = vmatprep.subr.bf16.mxu0 %v545
      %650 = vmatpush1.bf16.msra.mxu0 %v544
      %651 = vmatprep.subr.bf16.mxu0 %v541
      %652 = vmatpush1.bf16.msra.mxu0 %v540
      %653 = vmatprep.subr.bf16.mxu0 %v537
      %654 = vmatpush1.bf16.msra.mxu0 %v536
      %655 = vmatprep.subr.bf16.mxu0 0
      %656 = vmatpush2.bf16.msra.mxu0 0
      %657 = vmatprep.subr.bf16.mxu0 0
      %658 = vmatpush2.bf16.msra.mxu0 0
      %659 = vmatprep.subr.bf16.mxu0 0
      %660 = vmatpush2.bf16.msra.mxu0 0
      %661 = vmatprep.subr.bf16.mxu0 0
      %662 = vmatpush2.bf16.msra.mxu0 0
      %663 = vmatprep.subr.bf16.mxu0 0
      %664 = vmatpush2.bf16.msra.mxu0 0
      %665 = vmatprep.subr.bf16.mxu0 0
      %666 = vmatpush2.bf16.msra.mxu0 0
      %667 = vmatprep.subr.bf16.mxu0 0
      %668 = vmatpush2.bf16.msra.mxu0 0
      %669 = vmatprep.subr.bf16.mxu0 0
      %670 = vmatpush2.bf16.msra.mxu0 0
      %671 = vmatprep.mubr.bf16.mxu0 0
      %672 = vmatmul.mubr.bf16.gmra.mxu0 %v405
      %v673 = vpop.f32.mrf.mxu0
      %v674 = vadd.f32 0.0, %v673
      %v675 = vpop.f32.mrf.mxu0
      %v676 = vadd.f32 0.0, %v675
      %v677 = vpop.f32.mrf.mxu0
      %v678 = vpop.f32.mrf.mxu0
      %679 = vdwg.mxu0
      %v680 = vadd.f32 %v400, %v633
      %v681 = vadd.f32 %v401, %v635
      %v682 = vadd.f32 %v402, %v674
      %v683 = vadd.f32 %v403, %v676
      %v684 = vmul.f32 %v680, 0.5
      %v685 = vtanh.pop %v684
      %v686 = vadd.f32 %v685, 1.0
      %v687 = vmul.f32 %v686, 0.5
      %v688 = vmul.f32 %v681, 0.5
      %v689 = vtanh.pop %v688
      %v690 = vadd.f32 %v689, 1.0
      %v691 = vmul.f32 %v690, 0.5
      %v692 = vtanh.pop %v682
      %v693 = vmul.f32 %v683, 0.5
      %v694 = vtanh.pop %v693
      %v695 = vadd.f32 %v694, 1.0
      %v696 = vmul.f32 %v695, 0.5
      %v697 = vld [vmem:[#allocation5] sm:$0xff]
      %v698 = vmul.f32 %v691, %v697
      %v699 = vmul.f32 %v687, %v692
      %v700 = vadd.f32 %v698, %v699
      %v701 = vtanh.pop %v700
      %v702 = vmul.f32 %v696, %v701
      %703 = vst [vmem:[#allocation5] sm:$0xff] %v700
      %704 = vst [vmem:[#allocation4] sm:$0xff] %v702
      %v705 = vpack.c.bf16 %v702, %v702
      %s706 = smul.addr %s392, 4
      %s707 = scalar_lea.vmem [#allocation2], %s706
      %708 = vst [vmem:[%s707] sm:$0xf] %v705
    $region54: #{tpu_custom_call.1} parent=1 // loop_footer
      %s396 = sadd.s32 1, %s392
    $region55: #{tpu_custom_call.1} parent=1 // loop_footer_branch
      %391 = sbr.rel target = $region51
    $region56: #{tpu_custom_call.1} parent=1 // loop_exit
      _
    %v709 = vld [vmem:[#allocation4] sm:$0xff]
    %710 = vst [vmem:[#allocation16] sm:$0xff] %v709
    %v711 = vld [vmem:[#allocation5] sm:$0xff]
    %712 = vst [vmem:[#allocation18] sm:$0xff] %v711
    %v713 = vld [vmem:[#allocation2] sm:$0xf]
    %v714 = vld [vmem:[#allocation2 + $0x4] sm:$0xf]
    %v715 = vld [vmem:[#allocation2 + $0x8] sm:$0xf]
    %v716 = vld [vmem:[#allocation2 + $0xc] sm:$0xf]
    %v717 = vld [vmem:[#allocation2 + $0x10] sm:$0xf]
    %v718 = vld [vmem:[#allocation2 + $0x14] sm:$0xf]
    %v719 = vld [vmem:[#allocation2 + $0x18] sm:$0xf]
    %v720 = vld [vmem:[#allocation2 + $0x1c] sm:$0xf]
    %v721 = vld [vmem:[#allocation12] sm:$0xff]
    %v722 = vld [vmem:[#allocation12 + $0x8] sm:$0xff]
    %v723 = vld [vmem:[#allocation12 + $0x10] sm:$0xff]
    %v724 = vld [vmem:[#allocation12 + $0x18] sm:$0xff]
    %v725 = vld [vmem:[#allocation12 + $0x20] sm:$0xff]
    %v726 = vld [vmem:[#allocation12 + $0x28] sm:$0xff]
    %v727 = vld [vmem:[#allocation12 + $0x30] sm:$0xff]
    %v728 = vld [vmem:[#allocation12 + $0x38] sm:$0xff]
    %v729 = vld [vmem:[#allocation12 + $0x40] sm:$0xff]
    %v730 = vld [vmem:[#allocation12 + $0x48] sm:$0xff]
    %v731 = vld [vmem:[#allocation12 + $0x50] sm:$0xff]
    %v732 = vld [vmem:[#allocation12 + $0x58] sm:$0xff]
    %v733 = vld [vmem:[#allocation12 + $0x60] sm:$0xff]
    %v734 = vld [vmem:[#allocation12 + $0x68] sm:$0xff]
    %v735 = vld [vmem:[#allocation12 + $0x70] sm:$0xff]
    %v736 = vld [vmem:[#allocation12 + $0x78] sm:$0xff]
    %v737 = vld [vmem:[#allocation12 + $0x80] sm:$0xff]
    %v738 = vld [vmem:[#allocation12 + $0x88] sm:$0xff]
    %v739 = vld [vmem:[#allocation12 + $0x90] sm:$0xff]
    %v740 = vld [vmem:[#allocation12 + $0x98] sm:$0xff]
    %v741 = vld [vmem:[#allocation12 + $0xa0] sm:$0xff]
    %v742 = vld [vmem:[#allocation12 + $0xa8] sm:$0xff]
    %v743 = vld [vmem:[#allocation12 + $0xb0] sm:$0xff]
    %v744 = vld [vmem:[#allocation12 + $0xb8] sm:$0xff]
    %v745 = vld [vmem:[#allocation12 + $0xc0] sm:$0xff]
    %v746 = vld [vmem:[#allocation12 + $0xc8] sm:$0xff]
    %v747 = vld [vmem:[#allocation12 + $0xd0] sm:$0xff]
    %v748 = vld [vmem:[#allocation12 + $0xd8] sm:$0xff]
    %v749 = vld [vmem:[#allocation12 + $0xe0] sm:$0xff]
    %v750 = vld [vmem:[#allocation12 + $0xe8] sm:$0xff]
    %v751 = vld [vmem:[#allocation12 + $0xf0] sm:$0xff]
    %v752 = vld [vmem:[#allocation12 + $0xf8] sm:$0xff]
    %v753 = vld [vmem:[%s6] sm:$0xf]
    %v755 = vlaneseq
    %v756 = vshrl.u32 %v755, 7
    %v757 = vsub.s32 0, %v756
    %v758 = vrot.slane %v753, %v757
    %v759 = vlaneseq
    %v760 = vshrl.u32 %v759, 7
    %v761 = vsub.s32 1, %v760
    %v762 = vrot.slane %v753, %v761
    %v763 = vlaneseq
    %v764 = vshrl.u32 %v763, 7
    %v765 = vsub.s32 2, %v764
    %v766 = vrot.slane %v753, %v765
    %v767 = vlaneseq
    %v768 = vshrl.u32 %v767, 7
    %v769 = vsub.s32 3, %v768
    %v770 = vrot.slane %v753, %v769
    %v783 = vunpack.c.l.b16 %v713
    %v784 = vunpack.c.l.b16 %v714
    %v785 = vunpack.c.l.b16 %v715
    %v786 = vunpack.c.l.b16 %v716
    %v787 = vunpack.c.l.b16 %v717
    %v788 = vunpack.c.l.b16 %v718
    %v789 = vunpack.c.l.b16 %v719
    %v790 = vunpack.c.l.b16 %v720
    %v791 = vpack.c.b16 %v784, %v783
    %v792 = vpack.c.b16 %v786, %v785
    %v793 = vpack.c.b16 %v788, %v787
    %v794 = vpack.c.b16 %v790, %v789
    %v831 = vunpack.c.l.b16 %v721
    %v832 = vunpack.c.h.b16 %v721
    %v833 = vunpack.c.l.b16 %v722
    %v834 = vunpack.c.h.b16 %v722
    %v835 = vunpack.c.l.b16 %v723
    %v836 = vunpack.c.h.b16 %v723
    %v837 = vunpack.c.l.b16 %v724
    %v838 = vunpack.c.h.b16 %v724
    %v839 = vunpack.c.l.b16 %v725
    %v840 = vunpack.c.h.b16 %v725
    %v841 = vunpack.c.l.b16 %v726
    %v842 = vunpack.c.h.b16 %v726
    %v843 = vunpack.c.l.b16 %v727
    %v844 = vunpack.c.h.b16 %v727
    %v845 = vunpack.c.l.b16 %v728
    %v846 = vunpack.c.h.b16 %v728
    %v847 = vunpack.c.l.b16 %v729
    %v848 = vunpack.c.h.b16 %v729
    %v849 = vunpack.c.l.b16 %v730
    %v850 = vunpack.c.h.b16 %v730
    %v851 = vunpack.c.l.b16 %v731
    %v852 = vunpack.c.h.b16 %v731
    %v853 = vunpack.c.l.b16 %v732
    %v854 = vunpack.c.h.b16 %v732
    %v855 = vunpack.c.l.b16 %v733
    %v856 = vunpack.c.h.b16 %v733
    %v857 = vunpack.c.l.b16 %v734
    %v858 = vunpack.c.h.b16 %v734
    %v859 = vunpack.c.l.b16 %v735
    %v860 = vunpack.c.h.b16 %v735
    %v861 = vunpack.c.l.b16 %v736
    %v862 = vunpack.c.h.b16 %v736
    %v863 = vunpack.c.l.b16 %v737
    %v864 = vunpack.c.h.b16 %v737
    %v865 = vunpack.c.l.b16 %v738
    %v866 = vunpack.c.h.b16 %v738
    %v867 = vunpack.c.l.b16 %v739
    %v868 = vunpack.c.h.b16 %v739
    %v869 = vunpack.c.l.b16 %v740
    %v870 = vunpack.c.h.b16 %v740
    %v871 = vunpack.c.l.b16 %v741
    %v872 = vunpack.c.h.b16 %v741
    %v873 = vunpack.c.l.b16 %v742
    %v874 = vunpack.c.h.b16 %v742
    %v875 = vunpack.c.l.b16 %v743
    %v876 = vunpack.c.h.b16 %v743
    %v877 = vunpack.c.l.b16 %v744
    %v878 = vunpack.c.h.b16 %v744
    %v879 = vunpack.c.l.b16 %v745
    %v880 = vunpack.c.h.b16 %v745
    %v881 = vunpack.c.l.b16 %v746
    %v882 = vunpack.c.h.b16 %v746
    %v883 = vunpack.c.l.b16 %v747
    %v884 = vunpack.c.h.b16 %v747
    %v885 = vunpack.c.l.b16 %v748
    %v886 = vunpack.c.h.b16 %v748
    %v887 = vunpack.c.l.b16 %v749
    %v888 = vunpack.c.h.b16 %v749
    %v889 = vunpack.c.l.b16 %v750
    %v890 = vunpack.c.h.b16 %v750
    %v891 = vunpack.c.l.b16 %v751
    %v892 = vunpack.c.h.b16 %v751
    %v893 = vunpack.c.l.b16 %v752
    %v894 = vunpack.c.h.b16 %v752
    %v895 = vpack.c.b16 %v835, %v831
    %v896 = vpack.c.b16 %v836, %v832
    %v897 = vpack.c.b16 %v837, %v833
    %v898 = vpack.c.b16 %v838, %v834
    %v899 = vpack.c.b16 %v843, %v839
    %v900 = vpack.c.b16 %v844, %v840
    %v901 = vpack.c.b16 %v845, %v841
    %v902 = vpack.c.b16 %v846, %v842
    %v903 = vpack.c.b16 %v851, %v847
    %v904 = vpack.c.b16 %v852, %v848
    %v905 = vpack.c.b16 %v853, %v849
    %v906 = vpack.c.b16 %v854, %v850
    %v907 = vpack.c.b16 %v859, %v855
    %v908 = vpack.c.b16 %v860, %v856
    %v909 = vpack.c.b16 %v861, %v857
    %v910 = vpack.c.b16 %v862, %v858
    %v911 = vpack.c.b16 %v867, %v863
    %v912 = vpack.c.b16 %v868, %v864
    %v913 = vpack.c.b16 %v869, %v865
    %v914 = vpack.c.b16 %v870, %v866
    %v915 = vpack.c.b16 %v875, %v871
    %v916 = vpack.c.b16 %v876, %v872
    %v917 = vpack.c.b16 %v877, %v873
    %v918 = vpack.c.b16 %v878, %v874
    %v919 = vpack.c.b16 %v883, %v879
    %v920 = vpack.c.b16 %v884, %v880
    %v921 = vpack.c.b16 %v885, %v881
    %v922 = vpack.c.b16 %v886, %v882
    %v923 = vpack.c.b16 %v891, %v887
    %v924 = vpack.c.b16 %v892, %v888
    %v925 = vpack.c.b16 %v893, %v889
    %v926 = vpack.c.b16 %v894, %v890
    %959 = vmatprep.subr.bf16.mxu0 %v924
    %960 = vmatpush1.bf16.msra.mxu0 %v923
    %961 = vmatprep.subr.bf16.mxu0 %v920
    %962 = vmatpush1.bf16.msra.mxu0 %v919
    %963 = vmatprep.subr.bf16.mxu0 %v916
    %964 = vmatpush1.bf16.msra.mxu0 %v915
    %965 = vmatprep.subr.bf16.mxu0 %v912
    %966 = vmatpush1.bf16.msra.mxu0 %v911
    %967 = vmatprep.subr.bf16.mxu0 %v908
    %968 = vmatpush1.bf16.msra.mxu0 %v907
    %969 = vmatprep.subr.bf16.mxu0 %v904
    %970 = vmatpush1.bf16.msra.mxu0 %v903
    %971 = vmatprep.subr.bf16.mxu0 %v900
    %972 = vmatpush1.bf16.msra.mxu0 %v899
    %973 = vmatprep.subr.bf16.mxu0 %v896
    %974 = vmatpush1.bf16.msra.mxu0 %v895
    %975 = vmatprep.subr.bf16.mxu0 0
    %976 = vmatpush2.bf16.msra.mxu0 0
    %977 = vmatprep.subr.bf16.mxu0 0
    %978 = vmatpush2.bf16.msra.mxu0 0
    %979 = vmatprep.subr.bf16.mxu0 0
    %980 = vmatpush2.bf16.msra.mxu0 0
    %981 = vmatprep.subr.bf16.mxu0 0
    %982 = vmatpush2.bf16.msra.mxu0 0
    %983 = vmatprep.subr.bf16.mxu0 0
    %984 = vmatpush2.bf16.msra.mxu0 0
    %985 = vmatprep.subr.bf16.mxu0 0
    %986 = vmatpush2.bf16.msra.mxu0 0
    %987 = vmatprep.subr.bf16.mxu0 0
    %988 = vmatpush2.bf16.msra.mxu0 0
    %989 = vmatprep.subr.bf16.mxu0 0
    %990 = vmatpush2.bf16.msra.mxu0 0
    %991 = vmatprep.mubr.bf16.mxu0 0
    %992 = vmatmul.mubr.bf16.gmra.mxu0 %v791
    %v993 = vpop.f32.mrf.mxu0
    %v994 = vadd.f32 %v758, %v993
    %v995 = vpop.f32.mrf.mxu0
    %v996 = vadd.f32 %v762, %v995
    %v997 = vpop.f32.mrf.mxu0
    %v998 = vadd.f32 %v758, %v997
    %v999 = vpop.f32.mrf.mxu0
    %v1000 = vadd.f32 %v762, %v999
    %1001 = vmatprep.mubr.bf16.mxu0 0
    %1002 = vmatmul.mubr.bf16.gmra.mxu0 %v792
    %v1003 = vpop.f32.mrf.mxu0
    %v1004 = vadd.f32 %v758, %v1003
    %v1005 = vpop.f32.mrf.mxu0
    %v1006 = vadd.f32 %v762, %v1005
    %v1007 = vpop.f32.mrf.mxu0
    %v1008 = vadd.f32 %v758, %v1007
    %v1009 = vpop.f32.mrf.mxu0
    %v1010 = vadd.f32 %v762, %v1009
    %1011 = vmatprep.mubr.bf16.mxu0 0
    %1012 = vmatmul.mubr.bf16.gmra.mxu0 %v793
    %v1013 = vpop.f32.mrf.mxu0
    %v1014 = vadd.f32 %v758, %v1013
    %v1015 = vpop.f32.mrf.mxu0
    %v1016 = vadd.f32 %v762, %v1015
    %v1017 = vpop.f32.mrf.mxu0
    %v1018 = vadd.f32 %v758, %v1017
    %v1019 = vpop.f32.mrf.mxu0
    %v1020 = vadd.f32 %v762, %v1019
    %1021 = vmatprep.mubr.bf16.mxu0 0
    %1022 = vmatmul.mubr.bf16.gmra.mxu0 %v794
    %v1023 = vpop.f32.mrf.mxu0
    %v1024 = vadd.f32 %v758, %v1023
    %v1025 = vpop.f32.mrf.mxu0
    %v1026 = vadd.f32 %v762, %v1025
    %v1027 = vpop.f32.mrf.mxu0
    %v1028 = vadd.f32 %v758, %v1027
    %v1029 = vpop.f32.mrf.mxu0
    %v1030 = vadd.f32 %v762, %v1029
    %1031 = vdwg.mxu0
    %1032 = vmatprep.subr.bf16.mxu0 %v926
    %1033 = vmatpush1.bf16.msra.mxu0 %v925
    %1034 = vmatprep.subr.bf16.mxu0 %v922
    %1035 = vmatpush1.bf16.msra.mxu0 %v921
    %1036 = vmatprep.subr.bf16.mxu0 %v918
    %1037 = vmatpush1.bf16.msra.mxu0 %v917
    %1038 = vmatprep.subr.bf16.mxu0 %v914
    %1039 = vmatpush1.bf16.msra.mxu0 %v913
    %1040 = vmatprep.subr.bf16.mxu0 %v910
    %1041 = vmatpush1.bf16.msra.mxu0 %v909
    %1042 = vmatprep.subr.bf16.mxu0 %v906
    %1043 = vmatpush1.bf16.msra.mxu0 %v905
    %1044 = vmatprep.subr.bf16.mxu0 %v902
    %1045 = vmatpush1.bf16.msra.mxu0 %v901
    %1046 = vmatprep.subr.bf16.mxu0 %v898
    %1047 = vmatpush1.bf16.msra.mxu0 %v897
    %1048 = vmatprep.subr.bf16.mxu0 0
    %1049 = vmatpush2.bf16.msra.mxu0 0
    %1050 = vmatprep.subr.bf16.mxu0 0
    %1051 = vmatpush2.bf16.msra.mxu0 0
    %1052 = vmatprep.subr.bf16.mxu0 0
    %1053 = vmatpush2.bf16.msra.mxu0 0
    %1054 = vmatprep.subr.bf16.mxu0 0
    %1055 = vmatpush2.bf16.msra.mxu0 0
    %1056 = vmatprep.subr.bf16.mxu0 0
    %1057 = vmatpush2.bf16.msra.mxu0 0
    %1058 = vmatprep.subr.bf16.mxu0 0
    %1059 = vmatpush2.bf16.msra.mxu0 0
    %1060 = vmatprep.subr.bf16.mxu0 0
    %1061 = vmatpush2.bf16.msra.mxu0 0
    %1062 = vmatprep.subr.bf16.mxu0 0
    %1063 = vmatpush2.bf16.msra.mxu0 0
    %1064 = vmatprep.mubr.bf16.mxu0 0
    %1065 = vmatmul.mubr.bf16.gmra.mxu0 %v791
    %v1066 = vpop.f32.mrf.mxu0
    %v1067 = vadd.f32 %v766, %v1066
    %v1068 = vpop.f32.mrf.mxu0
    %v1069 = vadd.f32 %v770, %v1068
    %v1070 = vpop.f32.mrf.mxu0
    %v1071 = vadd.f32 %v766, %v1070
    %v1072 = vpop.f32.mrf.mxu0
    %v1073 = vadd.f32 %v770, %v1072
    %1074 = vmatprep.mubr.bf16.mxu0 0
    %1075 = vmatmul.mubr.bf16.gmra.mxu0 %v792
    %v1076 = vpop.f32.mrf.mxu0
    %v1077 = vadd.f32 %v766, %v1076
    %v1078 = vpop.f32.mrf.mxu0
    %v1079 = vadd.f32 %v770, %v1078
    %v1080 = vpop.f32.mrf.mxu0
    %v1081 = vadd.f32 %v766, %v1080
    %v1082 = vpop.f32.mrf.mxu0
    %v1083 = vadd.f32 %v770, %v1082
    %1084 = vmatprep.mubr.bf16.mxu0 0
    %1085 = vmatmul.mubr.bf16.gmra.mxu0 %v793
    %v1086 = vpop.f32.mrf.mxu0
    %v1087 = vadd.f32 %v766, %v1086
    %v1088 = vpop.f32.mrf.mxu0
    %v1089 = vadd.f32 %v770, %v1088
    %v1090 = vpop.f32.mrf.mxu0
    %v1091 = vadd.f32 %v766, %v1090
    %v1092 = vpop.f32.mrf.mxu0
    %v1093 = vadd.f32 %v770, %v1092
    %1094 = vmatprep.mubr.bf16.mxu0 0
    %1095 = vmatmul.mubr.bf16.gmra.mxu0 %v794
    %v1096 = vpop.f32.mrf.mxu0
    %v1097 = vadd.f32 %v766, %v1096
    %v1098 = vpop.f32.mrf.mxu0
    %v1099 = vadd.f32 %v770, %v1098
    %v1100 = vpop.f32.mrf.mxu0
    %v1101 = vadd.f32 %v766, %v1100
    %v1102 = vpop.f32.mrf.mxu0
    %v1103 = vadd.f32 %v770, %v1102
    %1104 = vdwg.mxu0
    %1105 = vst [vmem:[#allocation3] sm:$0xff] %v994
    %1106 = vst [vmem:[#allocation3 + $0x8] sm:$0xff] %v996
    %1107 = vst [vmem:[#allocation3 + $0x10] sm:$0xff] %v1067
    %1108 = vst [vmem:[#allocation3 + $0x18] sm:$0xff] %v1069
    %1109 = vst [vmem:[#allocation3 + $0x20] sm:$0xff] %v998
    %1110 = vst [vmem:[#allocation3 + $0x28] sm:$0xff] %v1000
    %1111 = vst [vmem:[#allocation3 + $0x30] sm:$0xff] %v1071
    %1112 = vst [vmem:[#allocation3 + $0x38] sm:$0xff] %v1073
    %1113 = vst [vmem:[#allocation3 + $0x40] sm:$0xff] %v1004
    %1114 = vst [vmem:[#allocation3 + $0x48] sm:$0xff] %v1006
    %1115 = vst [vmem:[#allocation3 + $0x50] sm:$0xff] %v1077
    %1116 = vst [vmem:[#allocation3 + $0x58] sm:$0xff] %v1079
    %1117 = vst [vmem:[#allocation3 + $0x60] sm:$0xff] %v1008
    %1118 = vst [vmem:[#allocation3 + $0x68] sm:$0xff] %v1010
    %1119 = vst [vmem:[#allocation3 + $0x70] sm:$0xff] %v1081
    %1120 = vst [vmem:[#allocation3 + $0x78] sm:$0xff] %v1083
    %1121 = vst [vmem:[#allocation3 + $0x80] sm:$0xff] %v1014
    %1122 = vst [vmem:[#allocation3 + $0x88] sm:$0xff] %v1016
    %1123 = vst [vmem:[#allocation3 + $0x90] sm:$0xff] %v1087
    %1124 = vst [vmem:[#allocation3 + $0x98] sm:$0xff] %v1089
    %1125 = vst [vmem:[#allocation3 + $0xa0] sm:$0xff] %v1018
    %1126 = vst [vmem:[#allocation3 + $0xa8] sm:$0xff] %v1020
    %1127 = vst [vmem:[#allocation3 + $0xb0] sm:$0xff] %v1091
    %1128 = vst [vmem:[#allocation3 + $0xb8] sm:$0xff] %v1093
    %1129 = vst [vmem:[#allocation3 + $0xc0] sm:$0xff] %v1024
    %1130 = vst [vmem:[#allocation3 + $0xc8] sm:$0xff] %v1026
    %1131 = vst [vmem:[#allocation3 + $0xd0] sm:$0xff] %v1097
    %1132 = vst [vmem:[#allocation3 + $0xd8] sm:$0xff] %v1099
    %1133 = vst [vmem:[#allocation3 + $0xe0] sm:$0xff] %v1028
    %1134 = vst [vmem:[#allocation3 + $0xe8] sm:$0xff] %v1030
    %1135 = vst [vmem:[#allocation3 + $0xf0] sm:$0xff] %v1101
    %1136 = vst [vmem:[#allocation3 + $0xf8] sm:$0xff] %v1103
    %1137 = vst [vmem:[#allocation4] sm:$0xff] 0.0
    %1138 = vst [vmem:[#allocation5] sm:$0xff] 0.0
    loop: start=0, step=1, limit=8
    $region57: #{tpu_custom_call.1} parent=1 // loop_pre_header
      _
    $region58: #{tpu_custom_call.1} parent=1 // loop_header
      %s1140 = sphi 0, %s1144
      %p1141 = scmp.ge.s32.totalorder %s1140, 8
    $region59: #{tpu_custom_call.1} parent=1 // loop_header_branch
      %1143 = sbr.rel (%p1141) target = $region63
    $region60: #{tpu_custom_call.1} parent=1 // loop_body
      %s1145 = smul.u32 %s1140, 4
      %s1146 = smul.addr %s1145, 8
      %s1147 = scalar_lea.vmem [#allocation3], %s1146
      %v1148 = vld [vmem:[%s1147] sm:$0xff]
      %v1149 = vld [vmem:[%s1147 + $0x8] sm:$0xff]
      %v1150 = vld [vmem:[%s1147 + $0x10] sm:$0xff]
      %v1151 = vld [vmem:[%s1147 + $0x18] sm:$0xff]
      %v1152 = vld [vmem:[#allocation4] sm:$0xff]
      %v1153 = vpack.c.bf16 %v1152, %v1152
      %v1154 = vld [vmem:[#allocation14] sm:$0xff]
      %v1155 = vld [vmem:[#allocation14 + $0x8] sm:$0xff]
      %v1156 = vld [vmem:[#allocation14 + $0x10] sm:$0xff]
      %v1157 = vld [vmem:[#allocation14 + $0x18] sm:$0xff]
      %v1158 = vld [vmem:[#allocation14 + $0x20] sm:$0xff]
      %v1159 = vld [vmem:[#allocation14 + $0x28] sm:$0xff]
      %v1160 = vld [vmem:[#allocation14 + $0x30] sm:$0xff]
      %v1161 = vld [vmem:[#allocation14 + $0x38] sm:$0xff]
      %v1162 = vld [vmem:[#allocation14 + $0x40] sm:$0xff]
      %v1163 = vld [vmem:[#allocation14 + $0x48] sm:$0xff]
      %v1164 = vld [vmem:[#allocation14 + $0x50] sm:$0xff]
      %v1165 = vld [vmem:[#allocation14 + $0x58] sm:$0xff]
      %v1166 = vld [vmem:[#allocation14 + $0x60] sm:$0xff]
      %v1167 = vld [vmem:[#allocation14 + $0x68] sm:$0xff]
      %v1168 = vld [vmem:[#allocation14 + $0x70] sm:$0xff]
      %v1169 = vld [vmem:[#allocation14 + $0x78] sm:$0xff]
      %v1170 = vld [vmem:[#allocation14 + $0x80] sm:$0xff]
      %v1171 = vld [vmem:[#allocation14 + $0x88] sm:$0xff]
      %v1172 = vld [vmem:[#allocation14 + $0x90] sm:$0xff]
      %v1173 = vld [vmem:[#allocation14 + $0x98] sm:$0xff]
      %v1174 = vld [vmem:[#allocation14 + $0xa0] sm:$0xff]
      %v1175 = vld [vmem:[#allocation14 + $0xa8] sm:$0xff]
      %v1176 = vld [vmem:[#allocation14 + $0xb0] sm:$0xff]
      %v1177 = vld [vmem:[#allocation14 + $0xb8] sm:$0xff]
      %v1178 = vld [vmem:[#allocation14 + $0xc0] sm:$0xff]
      %v1179 = vld [vmem:[#allocation14 + $0xc8] sm:$0xff]
      %v1180 = vld [vmem:[#allocation14 + $0xd0] sm:$0xff]
      %v1181 = vld [vmem:[#allocation14 + $0xd8] sm:$0xff]
      %v1182 = vld [vmem:[#allocation14 + $0xe0] sm:$0xff]
      %v1183 = vld [vmem:[#allocation14 + $0xe8] sm:$0xff]
      %v1184 = vld [vmem:[#allocation14 + $0xf0] sm:$0xff]
      %v1185 = vld [vmem:[#allocation14 + $0xf8] sm:$0xff]
      %v1218 = vunpack.c.l.b16 %v1154
      %v1219 = vunpack.c.h.b16 %v1154
      %v1220 = vunpack.c.l.b16 %v1155
      %v1221 = vunpack.c.h.b16 %v1155
      %v1222 = vunpack.c.l.b16 %v1156
      %v1223 = vunpack.c.h.b16 %v1156
      %v1224 = vunpack.c.l.b16 %v1157
      %v1225 = vunpack.c.h.b16 %v1157
      %v1226 = vunpack.c.l.b16 %v1158
      %v1227 = vunpack.c.h.b16 %v1158
      %v1228 = vunpack.c.l.b16 %v1159
      %v1229 = vunpack.c.h.b16 %v1159
      %v1230 = vunpack.c.l.b16 %v1160
      %v1231 = vunpack.c.h.b16 %v1160
      %v1232 = vunpack.c.l.b16 %v1161
      %v1233 = vunpack.c.h.b16 %v1161
      %v1234 = vunpack.c.l.b16 %v1162
      %v1235 = vunpack.c.h.b16 %v1162
      %v1236 = vunpack.c.l.b16 %v1163
      %v1237 = vunpack.c.h.b16 %v1163
      %v1238 = vunpack.c.l.b16 %v1164
      %v1239 = vunpack.c.h.b16 %v1164
      %v1240 = vunpack.c.l.b16 %v1165
      %v1241 = vunpack.c.h.b16 %v1165
      %v1242 = vunpack.c.l.b16 %v1166
      %v1243 = vunpack.c.h.b16 %v1166
      %v1244 = vunpack.c.l.b16 %v1167
      %v1245 = vunpack.c.h.b16 %v1167
      %v1246 = vunpack.c.l.b16 %v1168
      %v1247 = vunpack.c.h.b16 %v1168
      %v1248 = vunpack.c.l.b16 %v1169
      %v1249 = vunpack.c.h.b16 %v1169
      %v1250 = vunpack.c.l.b16 %v1170
      %v1251 = vunpack.c.h.b16 %v1170
      %v1252 = vunpack.c.l.b16 %v1171
      %v1253 = vunpack.c.h.b16 %v1171
      %v1254 = vunpack.c.l.b16 %v1172
      %v1255 = vunpack.c.h.b16 %v1172
      %v1256 = vunpack.c.l.b16 %v1173
      %v1257 = vunpack.c.h.b16 %v1173
      %v1258 = vunpack.c.l.b16 %v1174
      %v1259 = vunpack.c.h.b16 %v1174
      %v1260 = vunpack.c.l.b16 %v1175
      %v1261 = vunpack.c.h.b16 %v1175
      %v1262 = vunpack.c.l.b16 %v1176
      %v1263 = vunpack.c.h.b16 %v1176
      %v1264 = vunpack.c.l.b16 %v1177
      %v1265 = vunpack.c.h.b16 %v1177
      %v1266 = vunpack.c.l.b16 %v1178
      %v1267 = vunpack.c.h.b16 %v1178
      %v1268 = vunpack.c.l.b16 %v1179
      %v1269 = vunpack.c.h.b16 %v1179
      %v1270 = vunpack.c.l.b16 %v1180
      %v1271 = vunpack.c.h.b16 %v1180
      %v1272 = vunpack.c.l.b16 %v1181
      %v1273 = vunpack.c.h.b16 %v1181
      %v1274 = vunpack.c.l.b16 %v1182
      %v1275 = vunpack.c.h.b16 %v1182
      %v1276 = vunpack.c.l.b16 %v1183
      %v1277 = vunpack.c.h.b16 %v1183
      %v1278 = vunpack.c.l.b16 %v1184
      %v1279 = vunpack.c.h.b16 %v1184
      %v1280 = vunpack.c.l.b16 %v1185
      %v1281 = vunpack.c.h.b16 %v1185
      %v1282 = vpack.c.b16 %v1222, %v1218
      %v1283 = vpack.c.b16 %v1223, %v1219
      %v1284 = vpack.c.b16 %v1224, %v1220
      %v1285 = vpack.c.b16 %v1225, %v1221
      %v1286 = vpack.c.b16 %v1230, %v1226
      %v1287 = vpack.c.b16 %v1231, %v1227
      %v1288 = vpack.c.b16 %v1232, %v1228
      %v1289 = vpack.c.b16 %v1233, %v1229
      %v1290 = vpack.c.b16 %v1238, %v1234
      %v1291 = vpack.c.b16 %v1239, %v1235
      %v1292 = vpack.c.b16 %v1240, %v1236
      %v1293 = vpack.c.b16 %v1241, %v1237
      %v1294 = vpack.c.b16 %v1246, %v1242
      %v1295 = vpack.c.b16 %v1247, %v1243
      %v1296 = vpack.c.b16 %v1248, %v1244
      %v1297 = vpack.c.b16 %v1249, %v1245
      %v1298 = vpack.c.b16 %v1254, %v1250
      %v1299 = vpack.c.b16 %v1255, %v1251
      %v1300 = vpack.c.b16 %v1256, %v1252
      %v1301 = vpack.c.b16 %v1257, %v1253
      %v1302 = vpack.c.b16 %v1262, %v1258
      %v1303 = vpack.c.b16 %v1263, %v1259
      %v1304 = vpack.c.b16 %v1264, %v1260
      %v1305 = vpack.c.b16 %v1265, %v1261
      %v1306 = vpack.c.b16 %v1270, %v1266
      %v1307 = vpack.c.b16 %v1271, %v1267
      %v1308 = vpack.c.b16 %v1272, %v1268
      %v1309 = vpack.c.b16 %v1273, %v1269
      %v1310 = vpack.c.b16 %v1278, %v1274
      %v1311 = vpack.c.b16 %v1279, %v1275
      %v1312 = vpack.c.b16 %v1280, %v1276
      %v1313 = vpack.c.b16 %v1281, %v1277
      %1346 = vmatprep.subr.bf16.mxu0 %v1311
      %1347 = vmatpush1.bf16.msra.mxu0 %v1310
      %1348 = vmatprep.subr.bf16.mxu0 %v1307
      %1349 = vmatpush1.bf16.msra.mxu0 %v1306
      %1350 = vmatprep.subr.bf16.mxu0 %v1303
      %1351 = vmatpush1.bf16.msra.mxu0 %v1302
      %1352 = vmatprep.subr.bf16.mxu0 %v1299
      %1353 = vmatpush1.bf16.msra.mxu0 %v1298
      %1354 = vmatprep.subr.bf16.mxu0 %v1295
      %1355 = vmatpush1.bf16.msra.mxu0 %v1294
      %1356 = vmatprep.subr.bf16.mxu0 %v1291
      %1357 = vmatpush1.bf16.msra.mxu0 %v1290
      %1358 = vmatprep.subr.bf16.mxu0 %v1287
      %1359 = vmatpush1.bf16.msra.mxu0 %v1286
      %1360 = vmatprep.subr.bf16.mxu0 %v1283
      %1361 = vmatpush1.bf16.msra.mxu0 %v1282
      %1362 = vmatprep.subr.bf16.mxu0 0
      %1363 = vmatpush2.bf16.msra.mxu0 0
      %1364 = vmatprep.subr.bf16.mxu0 0
      %1365 = vmatpush2.bf16.msra.mxu0 0
      %1366 = vmatprep.subr.bf16.mxu0 0
      %1367 = vmatpush2.bf16.msra.mxu0 0
      %1368 = vmatprep.subr.bf16.mxu0 0
      %1369 = vmatpush2.bf16.msra.mxu0 0
      %1370 = vmatprep.subr.bf16.mxu0 0
      %1371 = vmatpush2.bf16.msra.mxu0 0
      %1372 = vmatprep.subr.bf16.mxu0 0
      %1373 = vmatpush2.bf16.msra.mxu0 0
      %1374 = vmatprep.subr.bf16.mxu0 0
      %1375 = vmatpush2.bf16.msra.mxu0 0
      %1376 = vmatprep.subr.bf16.mxu0 0
      %1377 = vmatpush2.bf16.msra.mxu0 0
      %1378 = vmatprep.mubr.bf16.mxu0 0
      %1379 = vmatmul.mubr.bf16.gmra.mxu0 %v1153
      %v1380 = vpop.f32.mrf.mxu0
      %v1381 = vadd.f32 0.0, %v1380
      %v1382 = vpop.f32.mrf.mxu0
      %v1383 = vadd.f32 0.0, %v1382
      %v1384 = vpop.f32.mrf.mxu0
      %v1385 = vpop.f32.mrf.mxu0
      %1386 = vdwg.mxu0
      %1387 = vmatprep.subr.bf16.mxu0 %v1313
      %1388 = vmatpush1.bf16.msra.mxu0 %v1312
      %1389 = vmatprep.subr.bf16.mxu0 %v1309
      %1390 = vmatpush1.bf16.msra.mxu0 %v1308
      %1391 = vmatprep.subr.bf16.mxu0 %v1305
      %1392 = vmatpush1.bf16.msra.mxu0 %v1304
      %1393 = vmatprep.subr.bf16.mxu0 %v1301
      %1394 = vmatpush1.bf16.msra.mxu0 %v1300
      %1395 = vmatprep.subr.bf16.mxu0 %v1297
      %1396 = vmatpush1.bf16.msra.mxu0 %v1296
      %1397 = vmatprep.subr.bf16.mxu0 %v1293
      %1398 = vmatpush1.bf16.msra.mxu0 %v1292
      %1399 = vmatprep.subr.bf16.mxu0 %v1289
      %1400 = vmatpush1.bf16.msra.mxu0 %v1288
      %1401 = vmatprep.subr.bf16.mxu0 %v1285
      %1402 = vmatpush1.bf16.msra.mxu0 %v1284
      %1403 = vmatprep.subr.bf16.mxu0 0
      %1404 = vmatpush2.bf16.msra.mxu0 0
      %1405 = vmatprep.subr.bf16.mxu0 0
      %1406 = vmatpush2.bf16.msra.mxu0 0
      %1407 = vmatprep.subr.bf16.mxu0 0
      %1408 = vmatpush2.bf16.msra.mxu0 0
      %1409 = vmatprep.subr.bf16.mxu0 0
      %1410 = vmatpush2.bf16.msra.mxu0 0
      %1411 = vmatprep.subr.bf16.mxu0 0
      %1412 = vmatpush2.bf16.msra.mxu0 0
      %1413 = vmatprep.subr.bf16.mxu0 0
      %1414 = vmatpush2.bf16.msra.mxu0 0
      %1415 = vmatprep.subr.bf16.mxu0 0
      %1416 = vmatpush2.bf16.msra.mxu0 0
      %1417 = vmatprep.subr.bf16.mxu0 0
      %1418 = vmatpush2.bf16.msra.mxu0 0
      %1419 = vmatprep.mubr.bf16.mxu0 0
      %1420 = vmatmul.mubr.bf16.gmra.mxu0 %v1153
      %v1421 = vpop.f32.mrf.mxu0
      %v1422 = vadd.f32 0.0, %v1421
      %v1423 = vpop.f32.mrf.mxu0
      %v1424 = vadd.f32 0.0, %v1423
      %v1425 = vpop.f32.mrf.mxu0
      %v1426 = vpop.f32.mrf.mxu0
      %1427 = vdwg.mxu0
      %v1428 = vadd.f32 %v1148, %v1381
      %v1429 = vadd.f32 %v1149, %v1383
      %v1430 = vadd.f32 %v1150, %v1422
      %v1431 = vadd.f32 %v1151, %v1424
      %v1432 = vmul.f32 %v1428, 0.5
      %v1433 = vtanh.pop %v1432
      %v1434 = vadd.f32 %v1433, 1.0
      %v1435 = vmul.f32 %v1434, 0.5
      %v1436 = vmul.f32 %v1429, 0.5
      %v1437 = vtanh.pop %v1436
      %v1438 = vadd.f32 %v1437, 1.0
      %v1439 = vmul.f32 %v1438, 0.5
      %v1440 = vtanh.pop %v1430
      %v1441 = vmul.f32 %v1431, 0.5
      %v1442 = vtanh.pop %v1441
      %v1443 = vadd.f32 %v1442, 1.0
      %v1444 = vmul.f32 %v1443, 0.5
      %v1445 = vld [vmem:[#allocation5] sm:$0xff]
      %v1446 = vmul.f32 %v1439, %v1445
      %v1447 = vmul.f32 %v1435, %v1440
      %v1448 = vadd.f32 %v1446, %v1447
      %v1449 = vtanh.pop %v1448
      %v1450 = vmul.f32 %v1444, %v1449
      %1451 = vst [vmem:[#allocation5] sm:$0xff] %v1448
      %1452 = vst [vmem:[#allocation4] sm:$0xff] %v1450
      %s1453 = smul.u32 %s1140, 8
      %s1454 = scalar_lea.vmem [#allocation15], %s1453
      %1455 = vst [vmem:[%s1454] sm:$0xff] %v1450
    $region61: #{tpu_custom_call.1} parent=1 // loop_footer
      %s1144 = sadd.s32 1, %s1140
    $region62: #{tpu_custom_call.1} parent=1 // loop_footer_branch
      %1139 = sbr.rel target = $region58
    $region63: #{tpu_custom_call.1} parent=1 // loop_exit
      _
    %v1456 = vld [vmem:[#allocation4] sm:$0xff]
    %s1457 = scalar_lea.vmem [#allocation16], 8
    %1458 = vst [vmem:[%s1457] sm:$0xff] %v1456
    %v1459 = vld [vmem:[#allocation5] sm:$0xff]
    %s1460 = scalar_lea.vmem [#allocation18], 8
    %1461 = vst [vmem:[%s1460] sm:$0xff] %v1459
    // Predicated region
    $region64: #{tpu_custom_call.1} parent=1 // pred_check
      _
    $region65: #{tpu_custom_call.1} parent=1 // pred_check_branch
      %1463 = sbr.rel (0) target = $region67
    $region66: #{tpu_custom_call.1} parent=1 // pred_region
      %s1465 = ssub.s32 1024, 1024
      %1466 = vsyncadd [#allocation8], %s1465
      %s1467 = sshll.u32 [#allocation15], 4
      %s1468 = int_to_ptr.vmem [resolvable:$true] %s1467
      %1473 = dma.vmem_to_hbm [thread:$0]  %s1468, 1024, %s7, [#allocation8], 128, 128, 8
    $region67: #{tpu_custom_call.1} parent=1 // pred_fallthru
      _
    // Predicated region
    $region68: #{tpu_custom_call.1} parent=1 // pred_check
      _
    $region69: #{tpu_custom_call.1} parent=1 // pred_check_branch
      %1475 = sbr.rel (0) target = $region71
    $region70: #{tpu_custom_call.1} parent=1 // pred_region
      %s1477 = ssub.s32 256, 256
      %1478 = vsyncadd [#allocation17], %s1477
      %s1479 = sshll.u32 [#allocation16], 4
      %s1480 = int_to_ptr.vmem [resolvable:$true] %s1479
      %1485 = dma.vmem_to_hbm [thread:$0]  %s1480, 256, %s8, [#allocation17], 128, 128, 8
    $region71: #{tpu_custom_call.1} parent=1 // pred_fallthru
      _
    // Predicated region
    $region72: #{tpu_custom_call.1} parent=1 // pred_check
      _
    $region73: #{tpu_custom_call.1} parent=1 // pred_check_branch
      %1487 = sbr.rel (0) target = $region75
    $region74: #{tpu_custom_call.1} parent=1 // pred_region
      %s1489 = ssub.s32 256, 256
      %1490 = vsyncadd [#allocation17], %s1489
      %s1491 = sshll.u32 [#allocation18], 4
      %s1492 = int_to_ptr.vmem [resolvable:$true] %s1491
      %1497 = dma.vmem_to_hbm [thread:$0]  %s1492, 256, %s9, [#allocation17], 128, 128, 8
    $region75: #{tpu_custom_call.1} parent=1 // pred_fallthru
      _
    // Predicated region
    $region76: #{tpu_custom_call.1} parent=1 // pred_check
      _
    $region77: #{tpu_custom_call.1} parent=1 // pred_check_branch
      %1499 = sbr.rel (0) target = $region79
    $region78: #{tpu_custom_call.1} parent=1 // pred_region
      %1500 = dma.done [#allocation8], 1024
    $region79: #{tpu_custom_call.1} parent=1 // pred_fallthru
      _
    // Predicated region
    $region80: #{tpu_custom_call.1} parent=1 // pred_check
      _
    $region81: #{tpu_custom_call.1} parent=1 // pred_check_branch
      %1502 = sbr.rel (0) target = $region83
    $region82: #{tpu_custom_call.1} parent=1 // pred_region
      %1503 = dma.done [#allocation17], 256
    $region83: #{tpu_custom_call.1} parent=1 // pred_fallthru
      _
    // Predicated region
    $region84: #{tpu_custom_call.1} parent=1 // pred_check
      _
    $region85: #{tpu_custom_call.1} parent=1 // pred_check_branch
      %1505 = sbr.rel (0) target = $region87
    $region86: #{tpu_custom_call.1} parent=1 // pred_region
      %1506 = dma.done [#allocation17], 256
    $region87: #{tpu_custom_call.1} parent=1 // pred_fallthru
      _
    %1507 = vsyncpa [#allocation7], 1
    %1508 = vsyncpa [#allocation10], 1
    %1509 = vsyncpa [#allocation13], 1
    %1510 = vsyncpa [#allocation8], 1
    %1511 = vsyncpa [#allocation17], 1

// kernel: tpu_custom_call.1
$region0: #{tpu_custom_call.1}
  #allocation0 [shape = 'u32[]', space=smem, size = 0x4, offset = 0x4, fixed_abs, tag = 'smem constant byte address 0x4 - core index']
  #allocation1 [shape = 'u32[144,128]{1,0:T(1,128)}', space=vmem, size = 0x12000, scoped, tag = 'internal scratch']
  #allocation2 [shape = 'bf16[8,8,128]{2,1,0:T(8,128)(2,1)}', space=vmem, size = 0x4000, scoped, tag = 'scratch operand']
  #allocation3 [shape = 'f32[8,8,512]{2,1,0:T(8,128)}', space=vmem, size = 0x20000, scoped, tag = 'scratch operand']
  #allocation4 [shape = 'f32[8,128]{1,0:T(8,128)}', space=vmem, size = 0x1000, scoped, tag = 'scratch operand']
  #allocation5 [shape = 'f32[8,128]{1,0:T(8,128)}', space=vmem, size = 0x1000, scoped, tag = 'scratch operand']
  %s0 = inlined_call_operand.hbm [shape: bf16[8,8,32], index: 0, kind: input, shape index: {}]
  %s1 = inlined_call_operand.hbm [shape: bf16[32,512], index: 1, kind: input, shape index: {}]
  %s2 = inlined_call_operand.hbm [shape: bf16[128,512], index: 2, kind: input, shape index: {}]
  %s3 = inlined_call_operand.vmem [shape: f32[1,512], index: 3, kind: input, shape index: {}]
  %s4 = inlined_call_operand.hbm [shape: bf16[128,512], index: 4, kind: input, shape index: {}]
  %s5 = inlined_call_operand.hbm [shape: bf16[128,512], index: 5, kind: input, shape index: {}]
  %s6 = inlined_call_operand.vmem [shape: f32[1,512], index: 6, kind: input, shape index: {}]
  %s7 = inlined_call_operand.hbm [shape: f32[8,8,128], index: 7, kind: output, shape index: {0}]
  %s8 = inlined_call_operand.hbm [shape: f32[2,8,128], index: 8, kind: output, shape index: {1}]
  %s9 = inlined_call_operand.hbm [shape: f32[2,8,128], index: 9, kind: output, shape index: {2}]
  %10 = xla_tuple %s7, %s8, %s9
  %s11 = sld [smem:[#allocation0]]
  $region88: #{tpu_custom_call.1} parent=0
    _
  %s13 = ssub.s32 1, %s11
  %s14 = scalar_select 0, %s13, %s11
  $region1: #{tpu_custom_call.1} parent=0
    #allocation6 [shape = 'u8[16384]{0}', space=vmem, size = 0x4000, scoped, tag = 'input window, operand 0, single buffered']
    #allocation7 [shape = 's32[1]{0}', space=sflag, size = 0x4, scoped, tag = 'scoped memory for tpu_custom_call.1']
    #allocation8 [shape = 's32[1]{0}', space=sflag, size = 0x4, scoped, tag = 'scoped memory for tpu_custom_call.1']
    #allocation9 [shape = 'u8[32768]{0}', space=vmem, size = 0x8000, scoped, tag = 'input window, operand 1, single buffered']
    #allocation10 [shape = 's32[1]{0}', space=sflag, size = 0x4, scoped, tag = 'scoped memory for tpu_custom_call.1']
    #allocation11 [shape = 'u8[131072]{0}', space=vmem, size = 0x20000, scoped, tag = 'input window, operand 2, single buffered']
    #allocation12 [shape = 'u8[131072]{0}', space=vmem, size = 0x20000, scoped, tag = 'input window, operand 4, single buffered']
    #allocation13 [shape = 's32[1]{0}', space=sflag, size = 0x4, scoped, tag = 'scoped memory for tpu_custom_call.1']
    #allocation14 [shape = 'u8[131072]{0}', space=vmem, size = 0x20000, scoped, tag = 'input window, operand 5, single buffered']
    #allocation15 [shape = 'u8[32768]{0}', space=vmem, size = 0x8000, scoped, tag = 'output window, operand 0, single buffered']
    #allocation16 [shape = 'u8[8192]{0}', space=vmem, size = 0x2000, scoped, tag = 'output window, operand 1, single buffered']
    #allocation17 [shape = 's32[1]{0}', space=sflag, size = 0x4, scoped, tag = 'scoped memory for tpu_custom_call.1']
    #allocation18 [shape = 'u8[8192]{0}', space=vmem, size = 0x2000, scoped, tag = 'output window, operand 2, single buffered']
    %15 = vsyncpa [#allocation7], 0
    %16 = vsyncpa [#allocation10], 0
    %17 = vsyncpa [#allocation13], 0
    %18 = vsyncpa [#allocation8], 0
    %19 = vsyncpa [#allocation17], 0
    // Predicated region
    $region2: #{tpu_custom_call.1} parent=1 // pred_check
      _
    $region3: #{tpu_custom_call.1} parent=1 // pred_check_branch
      %21 = sbr.rel (0) target = $region5
    $region4: #{tpu_custom_call.1} parent=1 // pred_region
      %s23 = ssub.s32 512, 512
      %24 = vsyncadd [#allocation7], %s23
      %s25 = sshll.u32 [#allocation6], 4
      %s26 = int_to_ptr.vmem [resolvable:$true] %s25
      %31 = dma.hbm_to_vmem [thread:$0]  %s0, 512, %s26, [#allocation7], 64, 64, 4
    $region5: #{tpu_custom_call.1} parent=1 // pred_fallthru
      _
    // Predicated region
    $region6: #{tpu_custom_call.1} parent=1 // pred_check
      _
    $region7: #{tpu_custom_call.1} parent=1 // pred_check_branch
      %33 = sbr.rel (0) target = $region9
    $region8: #{tpu_custom_call.1} parent=1 // pred_region
      %s35 = ssub.s32 1024, 1024
      %36 = vsyncadd [#allocation10], %s35
      %s37 = sshll.u32 [#allocation9], 4
      %s38 = int_to_ptr.vmem [resolvable:$true] %s37
      %43 = dma.hbm_to_vmem [thread:$0]  %s1, 1024, %s38, [#allocation10], 256, 256, 16
    $region9: #{tpu_custom_call.1} parent=1 // pred_fallthru
      _
    // Predicated region
    $region10: #{tpu_custom_call.1} parent=1 // pred_check
      _
    $region11: #{tpu_custom_call.1} parent=1 // pred_check_branch
      %45 = sbr.rel (0) target = $region13
    $region12: #{tpu_custom_call.1} parent=1 // pred_region
      %s47 = ssub.s32 4096, 4096
      %48 = vsyncadd [#allocation10], %s47
      %s49 = sshll.u32 [#allocation11], 4
      %s50 = int_to_ptr.vmem [resolvable:$true] %s49
      %55 = dma.hbm_to_vmem [thread:$0]  %s2, 4096, %s50, [#allocation10], 256, 256, 16
    $region13: #{tpu_custom_call.1} parent=1 // pred_fallthru
      _
    // Predicated region
    $region14: #{tpu_custom_call.1} parent=1 // pred_check
      _
    $region15: #{tpu_custom_call.1} parent=1 // pred_check_branch
      %57 = sbr.rel (0) target = $region17
    $region16: #{tpu_custom_call.1} parent=1 // pred_region
      _
    $region17: #{tpu_custom_call.1} parent=1 // pred_fallthru
      _
    // Predicated region
    $region18: #{tpu_custom_call.1} parent=1 // pred_check
      _
    $region19: #{tpu_custom_call.1} parent=1 // pred_check_branch
      %59 = sbr.rel (0) target = $region21
    $region20: #{tpu_custom_call.1} parent=1 // pred_region
      %s61 = ssub.s32 4096, 4096
      %62 = vsyncadd [#allocation13], %s61
      %s63 = sshll.u32 [#allocation12], 4
      %s64 = int_to_ptr.vmem [resolvable:$true] %s63
      %69 = dma.hbm_to_vmem [thread:$0]  %s4, 4096, %s64, [#allocation13], 256, 256, 16
    $region21: #{tpu_custom_call.1} parent=1 // pred_fallthru
      _
    // Predicated region
    $region22: #{tpu_custom_call.1} parent=1 // pred_check
      _
    $region23: #{tpu_custom_call.1} parent=1 // pred_check_branch
      %71 = sbr.rel (0) target = $region25
    $region24: #{tpu_custom_call.1} parent=1 // pred_region
      %s73 = ssub.s32 4096, 4096
      %74 = vsyncadd [#allocation13], %s73
      %s75 = sshll.u32 [#allocation14], 4
      %s76 = int_to_ptr.vmem [resolvable:$true] %s75
      %81 = dma.hbm_to_vmem [thread:$0]  %s5, 4096, %s76, [#allocation13], 256, 256, 16
    $region25: #{tpu_custom_call.1} parent=1 // pred_fallthru
      _
    // Predicated region
    $region26: #{tpu_custom_call.1} parent=1 // pred_check
      _
    $region27: #{tpu_custom_call.1} parent=1 // pred_check_branch
      %83 = sbr.rel (0) target = $region29
    $region28: #{tpu_custom_call.1} parent=1 // pred_region
      _
    $region29: #{tpu_custom_call.1} parent=1 // pred_fallthru
      _
    // Predicated region
    $region30: #{tpu_custom_call.1} parent=1 // pred_check
      _
    $region31: #{tpu_custom_call.1} parent=1 // pred_check_branch
      %85 = sbr.rel (0) target = $region33
    $region32: #{tpu_custom_call.1} parent=1 // pred_region
      %86 = dma.done [#allocation7], 512
    $region33: #{tpu_custom_call.1} parent=1 // pred_fallthru
      _
    // Predicated region
    $region34: #{tpu_custom_call.1} parent=1 // pred_check
      _
    $region35: #{tpu_custom_call.1} parent=1 // pred_check_branch
      %88 = sbr.rel (0) target = $region37
    $region36: #{tpu_custom_call.1} parent=1 // pred_region
      %89 = dma.done [#allocation10], 1024
    $region37: #{tpu_custom_call.1} parent=1 // pred_fallthru
      _
    // Predicated region
    $region38: #{tpu_custom_call.1} parent=1 // pred_check
      _
    $region39: #{tpu_custom_call.1} parent=1 // pred_check_branch
      %91 = sbr.rel (0) target = $region41
    $region40: #{tpu_custom_call.1} parent=1 // pred_region
      %92 = dma.done [#allocation10], 4096
    $region41: #{tpu_custom_call.1} parent=1 // pred_fallthru
      _
    // Predicated region
    $region42: #{tpu_custom_call.1} parent=1 // pred_check
      _
    $region43: #{tpu_custom_call.1} parent=1 // pred_check_branch
      %94 = sbr.rel (0) target = $region45
    $region44: #{tpu_custom_call.1} parent=1 // pred_region
      %95 = dma.done [#allocation13], 4096
    $region45: #{tpu_custom_call.1} parent=1 // pred_fallthru
      _
    // Predicated region
    $region46: #{tpu_custom_call.1} parent=1 // pred_check
      _
    $region47: #{tpu_custom_call.1} parent=1 // pred_check_branch
      %97 = sbr.rel (0) target = $region49
    $region48: #{tpu_custom_call.1} parent=1 // pred_region
      %98 = dma.done [#allocation13], 4096
    $region49: #{tpu_custom_call.1} parent=1 // pred_fallthru
      _
    %v100 = vld [vmem:[#allocation6] sm:$0xf]
    %v101 = vld [vmem:[#allocation6 + $0x4] sm:$0xf]
    %v102 = vld [vmem:[#allocation6 + $0x8] sm:$0xf]
    %v103 = vld [vmem:[#allocation6 + $0xc] sm:$0xf]
    %v104 = vld [vmem:[#allocation6 + $0x10] sm:$0xf]
    %v105 = vld [vmem:[#allocation6 + $0x14] sm:$0xf]
    %v106 = vld [vmem:[#allocation6 + $0x18] sm:$0xf]
    %v107 = vld [vmem:[#allocation6 + $0x1c] sm:$0xf]
    %v108 = vld [vmem:[#allocation9] sm:$0xff]
    %v109 = vld [vmem:[#allocation9 + $0x8] sm:$0xff]
    %v110 = vld [vmem:[#allocation9 + $0x10] sm:$0xff]
    %v111 = vld [vmem:[#allocation9 + $0x18] sm:$0xff]
    %v112 = vld [vmem:[#allocation9 + $0x20] sm:$0xff]
    %v113 = vld [vmem:[#allocation9 + $0x28] sm:$0xff]
    %v114 = vld [vmem:[#allocation9 + $0x30] sm:$0xff]
    %v115 = vld [vmem:[#allocation9 + $0x38] sm:$0xff]
    %v116 = vld [vmem:[%s3] sm:$0xf]
    %v118 = vlaneseq
    %v119 = vshrl.u32 %v118, 7
    %v120 = vsub.s32 0, %v119
    %v121 = vrot.slane %v116, %v120
    %v122 = vlaneseq
    %v123 = vshrl.u32 %v122, 7
    %v124 = vsub.s32 1, %v123
    %v125 = vrot.slane %v116, %v124
    %v126 = vlaneseq
    %v127 = vshrl.u32 %v126, 7
    %v128 = vsub.s32 2, %v127
    %v129 = vrot.slane %v116, %v128
    %v130 = vlaneseq
    %v131 = vshrl.u32 %v130, 7
    %v132 = vsub.s32 3, %v131
    %v133 = vrot.slane %v116, %v132
    %v146 = vunpack.c.l.b16 %v100
    %v147 = vunpack.c.l.b16 %v101
    %v148 = vunpack.c.l.b16 %v102
    %v149 = vunpack.c.l.b16 %v103
    %v150 = vunpack.c.l.b16 %v104
    %v151 = vunpack.c.l.b16 %v105
    %v152 = vunpack.c.l.b16 %v106
    %v153 = vunpack.c.l.b16 %v107
    %v154 = vpack.c.b16 %v147, %v146
    %v155 = vpack.c.b16 %v149, %v148
    %v156 = vpack.c.b16 %v151, %v150
    %v157 = vpack.c.b16 %v153, %v152
    %v166 = vunpack.c.l.b16 %v108
    %v167 = vunpack.c.h.b16 %v108
    %v168 = vunpack.c.l.b16 %v109
    %v169 = vunpack.c.h.b16 %v109
    %v170 = vunpack.c.l.b16 %v110
    %v171 = vunpack.c.h.b16 %v110
    %v172 = vunpack.c.l.b16 %v111
    %v173 = vunpack.c.h.b16 %v111
    %v174 = vunpack.c.l.b16 %v112
    %v175 = vunpack.c.h.b16 %v112
    %v176 = vunpack.c.l.b16 %v113
    %v177 = vunpack.c.h.b16 %v113
    %v178 = vunpack.c.l.b16 %v114
    %v179 = vunpack.c.h.b16 %v114
    %v180 = vunpack.c.l.b16 %v115
    %v181 = vunpack.c.h.b16 %v115
    %v182 = vpack.c.b16 %v170, %v166
    %v183 = vpack.c.b16 %v171, %v167
    %v184 = vpack.c.b16 %v172, %v168
    %v185 = vpack.c.b16 %v173, %v169
    %v186 = vpack.c.b16 %v178, %v174
    %v187 = vpack.c.b16 %v179, %v175
    %v188 = vpack.c.b16 %v180, %v176
    %v189 = vpack.c.b16 %v181, %v177
    %vm198 = vcmask 261120
    %v200 = vsel %vm198, %v154, 0
    %v203 = vsel %vm198, %v155, 0
    %v206 = vsel %vm198, %v156, 0
    %v209 = vsel %vm198, %v157, 0
    %211 = vmatprep.subr.bf16.mxu0 0
    %212 = vmatpush1.bf16.msra.mxu0 0
    %213 = vmatprep.subr.bf16.mxu0 0
    %214 = vmatpush1.bf16.msra.mxu0 0
    %215 = vmatprep.subr.bf16.mxu0 0
    %216 = vmatpush1.bf16.msra.mxu0 0
    %217 = vmatprep.subr.bf16.mxu0 0
    %218 = vmatpush1.bf16.msra.mxu0 0
    %219 = vmatprep.subr.bf16.mxu0 0
    %220 = vmatpush1.bf16.msra.mxu0 0
    %221 = vmatprep.subr.bf16.mxu0 0
    %222 = vmatpush1.bf16.msra.mxu0 0
    %223 = vmatprep.subr.bf16.mxu0 %v187
    %224 = vmatpush1.bf16.msra.mxu0 %v186
    %225 = vmatprep.subr.bf16.mxu0 %v183
    %226 = vmatpush1.bf16.msra.mxu0 %v182
    %227 = vmatprep.subr.bf16.mxu0 0
    %228 = vmatpush2.bf16.msra.mxu0 0
    %229 = vmatprep.subr.bf16.mxu0 0
    %230 = vmatpush2.bf16.msra.mxu0 0
    %231 = vmatprep.subr.bf16.mxu0 0
    %232 = vmatpush2.bf16.msra.mxu0 0
    %233 = vmatprep.subr.bf16.mxu0 0
    %234 = vmatpush2.bf16.msra.mxu0 0
    %235 = vmatprep.subr.bf16.mxu0 0
    %236 = vmatpush2.bf16.msra.mxu0 0
    %237 = vmatprep.subr.bf16.mxu0 0
    %238 = vmatpush2.bf16.msra.mxu0 0
    %239 = vmatprep.subr.bf16.mxu0 0
    %240 = vmatpush2.bf16.msra.mxu0 0
    %241 = vmatprep.subr.bf16.mxu0 0
    %242 = vmatpush2.bf16.msra.mxu0 0
    %243 = vmatprep.mubr.bf16.mxu0 0
    %244 = vmatmul.mubr.bf16.gmra.mxu0 %v200
    %v245 = vpop.f32.mrf.mxu0
    %v246 = vadd.f32 %v121, %v245
    %v247 = vpop.f32.mrf.mxu0
    %v248 = vadd.f32 %v125, %v247
    %v249 = vpop.f32.mrf.mxu0
    %v250 = vadd.f32 %v121, %v249
    %v251 = vpop.f32.mrf.mxu0
    %v252 = vadd.f32 %v125, %v251
    %253 = vmatprep.mubr.bf16.mxu0 0
    %254 = vmatmul.mubr.bf16.gmra.mxu0 %v203
    %v255 = vpop.f32.mrf.mxu0
    %v256 = vadd.f32 %v121, %v255
    %v257 = vpop.f32.mrf.mxu0
    %v258 = vadd.f32 %v125, %v257
    %v259 = vpop.f32.mrf.mxu0
    %v260 = vadd.f32 %v121, %v259
    %v261 = vpop.f32.mrf.mxu0
    %v262 = vadd.f32 %v125, %v261
    %263 = vmatprep.mubr.bf16.mxu0 0
    %264 = vmatmul.mubr.bf16.gmra.mxu0 %v206
    %v265 = vpop.f32.mrf.mxu0
    %v266 = vadd.f32 %v121, %v265
    %v267 = vpop.f32.mrf.mxu0
    %v268 = vadd.f32 %v125, %v267
    %v269 = vpop.f32.mrf.mxu0
    %v270 = vadd.f32 %v121, %v269
    %v271 = vpop.f32.mrf.mxu0
    %v272 = vadd.f32 %v125, %v271
    %273 = vmatprep.mubr.bf16.mxu0 0
    %274 = vmatmul.mubr.bf16.gmra.mxu0 %v209
    %v275 = vpop.f32.mrf.mxu0
    %v276 = vadd.f32 %v121, %v275
    %v277 = vpop.f32.mrf.mxu0
    %v278 = vadd.f32 %v125, %v277
    %v279 = vpop.f32.mrf.mxu0
    %v280 = vadd.f32 %v121, %v279
    %v281 = vpop.f32.mrf.mxu0
    %v282 = vadd.f32 %v125, %v281
    %283 = vdwg.mxu0
    %284 = vmatprep.subr.bf16.mxu0 0
    %285 = vmatpush1.bf16.msra.mxu0 0
    %286 = vmatprep.subr.bf16.mxu0 0
    %287 = vmatpush1.bf16.msra.mxu0 0
    %288 = vmatprep.subr.bf16.mxu0 0
    %289 = vmatpush1.bf16.msra.mxu0 0
    %290 = vmatprep.subr.bf16.mxu0 0
    %291 = vmatpush1.bf16.msra.mxu0 0
    %292 = vmatprep.subr.bf16.mxu0 0
    %293 = vmatpush1.bf16.msra.mxu0 0
    %294 = vmatprep.subr.bf16.mxu0 0
    %295 = vmatpush1.bf16.msra.mxu0 0
    %296 = vmatprep.subr.bf16.mxu0 %v189
    %297 = vmatpush1.bf16.msra.mxu0 %v188
    %298 = vmatprep.subr.bf16.mxu0 %v185
    %299 = vmatpush1.bf16.msra.mxu0 %v184
    %300 = vmatprep.subr.bf16.mxu0 0
    %301 = vmatpush2.bf16.msra.mxu0 0
    %302 = vmatprep.subr.bf16.mxu0 0
    %303 = vmatpush2.bf16.msra.mxu0 0
    %304 = vmatprep.subr.bf16.mxu0 0
    %305 = vmatpush2.bf16.msra.mxu0 0
    %306 = vmatprep.subr.bf16.mxu0 0
    %307 = vmatpush2.bf16.msra.mxu0 0
    %308 = vmatprep.subr.bf16.mxu0 0
    %309 = vmatpush2.bf16.msra.mxu0 0
    %310 = vmatprep.subr.bf16.mxu0 0
    %311 = vmatpush2.bf16.msra.mxu0 0
    %312 = vmatprep.subr.bf16.mxu0 0
    %313 = vmatpush2.bf16.msra.mxu0 0
    %314 = vmatprep.subr.bf16.mxu0 0
    %315 = vmatpush2.bf16.msra.mxu0 0
    %316 = vmatprep.mubr.bf16.mxu0 0
    %317 = vmatmul.mubr.bf16.gmra.mxu0 %v200
    %v318 = vpop.f32.mrf.mxu0
    %v319 = vadd.f32 %v129, %v318
    %v320 = vpop.f32.mrf.mxu0
    %v321 = vadd.f32 %v133, %v320
    %v322 = vpop.f32.mrf.mxu0
    %v323 = vadd.f32 %v129, %v322
    %v324 = vpop.f32.mrf.mxu0
    %v325 = vadd.f32 %v133, %v324
    %326 = vmatprep.mubr.bf16.mxu0 0
    %327 = vmatmul.mubr.bf16.gmra.mxu0 %v203
    %v328 = vpop.f32.mrf.mxu0
    %v329 = vadd.f32 %v129, %v328
    %v330 = vpop.f32.mrf.mxu0
    %v331 = vadd.f32 %v133, %v330
    %v332 = vpop.f32.mrf.mxu0
    %v333 = vadd.f32 %v129, %v332
    %v334 = vpop.f32.mrf.mxu0
    %v335 = vadd.f32 %v133, %v334
    %336 = vmatprep.mubr.bf16.mxu0 0
    %337 = vmatmul.mubr.bf16.gmra.mxu0 %v206
    %v338 = vpop.f32.mrf.mxu0
    %v339 = vadd.f32 %v129, %v338
    %v340 = vpop.f32.mrf.mxu0
    %v341 = vadd.f32 %v133, %v340
    %v342 = vpop.f32.mrf.mxu0
    %v343 = vadd.f32 %v129, %v342
    %v344 = vpop.f32.mrf.mxu0
    %v345 = vadd.f32 %v133, %v344
    %346 = vmatprep.mubr.bf16.mxu0 0
    %347 = vmatmul.mubr.bf16.gmra.mxu0 %v209
    %v348 = vpop.f32.mrf.mxu0
    %v349 = vadd.f32 %v129, %v348
    %v350 = vpop.f32.mrf.mxu0
    %v351 = vadd.f32 %v133, %v350
    %v352 = vpop.f32.mrf.mxu0
    %v353 = vadd.f32 %v129, %v352
    %v354 = vpop.f32.mrf.mxu0
    %v355 = vadd.f32 %v133, %v354
    %356 = vdwg.mxu0
    %357 = vst [vmem:[#allocation3] sm:$0xff] %v246
    %358 = vst [vmem:[#allocation3 + $0x8] sm:$0xff] %v248
    %359 = vst [vmem:[#allocation3 + $0x10] sm:$0xff] %v319
    %360 = vst [vmem:[#allocation3 + $0x18] sm:$0xff] %v321
    %361 = vst [vmem:[#allocation3 + $0x20] sm:$0xff] %v250
    %362 = vst [vmem:[#allocation3 + $0x28] sm:$0xff] %v252
    %363 = vst [vmem:[#allocation3 + $0x30] sm:$0xff] %v323
    %364 = vst [vmem:[#allocation3 + $0x38] sm:$0xff] %v325
    %365 = vst [vmem:[#allocation3 + $0x40] sm:$0xff] %v256
    %366 = vst [vmem:[#allocation3 + $0x48] sm:$0xff] %v258
    %367 = vst [vmem:[#allocation3 + $0x50] sm:$0xff] %v329
    %368 = vst [vmem:[#allocation3 + $0x58] sm:$0xff] %v331
    %369 = vst [vmem:[#allocation3 + $0x60] sm:$0xff] %v260
    %370 = vst [vmem:[#allocation3 + $0x68] sm:$0xff] %v262
    %371 = vst [vmem:[#allocation3 + $0x70] sm:$0xff] %v333
    %372 = vst [vmem:[#allocation3 + $0x78] sm:$0xff] %v335
    %373 = vst [vmem:[#allocation3 + $0x80] sm:$0xff] %v266
    %374 = vst [vmem:[#allocation3 + $0x88] sm:$0xff] %v268
    %375 = vst [vmem:[#allocation3 + $0x90] sm:$0xff] %v339
    %376 = vst [vmem:[#allocation3 + $0x98] sm:$0xff] %v341
    %377 = vst [vmem:[#allocation3 + $0xa0] sm:$0xff] %v270
    %378 = vst [vmem:[#allocation3 + $0xa8] sm:$0xff] %v272
    %379 = vst [vmem:[#allocation3 + $0xb0] sm:$0xff] %v343
    %380 = vst [vmem:[#allocation3 + $0xb8] sm:$0xff] %v345
    %381 = vst [vmem:[#allocation3 + $0xc0] sm:$0xff] %v276
    %382 = vst [vmem:[#allocation3 + $0xc8] sm:$0xff] %v278
    %383 = vst [vmem:[#allocation3 + $0xd0] sm:$0xff] %v349
    %384 = vst [vmem:[#allocation3 + $0xd8] sm:$0xff] %v351
    %385 = vst [vmem:[#allocation3 + $0xe0] sm:$0xff] %v280
    %386 = vst [vmem:[#allocation3 + $0xe8] sm:$0xff] %v282
    %387 = vst [vmem:[#allocation3 + $0xf0] sm:$0xff] %v353
    %388 = vst [vmem:[#allocation3 + $0xf8] sm:$0xff] %v355
    %389 = vst [vmem:[#allocation4] sm:$0xff] 0.0
    %390 = vst [vmem:[#allocation5] sm:$0xff] 0.0
    loop: start=0, step=1, limit=8
    $region50: #{tpu_custom_call.1} parent=1 // loop_pre_header
      _
    $region51: #{tpu_custom_call.1} parent=1 // loop_header
      %s392 = sphi 0, %s396
      %p393 = scmp.ge.s32.totalorder %s392, 8
    $region52: #{tpu_custom_call.1} parent=1 // loop_header_branch
      %395 = sbr.rel (%p393) target = $region56
    $region53: #{tpu_custom_call.1} parent=1 // loop_body
      %s397 = smul.u32 %s392, 4
      %s398 = smul.addr %s397, 8
      %s399 = scalar_lea.vmem [#allocation3], %s398
      %v400 = vld [vmem:[%s399] sm:$0xff]
      %v401 = vld [vmem:[%s399 + $0x8] sm:$0xff]
      %v402 = vld [vmem:[%s399 + $0x10] sm:$0xff]
      %v403 = vld [vmem:[%s399 + $0x18] sm:$0xff]
      %v404 = vld [vmem:[#allocation4] sm:$0xff]
      %v405 = vpack.c.bf16 %v404, %v404
      %v406 = vld [vmem:[#allocation11] sm:$0xff]
      %v407 = vld [vmem:[#allocation11 + $0x8] sm:$0xff]
      %v408 = vld [vmem:[#allocation11 + $0x10] sm:$0xff]
      %v409 = vld [vmem:[#allocation11 + $0x18] sm:$0xff]
      %v410 = vld [vmem:[#allocation11 + $0x20] sm:$0xff]
      %v411 = vld [vmem:[#allocation11 + $0x28] sm:$0xff]
      %v412 = vld [vmem:[#allocation11 + $0x30] sm:$0xff]
      %v413 = vld [vmem:[#allocation11 + $0x38] sm:$0xff]
      %v414 = vld [vmem:[#allocation11 + $0x40] sm:$0xff]
      %v415 = vld [vmem:[#allocation11 + $0x48] sm:$0xff]
      %v416 = vld [vmem:[#allocation11 + $0x50] sm:$0xff]
      %v417 = vld [vmem:[#allocation11 + $0x58] sm:$0xff]
      %v418 = vld [vmem:[#allocation11 + $0x60] sm:$0xff]
      %v419 = vld [vmem:[#allocation11 + $0x68] sm:$0xff]
      %v420 = vld [vmem:[#allocation11 + $0x70] sm:$0xff]
      %v421 = vld [vmem:[#allocation11 + $0x78] sm:$0xff]
      %v422 = vld [vmem:[#allocation11 + $0x80] sm:$0xff]
      %v423 = vld [vmem:[#allocation11 + $0x88] sm:$0xff]
      %v424 = vld [vmem:[#allocation11 + $0x90] sm:$0xff]
      %v425 = vld [vmem:[#allocation11 + $0x98] sm:$0xff]
      %v426 = vld [vmem:[#allocation11 + $0xa0] sm:$0xff]
      %v427 = vld [vmem:[#allocation11 + $0xa8] sm:$0xff]
      %v428 = vld [vmem:[#allocation11 + $0xb0] sm:$0xff]
      %v429 = vld [vmem:[#allocation11 + $0xb8] sm:$0xff]
      %v430 = vld [vmem:[#allocation11 + $0xc0] sm:$0xff]
      %v431 = vld [vmem:[#allocation11 + $0xc8] sm:$0xff]
      %v432 = vld [vmem:[#allocation11 + $0xd0] sm:$0xff]
      %v433 = vld [vmem:[#allocation11 + $0xd8] sm:$0xff]
      %v434 = vld [vmem:[#allocation11 + $0xe0] sm:$0xff]
      %v435 = vld [vmem:[#allocation11 + $0xe8] sm:$0xff]
      %v436 = vld [vmem:[#allocation11 + $0xf0] sm:$0xff]
      %v437 = vld [vmem:[#allocation11 + $0xf8] sm:$0xff]
      %v470 = vunpack.c.l.b16 %v406
      %v471 = vunpack.c.h.b16 %v406
      %v472 = vunpack.c.l.b16 %v407
      %v473 = vunpack.c.h.b16 %v407
      %v474 = vunpack.c.l.b16 %v408
      %v475 = vunpack.c.h.b16 %v408
      %v476 = vunpack.c.l.b16 %v409
      %v477 = vunpack.c.h.b16 %v409
      %v478 = vunpack.c.l.b16 %v410
      %v479 = vunpack.c.h.b16 %v410
      %v480 = vunpack.c.l.b16 %v411
      %v481 = vunpack.c.h.b16 %v411
      %v482 = vunpack.c.l.b16 %v412
      %v483 = vunpack.c.h.b16 %v412
      %v484 = vunpack.c.l.b16 %v413
      %v485 = vunpack.c.h.b16 %v413
      %v486 = vunpack.c.l.b16 %v414
      %v487 = vunpack.c.h.b16 %v414
      %v488 = vunpack.c.l.b16 %v415
      %v489 = vunpack.c.h.b16 %v415
      %v490 = vunpack.c.l.b16 %v416
      %v491 = vunpack.c.h.b16 %v416
      %v492 = vunpack.c.l.b16 %v417
      %v493 = vunpack.c.h.b16 %v417
      %v494 = vunpack.c.l.b16 %v418
      %v495 = vunpack.c.h.b16 %v418
      %v496 = vunpack.c.l.b16 %v419
      %v497 = vunpack.c.h.b16 %v419
      %v498 = vunpack.c.l.b16 %v420
      %v499 = vunpack.c.h.b16 %v420
      %v500 = vunpack.c.l.b16 %v421
      %v501 = vunpack.c.h.b16 %v421
      %v502 = vunpack.c.l.b16 %v422
      %v503 = vunpack.c.h.b16 %v422
      %v504 = vunpack.c.l.b16 %v423
      %v505 = vunpack.c.h.b16 %v423
      %v506 = vunpack.c.l.b16 %v424
      %v507 = vunpack.c.h.b16 %v424
      %v508 = vunpack.c.l.b16 %v425
      %v509 = vunpack.c.h.b16 %v425
      %v510 = vunpack.c.l.b16 %v426
      %v511 = vunpack.c.h.b16 %v426
      %v512 = vunpack.c.l.b16 %v427
      %v513 = vunpack.c.h.b16 %v427
      %v514 = vunpack.c.l.b16 %v428
      %v515 = vunpack.c.h.b16 %v428
      %v516 = vunpack.c.l.b16 %v429
      %v517 = vunpack.c.h.b16 %v429
      %v518 = vunpack.c.l.b16 %v430
      %v519 = vunpack.c.h.b16 %v430
      %v520 = vunpack.c.l.b16 %v431
      %v521 = vunpack.c.h.b16 %v431
      %v522 = vunpack.c.l.b16 %v432
      %v523 = vunpack.c.h.b16 %v432
      %v524 = vunpack.c.l.b16 %v433
      %v525 = vunpack.c.h.b16 %v433
      %v526 = vunpack.c.l.b16 %v434
      %v527 = vunpack.c.h.b16 %v434
      %v528 = vunpack.c.l.b16 %v435
      %v529 = vunpack.c.h.b16 %v435
      %v530 = vunpack.c.l.b16 %v436
      %v531 = vunpack.c.h.b16 %v436
      %v532 = vunpack.c.l.b16 %v437
      %v533 = vunpack.c.h.b16 %v437
      %v534 = vpack.c.b16 %v474, %v470
      %v535 = vpack.c.b16 %v475, %v471
      %v536 = vpack.c.b16 %v476, %v472
      %v537 = vpack.c.b16 %v477, %v473
      %v538 = vpack.c.b16 %v482, %v478
      %v539 = vpack.c.b16 %v483, %v479
      %v540 = vpack.c.b16 %v484, %v480
      %v541 = vpack.c.b16 %v485, %v481
      %v542 = vpack.c.b16 %v490, %v486
      %v543 = vpack.c.b16 %v491, %v487
      %v544 = vpack.c.b16 %v492, %v488
      %v545 = vpack.c.b16 %v493, %v489
      %v546 = vpack.c.b16 %v498, %v494
      %v547 = vpack.c.b16 %v499, %v495
      %v548 = vpack.c.b16 %v500, %v496
      %v549 = vpack.c.b16 %v501, %v497
      %v550 = vpack.c.b16 %v506, %v502
      %v551 = vpack.c.b16 %v507, %v503
      %v552 = vpack.c.b16 %v508, %v504
      %v553 = vpack.c.b16 %v509, %v505
      %v554 = vpack.c.b16 %v514, %v510
      %v555 = vpack.c.b16 %v515, %v511
      %v556 = vpack.c.b16 %v516, %v512
      %v557 = vpack.c.b16 %v517, %v513
      %v558 = vpack.c.b16 %v522, %v518
      %v559 = vpack.c.b16 %v523, %v519
      %v560 = vpack.c.b16 %v524, %v520
      %v561 = vpack.c.b16 %v525, %v521
      %v562 = vpack.c.b16 %v530, %v526
      %v563 = vpack.c.b16 %v531, %v527
      %v564 = vpack.c.b16 %v532, %v528
      %v565 = vpack.c.b16 %v533, %v529
      %598 = vmatprep.subr.bf16.mxu0 %v563
      %599 = vmatpush1.bf16.msra.mxu0 %v562
      %600 = vmatprep.subr.bf16.mxu0 %v559
      %601 = vmatpush1.bf16.msra.mxu0 %v558
      %602 = vmatprep.subr.bf16.mxu0 %v555
      %603 = vmatpush1.bf16.msra.mxu0 %v554
      %604 = vmatprep.subr.bf16.mxu0 %v551
      %605 = vmatpush1.bf16.msra.mxu0 %v550
      %606 = vmatprep.subr.bf16.mxu0 %v547
      %607 = vmatpush1.bf16.msra.mxu0 %v546
      %608 = vmatprep.subr.bf16.mxu0 %v543
      %609 = vmatpush1.bf16.msra.mxu0 %v542
      %610 = vmatprep.subr.bf16.mxu0 %v539
      %611 = vmatpush1.bf16.msra.mxu0 %v538
      %612 = vmatprep.subr.bf16.mxu0 %v535
      %613 = vmatpush1.bf16.msra.mxu0 %v534
      %614 = vmatprep.subr.bf16.mxu0 0
      %615 = vmatpush2.bf16.msra.mxu0 0
      %616 = vmatprep.subr.bf16.mxu0 0
      %617 = vmatpush2.bf16.msra.mxu0 0
      %618 = vmatprep.subr.bf16.mxu0 0
      %619 = vmatpush2.bf16.msra.mxu0 0
      %620 = vmatprep.subr.bf16.mxu0 0
      %621 = vmatpush2.bf16.msra.mxu0 0
      %622 = vmatprep.subr.bf16.mxu0 0
      %623 = vmatpush2.bf16.msra.mxu0 0
      %624 = vmatprep.subr.bf16.mxu0 0
      %625 = vmatpush2.bf16.msra.mxu0 0
      %626 = vmatprep.subr.bf16.mxu0 0
      %627 = vmatpush2.bf16.msra.mxu0 0
      %628 = vmatprep.subr.bf16.mxu0 0
      %629 = vmatpush2.bf16.msra.mxu0 0
      %630 = vmatprep.mubr.bf16.mxu0 0
      %631 = vmatmul.mubr.bf16.gmra.mxu0 %v405
      %v632 = vpop.f32.mrf.mxu0
      %v633 = vadd.f32 0.0, %v632
      %v634 = vpop.f32.mrf.mxu0
      %v635 = vadd.f32 0.0, %v634
      %v636 = vpop.f32.mrf.mxu0
      %v637 = vpop.f32.mrf.mxu0
      %638 = vdwg.mxu0
      %639 = vmatprep.subr.bf16.mxu0 %v565
      %640 = vmatpush1.bf16.msra.mxu0 %v564
      %641 = vmatprep.subr.bf16.mxu0 %v561
      %642 = vmatpush1.bf16.msra.mxu0 %v560
      %643 = vmatprep.subr.bf16.mxu0 %v557
      %644 = vmatpush1.bf16.msra.mxu0 %v556
      %645 = vmatprep.subr.bf16.mxu0 %v553
      %646 = vmatpush1.bf16.msra.mxu0 %v552
      %647 = vmatprep.subr.bf16.mxu0 %v549
      %648 = vmatpush1.bf16.msra.mxu0 %v548
      %649 = vmatprep.subr.bf16.mxu0 %v545
      %650 = vmatpush1.bf16.msra.mxu0 %v544
      %651 = vmatprep.subr.bf16.mxu0 %v541
      %652 = vmatpush1.bf16.msra.mxu0 %v540
      %653 = vmatprep.subr.bf16.mxu0 %v537
      %654 = vmatpush1.bf16.msra.mxu0 %v536
      %655 = vmatprep.subr.bf16.mxu0 0
      %656 = vmatpush2.bf16.msra.mxu0 0
      %657 = vmatprep.subr.bf16.mxu0 0
      %658 = vmatpush2.bf16.msra.mxu0 0
      %659 = vmatprep.subr.bf16.mxu0 0
      %660 = vmatpush2.bf16.msra.mxu0 0
      %661 = vmatprep.subr.bf16.mxu0 0
      %662 = vmatpush2.bf16.msra.mxu0 0
      %663 = vmatprep.subr.bf16.mxu0 0
      %664 = vmatpush2.bf16.msra.mxu0 0
      %665 = vmatprep.subr.bf16.mxu0 0
      %666 = vmatpush2.bf16.msra.mxu0 0
      %667 = vmatprep.subr.bf16.mxu0 0
      %668 = vmatpush2.bf16.msra.mxu0 0
      %669 = vmatprep.subr.bf16.mxu0 0
      %670 = vmatpush2.bf16.msra.mxu0 0
      %671 = vmatprep.mubr.bf16.mxu0 0
      %672 = vmatmul.mubr.bf16.gmra.mxu0 %v405
      %v673 = vpop.f32.mrf.mxu0
      %v674 = vadd.f32 0.0, %v673
      %v675 = vpop.f32.mrf.mxu0
      %v676 = vadd.f32 0.0, %v675
      %v677 = vpop.f32.mrf.mxu0
      %v678 = vpop.f32.mrf.mxu0
      %679 = vdwg.mxu0
      %v680 = vadd.f32 %v400, %v633
      %v681 = vadd.f32 %v401, %v635
      %v682 = vadd.f32 %v402, %v674
      %v683 = vadd.f32 %v403, %v676
      %v684 = vmul.f32 %v680, 0.5
      %v685 = vtanh.pop %v684
      %v686 = vadd.f32 %v685, 1.0
      %v687 = vmul.f32 %v686, 0.5
      %v688 = vmul.f32 %v681, 0.5
      %v689 = vtanh.pop %v688
      %v690 = vadd.f32 %v689, 1.0
      %v691 = vmul.f32 %v690, 0.5
      %v692 = vtanh.pop %v682
      %v693 = vmul.f32 %v683, 0.5
      %v694 = vtanh.pop %v693
      %v695 = vadd.f32 %v694, 1.0
      %v696 = vmul.f32 %v695, 0.5
      %v697 = vld [vmem:[#allocation5] sm:$0xff]
      %v698 = vmul.f32 %v691, %v697
      %v699 = vmul.f32 %v687, %v692
      %v700 = vadd.f32 %v698, %v699
      %v701 = vtanh.pop %v700
      %v702 = vmul.f32 %v696, %v701
      %703 = vst [vmem:[#allocation5] sm:$0xff] %v700
      %704 = vst [vmem:[#allocation4] sm:$0xff] %v702
      %v705 = vpack.c.bf16 %v702, %v702
      %s706 = smul.addr %s392, 4
      %s707 = scalar_lea.vmem [#allocation2], %s706
      %708 = vst [vmem:[%s707] sm:$0xf] %v705
    $region54: #{tpu_custom_call.1} parent=1 // loop_footer
      %s396 = sadd.s32 1, %s392
    $region55: #{tpu_custom_call.1} parent=1 // loop_footer_branch
      %391 = sbr.rel target = $region51
    $region56: #{tpu_custom_call.1} parent=1 // loop_exit
      _
    %v709 = vld [vmem:[#allocation4] sm:$0xff]
    %710 = vst [vmem:[#allocation16] sm:$0xff] %v709
    %v711 = vld [vmem:[#allocation5] sm:$0xff]
    %712 = vst [vmem:[#allocation18] sm:$0xff] %v711
    %v713 = vld [vmem:[#allocation2] sm:$0xf]
    %v714 = vld [vmem:[#allocation2 + $0x4] sm:$0xf]
    %v715 = vld [vmem:[#allocation2 + $0x8] sm:$0xf]
    %v716 = vld [vmem:[#allocation2 + $0xc] sm:$0xf]
    %v717 = vld [vmem:[#allocation2 + $0x10] sm:$0xf]
    %v718 = vld [vmem:[#allocation2 + $0x14] sm:$0xf]
    %v719 = vld [vmem:[#allocation2 + $0x18] sm:$0xf]
    %v720 = vld [vmem:[#allocation2 + $0x1c] sm:$0xf]
    %v721 = vld [vmem:[#allocation12] sm:$0xff]
    %v722 = vld [vmem:[#allocation12 + $0x8] sm:$0xff]
    %v723 = vld [vmem:[#allocation12 + $0x10] sm:$0xff]
    %v724 = vld [vmem:[#allocation12 + $0x18] sm:$0xff]
    %v725 = vld [vmem:[#allocation12 + $0x20] sm:$0xff]
    %v726 = vld [vmem:[#allocation12 + $0x28] sm:$0xff]
    %v727 = vld [vmem:[#allocation12 + $0x30] sm:$0xff]
    %v728 = vld [vmem:[#allocation12 + $0x38] sm:$0xff]
    %v729 = vld [vmem:[#allocation12 + $0x40] sm:$0xff]
    %v730 = vld [vmem:[#allocation12 + $0x48] sm:$0xff]
    %v731 = vld [vmem:[#allocation12 + $0x50] sm:$0xff]
    %v732 = vld [vmem:[#allocation12 + $0x58] sm:$0xff]
    %v733 = vld [vmem:[#allocation12 + $0x60] sm:$0xff]
    %v734 = vld [vmem:[#allocation12 + $0x68] sm:$0xff]
    %v735 = vld [vmem:[#allocation12 + $0x70] sm:$0xff]
    %v736 = vld [vmem:[#allocation12 + $0x78] sm:$0xff]
    %v737 = vld [vmem:[#allocation12 + $0x80] sm:$0xff]
    %v738 = vld [vmem:[#allocation12 + $0x88] sm:$0xff]
    %v739 = vld [vmem:[#allocation12 + $0x90] sm:$0xff]
    %v740 = vld [vmem:[#allocation12 + $0x98] sm:$0xff]
    %v741 = vld [vmem:[#allocation12 + $0xa0] sm:$0xff]
    %v742 = vld [vmem:[#allocation12 + $0xa8] sm:$0xff]
    %v743 = vld [vmem:[#allocation12 + $0xb0] sm:$0xff]
    %v744 = vld [vmem:[#allocation12 + $0xb8] sm:$0xff]
    %v745 = vld [vmem:[#allocation12 + $0xc0] sm:$0xff]
    %v746 = vld [vmem:[#allocation12 + $0xc8] sm:$0xff]
    %v747 = vld [vmem:[#allocation12 + $0xd0] sm:$0xff]
    %v748 = vld [vmem:[#allocation12 + $0xd8] sm:$0xff]
    %v749 = vld [vmem:[#allocation12 + $0xe0] sm:$0xff]
    %v750 = vld [vmem:[#allocation12 + $0xe8] sm:$0xff]
    %v751 = vld [vmem:[#allocation12 + $0xf0] sm:$0xff]
    %v752 = vld [vmem:[#allocation12 + $0xf8] sm:$0xff]
    %v753 = vld [vmem:[%s6] sm:$0xf]
    %v755 = vlaneseq
    %v756 = vshrl.u32 %v755, 7
    %v757 = vsub.s32 0, %v756
    %v758 = vrot.slane %v753, %v757
    %v759 = vlaneseq
    %v760 = vshrl.u32 %v759, 7
    %v761 = vsub.s32 1, %v760
    %v762 = vrot.slane %v753, %v761
    %v763 = vlaneseq
    %v764 = vshrl.u32 %v763, 7
    %v765 = vsub.s32 2, %v764
    %v766 = vrot.slane %v753, %v765
    %v767 = vlaneseq
    %v768 = vshrl.u32 %v767, 7
    %v769 = vsub.s32 3, %v768
    %v770 = vrot.slane %v753, %v769
    %v783 = vunpack.c.l.b16 %v713
    %v784 = vunpack.c.l.b16 %v714
    %v785 = vunpack.c.l.b16 %v715
    %v786 = vunpack.c.l.b16 %v716
    %v787 = vunpack.c.l.b16 %v717
    %v788 = vunpack.c.l.b16 %v718
    %v789 = vunpack.c.l.b16 %v719
    %v790 = vunpack.c.l.b16 %v720
    %v791 = vpack.c.b16 %v784, %v783
    %v792 = vpack.c.b16 %v786, %v785
    %v793 = vpack.c.b16 %v788, %v787
    %v794 = vpack.c.b16 %v790, %v789
    %v831 = vunpack.c.l.b16 %v721
    %v832 = vunpack.c.h.b16 %v721
    %v833 = vunpack.c.l.b16 %v722
    %v834 = vunpack.c.h.b16 %v722
    %v835 = vunpack.c.l.b16 %v723
    %v836 = vunpack.c.h.b16 %v723
    %v837 = vunpack.c.l.b16 %v724
    %v838 = vunpack.c.h.b16 %v724
    %v839 = vunpack.c.l.b16 %v725
    %v840 = vunpack.c.h.b16 %v725
    %v841 = vunpack.c.l.b16 %v726
    %v842 = vunpack.c.h.b16 %v726
    %v843 = vunpack.c.l.b16 %v727
    %v844 = vunpack.c.h.b16 %v727
    %v845 = vunpack.c.l.b16 %v728
    %v846 = vunpack.c.h.b16 %v728
    %v847 = vunpack.c.l.b16 %v729
    %v848 = vunpack.c.h.b16 %v729
    %v849 = vunpack.c.l.b16 %v730
    %v850 = vunpack.c.h.b16 %v730
    %v851 = vunpack.c.l.b16 %v731
    %v852 = vunpack.c.h.b16 %v731
    %v853 = vunpack.c.l.b16 %v732
    %v854 = vunpack.c.h.b16 %v732
    %v855 = vunpack.c.l.b16 %v733
    %v856 = vunpack.c.h.b16 %v733
    %v857 = vunpack.c.l.b16 %v734
    %v858 = vunpack.c.h.b16 %v734
    %v859 = vunpack.c.l.b16 %v735
    %v860 = vunpack.c.h.b16 %v735
    %v861 = vunpack.c.l.b16 %v736
    %v862 = vunpack.c.h.b16 %v736
    %v863 = vunpack.c.l.b16 %v737
    %v864 = vunpack.c.h.b16 %v737
    %v865 = vunpack.c.l.b16 %v738
    %v866 = vunpack.c.h.b16 %v738
    %v867 = vunpack.c.l.b16 %v739
    %v868 = vunpack.c.h.b16 %v739
    %v869 = vunpack.c.l.b16 %v740
    %v870 = vunpack.c.h.b16 %v740
    %v871 = vunpack.c.l.b16 %v741
    %v872 = vunpack.c.h.b16 %v741
    %v873 = vunpack.c.l.b16 %v742
    %v874 = vunpack.c.h.b16 %v742
    %v875 = vunpack.c.l.b16 %v743
    %v876 = vunpack.c.h.b16 %v743
    %v877 = vunpack.c.l.b16 %v744
    %v878 = vunpack.c.h.b16 %v744
    %v879 = vunpack.c.l.b16 %v745
    %v880 = vunpack.c.h.b16 %v745
    %v881 = vunpack.c.l.b16 %v746
    %v882 = vunpack.c.h.b16 %v746
    %v883 = vunpack.c.l.b16 %v747
    %v884 = vunpack.c.h.b16 %v747
    %v885 = vunpack.c.l.b16 %v748
    %v886 = vunpack.c.h.b16 %v748
    %v887 = vunpack.c.l.b16 %v749
    %v888 = vunpack.c.h.b16 %v749
    %v889 = vunpack.c.l.b16 %v750
    %v890 = vunpack.c.h.b16 %v750
    %v891 = vunpack.c.l.b16 %v751
    %v892 = vunpack.c.h.b16 %v751
    %v893 = vunpack.c.l.b16 %v752
    %v894 = vunpack.c.h.b16 %v752
    %v895 = vpack.c.b16 %v835, %v831
    %v896 = vpack.c.b16 %v836, %v832
    %v897 = vpack.c.b16 %v837, %v833
    %v898 = vpack.c.b16 %v838, %v834
    %v899 = vpack.c.b16 %v843, %v839
    %v900 = vpack.c.b16 %v844, %v840
    %v901 = vpack.c.b16 %v845, %v841
    %v902 = vpack.c.b16 %v846, %v842
    %v903 = vpack.c.b16 %v851, %v847
    %v904 = vpack.c.b16 %v852, %v848
    %v905 = vpack.c.b16 %v853, %v849
    %v906 = vpack.c.b16 %v854, %v850
    %v907 = vpack.c.b16 %v859, %v855
    %v908 = vpack.c.b16 %v860, %v856
    %v909 = vpack.c.b16 %v861, %v857
    %v910 = vpack.c.b16 %v862, %v858
    %v911 = vpack.c.b16 %v867, %v863
    %v912 = vpack.c.b16 %v868, %v864
    %v913 = vpack.c.b16 %v869, %v865
    %v914 = vpack.c.b16 %v870, %v866
    %v915 = vpack.c.b16 %v875, %v871
    %v916 = vpack.c.b16 %v876, %v872
    %v917 = vpack.c.b16 %v877, %v873
    %v918 = vpack.c.b16 %v878, %v874
    %v919 = vpack.c.b16 %v883, %v879
    %v920 = vpack.c.b16 %v884, %v880
    %v921 = vpack.c.b16 %v885, %v881
    %v922 = vpack.c.b16 %v886, %v882
    %v923 = vpack.c.b16 %v891, %v887
    %v924 = vpack.c.b16 %v892, %v888
    %v925 = vpack.c.b16 %v893, %v889
    %v926 = vpack.c.b16 %v894, %v890
    %959 = vmatprep.subr.bf16.mxu0 %v924
    %960 = vmatpush1.bf16.msra.mxu0 %v923
    %961 = vmatprep.subr.bf16.mxu0 %v920
    %962 = vmatpush1.bf16.msra.mxu0 %v919
    %963 = vmatprep.subr.bf16.mxu0 %v916
    %964 = vmatpush1.bf16.msra.mxu0 %v915
    %965 = vmatprep.subr.bf16.mxu0 %v912
    %966 = vmatpush1.bf16.msra.mxu0 %v911
    %967 = vmatprep.subr.bf16.mxu0 %v908
    %968 = vmatpush1.bf16.msra.mxu0 %v907
    %969 = vmatprep.subr.bf16.mxu0 %v904
    %970 = vmatpush1.bf16.msra.mxu0 %v903
    %971 = vmatprep.subr.bf16.mxu0 %v900
    %972 = vmatpush1.bf16.msra.mxu0 %v899
    %973 = vmatprep.subr.bf16.mxu0 %v896
    %974 = vmatpush1.bf16.msra.mxu0 %v895
    %975 = vmatprep.subr.bf16.mxu0 0
    %976 = vmatpush2.bf16.msra.mxu0 0
    %977 = vmatprep.subr.bf16.mxu0 0
    %978 = vmatpush2.bf16.msra.mxu0 0
    %979 = vmatprep.subr.bf16.mxu0 0
    %980 = vmatpush2.bf16.msra.mxu0 0
    %981 = vmatprep.subr.bf16.mxu0 0
    %982 = vmatpush2.bf16.msra.mxu0 0
    %983 = vmatprep.subr.bf16.mxu0 0
    %984 = vmatpush2.bf16.msra.mxu0 0
    %985 = vmatprep.subr.bf16.mxu0 0
    %986 = vmatpush2.bf16.msra.mxu0 0
    %987 = vmatprep.subr.bf16.mxu0 0
    %988 = vmatpush2.bf16.msra.mxu0 0
    %989 = vmatprep.subr.bf16.mxu0 0
    %990 = vmatpush2.bf16.msra.mxu0 0
    %991 = vmatprep.mubr.bf16.mxu0 0
    %992 = vmatmul.mubr.bf16.gmra.mxu0 %v791
    %v993 = vpop.f32.mrf.mxu0
    %v994 = vadd.f32 %v758, %v993
    %v995 = vpop.f32.mrf.mxu0
    %v996 = vadd.f32 %v762, %v995
    %v997 = vpop.f32.mrf.mxu0
    %v998 = vadd.f32 %v758, %v997
    %v999 = vpop.f32.mrf.mxu0
    %v1000 = vadd.f32 %v762, %v999
    %1001 = vmatprep.mubr.bf16.mxu0 0
    %1002 = vmatmul.mubr.bf16.gmra.mxu0 %v792
    %v1003 = vpop.f32.mrf.mxu0
    %v1004 = vadd.f32 %v758, %v1003
    %v1005 = vpop.f32.mrf.mxu0
    %v1006 = vadd.f32 %v762, %v1005
    %v1007 = vpop.f32.mrf.mxu0
    %v1008 = vadd.f32 %v758, %v1007
    %v1009 = vpop.f32.mrf.mxu0
    %v1010 = vadd.f32 %v762, %v1009
    %1011 = vmatprep.mubr.bf16.mxu0 0
    %1012 = vmatmul.mubr.bf16.gmra.mxu0 %v793
    %v1013 = vpop.f32.mrf.mxu0
    %v1014 = vadd.f32 %v758, %v1013
    %v1015 = vpop.f32.mrf.mxu0
    %v1016 = vadd.f32 %v762, %v1015
    %v1017 = vpop.f32.mrf.mxu0
    %v1018 = vadd.f32 %v758, %v1017
    %v1019 = vpop.f32.mrf.mxu0
    %v1020 = vadd.f32 %v762, %v1019
    %1021 = vmatprep.mubr.bf16.mxu0 0
    %1022 = vmatmul.mubr.bf16.gmra.mxu0 %v794
    %v1023 = vpop.f32.mrf.mxu0
    %v1024 = vadd.f32 %v758, %v1023
    %v1025 = vpop.f32.mrf.mxu0
    %v1026 = vadd.f32 %v762, %v1025
    %v1027 = vpop.f32.mrf.mxu0
    %v1028 = vadd.f32 %v758, %v1027
    %v1029 = vpop.f32.mrf.mxu0
    %v1030 = vadd.f32 %v762, %v1029
    %1031 = vdwg.mxu0
    %1032 = vmatprep.subr.bf16.mxu0 %v926
    %1033 = vmatpush1.bf16.msra.mxu0 %v925
    %1034 = vmatprep.subr.bf16.mxu0 %v922
    %1035 = vmatpush1.bf16.msra.mxu0 %v921
    %1036 = vmatprep.subr.bf16.mxu0 %v918
    %1037 = vmatpush1.bf16.msra.mxu0 %v917
    %1038 = vmatprep.subr.bf16.mxu0 %v914
    %1039 = vmatpush1.bf16.msra.mxu0 %v913
    %1040 = vmatprep.subr.bf16.mxu0 %v910
    %1041 = vmatpush1.bf16.msra.mxu0 %v909
    %1042 = vmatprep.subr.bf16.mxu0 %v906
    %1043 = vmatpush1.bf16.msra.mxu0 %v905
    %1044 = vmatprep.subr.bf16.mxu0 %v902
    %1045 = vmatpush1.bf16.msra.mxu0 %v901
    %1046 = vmatprep.subr.bf16.mxu0 %v898
    %1047 = vmatpush1.bf16.msra.mxu0 %v897
    %1048 = vmatprep.subr.bf16.mxu0 0
    %1049 = vmatpush2.bf16.msra.mxu0 0
    %1050 = vmatprep.subr.bf16.mxu0 0
    %1051 = vmatpush2.bf16.msra.mxu0 0
    %1052 = vmatprep.subr.bf16.mxu0 0
    %1053 = vmatpush2.bf16.msra.mxu0 0
    %1054 = vmatprep.subr.bf16.mxu0 0
    %1055 = vmatpush2.bf16.msra.mxu0 0
    %1056 = vmatprep.subr.bf16.mxu0 0
    %1057 = vmatpush2.bf16.msra.mxu0 0
    %1058 = vmatprep.subr.bf16.mxu0 0
    %1059 = vmatpush2.bf16.msra.mxu0 0
    %1060 = vmatprep.subr.bf16.mxu0 0
    %1061 = vmatpush2.bf16.msra.mxu0 0
    %1062 = vmatprep.subr.bf16.mxu0 0
    %1063 = vmatpush2.bf16.msra.mxu0 0
    %1064 = vmatprep.mubr.bf16.mxu0 0
    %1065 = vmatmul.mubr.bf16.gmra.mxu0 %v791
    %v1066 = vpop.f32.mrf.mxu0
    %v1067 = vadd.f32 %v766, %v1066
    %v1068 = vpop.f32.mrf.mxu0
    %v1069 = vadd.f32 %v770, %v1068
    %v1070 = vpop.f32.mrf.mxu0
    %v1071 = vadd.f32 %v766, %v1070
    %v1072 = vpop.f32.mrf.mxu0
    %v1073 = vadd.f32 %v770, %v1072
    %1074 = vmatprep.mubr.bf16.mxu0 0
    %1075 = vmatmul.mubr.bf16.gmra.mxu0 %v792
    %v1076 = vpop.f32.mrf.mxu0
    %v1077 = vadd.f32 %v766, %v1076
    %v1078 = vpop.f32.mrf.mxu0
    %v1079 = vadd.f32 %v770, %v1078
    %v1080 = vpop.f32.mrf.mxu0
    %v1081 = vadd.f32 %v766, %v1080
    %v1082 = vpop.f32.mrf.mxu0
    %v1083 = vadd.f32 %v770, %v1082
    %1084 = vmatprep.mubr.bf16.mxu0 0
    %1085 = vmatmul.mubr.bf16.gmra.mxu0 %v793
    %v1086 = vpop.f32.mrf.mxu0
    %v1087 = vadd.f32 %v766, %v1086
    %v1088 = vpop.f32.mrf.mxu0
    %v1089 = vadd.f32 %v770, %v1088
    %v1090 = vpop.f32.mrf.mxu0
    %v1091 = vadd.f32 %v766, %v1090
    %v1092 = vpop.f32.mrf.mxu0
    %v1093 = vadd.f32 %v770, %v1092
    %1094 = vmatprep.mubr.bf16.mxu0 0
    %1095 = vmatmul.mubr.bf16.gmra.mxu0 %v794
    %v1096 = vpop.f32.mrf.mxu0
    %v1097 = vadd.f32 %v766, %v1096
    %v1098 = vpop.f32.mrf.mxu0
    %v1099 = vadd.f32 %v770, %v1098
    %v1100 = vpop.f32.mrf.mxu0
    %v1101 = vadd.f32 %v766, %v1100
    %v1102 = vpop.f32.mrf.mxu0
    %v1103 = vadd.f32 %v770, %v1102
    %1104 = vdwg.mxu0
    %1105 = vst [vmem:[#allocation3] sm:$0xff] %v994
    %1106 = vst [vmem:[#allocation3 + $0x8] sm:$0xff] %v996
    %1107 = vst [vmem:[#allocation3 + $0x10] sm:$0xff] %v1067
    %1108 = vst [vmem:[#allocation3 + $0x18] sm:$0xff] %v1069
    %1109 = vst [vmem:[#allocation3 + $0x20] sm:$0xff] %v998
    %1110 = vst [vmem:[#allocation3 + $0x28] sm:$0xff] %v1000
    %1111 = vst [vmem:[#allocation3 + $0x30] sm:$0xff] %v1071
    %1112 = vst [vmem:[#allocation3 + $0x38] sm:$0xff] %v1073
    %1113 = vst [vmem:[#allocation3 + $0x40] sm:$0xff] %v1004
    %1114 = vst [vmem:[#allocation3 + $0x48] sm:$0xff] %v1006
    %1115 = vst [vmem:[#allocation3 + $0x50] sm:$0xff] %v1077
    %1116 = vst [vmem:[#allocation3 + $0x58] sm:$0xff] %v1079
    %1117 = vst [vmem:[#allocation3 + $0x60] sm:$0xff] %v1008
    %1118 = vst [vmem:[#allocation3 + $0x68] sm:$0xff] %v1010
    %1119 = vst [vmem:[#allocation3 + $0x70] sm:$0xff] %v1081
    %1120 = vst [vmem:[#allocation3 + $0x78] sm:$0xff] %v1083
    %1121 = vst [vmem:[#allocation3 + $0x80] sm:$0xff] %v1014
    %1122 = vst [vmem:[#allocation3 + $0x88] sm:$0xff] %v1016
    %1123 = vst [vmem:[#allocation3 + $0x90] sm:$0xff] %v1087
    %1124 = vst [vmem:[#allocation3 + $0x98] sm:$0xff] %v1089
    %1125 = vst [vmem:[#allocation3 + $0xa0] sm:$0xff] %v1018
    %1126 = vst [vmem:[#allocation3 + $0xa8] sm:$0xff] %v1020
    %1127 = vst [vmem:[#allocation3 + $0xb0] sm:$0xff] %v1091
    %1128 = vst [vmem:[#allocation3 + $0xb8] sm:$0xff] %v1093
    %1129 = vst [vmem:[#allocation3 + $0xc0] sm:$0xff] %v1024
    %1130 = vst [vmem:[#allocation3 + $0xc8] sm:$0xff] %v1026
    %1131 = vst [vmem:[#allocation3 + $0xd0] sm:$0xff] %v1097
    %1132 = vst [vmem:[#allocation3 + $0xd8] sm:$0xff] %v1099
    %1133 = vst [vmem:[#allocation3 + $0xe0] sm:$0xff] %v1028
    %1134 = vst [vmem:[#allocation3 + $0xe8] sm:$0xff] %v1030
    %1135 = vst [vmem:[#allocation3 + $0xf0] sm:$0xff] %v1101
    %1136 = vst [vmem:[#allocation3 + $0xf8] sm:$0xff] %v1103
    %1137 = vst [vmem:[#allocation4] sm:$0xff] 0.0
    %1138 = vst [vmem:[#allocation5] sm:$0xff] 0.0
    loop: start=0, step=1, limit=8
    $region57: #{tpu_custom_call.1} parent=1 // loop_pre_header
      _
    $region58: #{tpu_custom_call.1} parent=1 // loop_header
      %s1140 = sphi 0, %s1144
      %p1141 = scmp.ge.s32.totalorder %s1140, 8
    $region59: #{tpu_custom_call.1} parent=1 // loop_header_branch
      %1143 = sbr.rel (%p1141) target = $region63
    $region60: #{tpu_custom_call.1} parent=1 // loop_body
      %s1145 = smul.u32 %s1140, 4
      %s1146 = smul.addr %s1145, 8
      %s1147 = scalar_lea.vmem [#allocation3], %s1146
      %v1148 = vld [vmem:[%s1147] sm:$0xff]
      %v1149 = vld [vmem:[%s1147 + $0x8] sm:$0xff]
      %v1150 = vld [vmem:[%s1147 + $0x10] sm:$0xff]
      %v1151 = vld [vmem:[%s1147 + $0x18] sm:$0xff]
      %v1152 = vld [vmem:[#allocation4] sm:$0xff]
      %v1153 = vpack.c.bf16 %v1152, %v1152
      %v1154 = vld [vmem:[#allocation14] sm:$0xff]
      %v1155 = vld [vmem:[#allocation14 + $0x8] sm:$0xff]
      %v1156 = vld [vmem:[#allocation14 + $0x10] sm:$0xff]
      %v1157 = vld [vmem:[#allocation14 + $0x18] sm:$0xff]
      %v1158 = vld [vmem:[#allocation14 + $0x20] sm:$0xff]
      %v1159 = vld [vmem:[#allocation14 + $0x28] sm:$0xff]
      %v1160 = vld [vmem:[#allocation14 + $0x30] sm:$0xff]
      %v1161 = vld [vmem:[#allocation14 + $0x38] sm:$0xff]
      %v1162 = vld [vmem:[#allocation14 + $0x40] sm:$0xff]
      %v1163 = vld [vmem:[#allocation14 + $0x48] sm:$0xff]
      %v1164 = vld [vmem:[#allocation14 + $0x50] sm:$0xff]
      %v1165 = vld [vmem:[#allocation14 + $0x58] sm:$0xff]
      %v1166 = vld [vmem:[#allocation14 + $0x60] sm:$0xff]
      %v1167 = vld [vmem:[#allocation14 + $0x68] sm:$0xff]
      %v1168 = vld [vmem:[#allocation14 + $0x70] sm:$0xff]
      %v1169 = vld [vmem:[#allocation14 + $0x78] sm:$0xff]
      %v1170 = vld [vmem:[#allocation14 + $0x80] sm:$0xff]
      %v1171 = vld [vmem:[#allocation14 + $0x88] sm:$0xff]
      %v1172 = vld [vmem:[#allocation14 + $0x90] sm:$0xff]
      %v1173 = vld [vmem:[#allocation14 + $0x98] sm:$0xff]
      %v1174 = vld [vmem:[#allocation14 + $0xa0] sm:$0xff]
      %v1175 = vld [vmem:[#allocation14 + $0xa8] sm:$0xff]
      %v1176 = vld [vmem:[#allocation14 + $0xb0] sm:$0xff]
      %v1177 = vld [vmem:[#allocation14 + $0xb8] sm:$0xff]
      %v1178 = vld [vmem:[#allocation14 + $0xc0] sm:$0xff]
      %v1179 = vld [vmem:[#allocation14 + $0xc8] sm:$0xff]
      %v1180 = vld [vmem:[#allocation14 + $0xd0] sm:$0xff]
      %v1181 = vld [vmem:[#allocation14 + $0xd8] sm:$0xff]
      %v1182 = vld [vmem:[#allocation14 + $0xe0] sm:$0xff]
      %v1183 = vld [vmem:[#allocation14 + $0xe8] sm:$0xff]
      %v1184 = vld [vmem:[#allocation14 + $0xf0] sm:$0xff]
      %v1185 = vld [vmem:[#allocation14 + $0xf8] sm:$0xff]
      %v1218 = vunpack.c.l.b16 %v1154
      %v1219 = vunpack.c.h.b16 %v1154
      %v1220 = vunpack.c.l.b16 %v1155
      %v1221 = vunpack.c.h.b16 %v1155
      %v1222 = vunpack.c.l.b16 %v1156
      %v1223 = vunpack.c.h.b16 %v1156
      %v1224 = vunpack.c.l.b16 %v1157
      %v1225 = vunpack.c.h.b16 %v1157
      %v1226 = vunpack.c.l.b16 %v1158
      %v1227 = vunpack.c.h.b16 %v1158
      %v1228 = vunpack.c.l.b16 %v1159
      %v1229 = vunpack.c.h.b16 %v1159
      %v1230 = vunpack.c.l.b16 %v1160
      %v1231 = vunpack.c.h.b16 %v1160
      %v1232 = vunpack.c.l.b16 %v1161
      %v1233 = vunpack.c.h.b16 %v1161
      %v1234 = vunpack.c.l.b16 %v1162
      %v1235 = vunpack.c.h.b16 %v1162
      %v1236 = vunpack.c.l.b16 %v1163
      %v1237 = vunpack.c.h.b16 %v1163
      %v1238 = vunpack.c.l.b16 %v1164
      %v1239 = vunpack.c.h.b16 %v1164
      %v1240 = vunpack.c.l.b16 %v1165
      %v1241 = vunpack.c.h.b16 %v1165
      %v1242 = vunpack.c.l.b16 %v1166
      %v1243 = vunpack.c.h.b16 %v1166
      %v1244 = vunpack.c.l.b16 %v1167
      %v1245 = vunpack.c.h.b16 %v1167
      %v1246 = vunpack.c.l.b16 %v1168
      %v1247 = vunpack.c.h.b16 %v1168
      %v1248 = vunpack.c.l.b16 %v1169
      %v1249 = vunpack.c.h.b16 %v1169
      %v1250 = vunpack.c.l.b16 %v1170
      %v1251 = vunpack.c.h.b16 %v1170
      %v1252 = vunpack.c.l.b16 %v1171
      %v1253 = vunpack.c.h.b16 %v1171
      %v1254 = vunpack.c.l.b16 %v1172
      %v1255 = vunpack.c.h.b16 %v1172
      %v1256 = vunpack.c.l.b16 %v1173
      %v1257 = vunpack.c.h.b16 %v1173
      %v1258 = vunpack.c.l.b16 %v1174
      %v1259 = vunpack.c.h.b16 %v1174
      %v1260 = vunpack.c.l.b16 %v1175
      %v1261 = vunpack.c.h.b16 %v1175
      %v1262 = vunpack.c.l.b16 %v1176
      %v1263 = vunpack.c.h.b16 %v1176
      %v1264 = vunpack.c.l.b16 %v1177
      %v1265 = vunpack.c.h.b16 %v1177
      %v1266 = vunpack.c.l.b16 %v1178
      %v1267 = vunpack.c.h.b16 %v1178
      %v1268 = vunpack.c.l.b16 %v1179
      %v1269 = vunpack.c.h.b16 %v1179
      %v1270 = vunpack.c.l.b16 %v1180
      %v1271 = vunpack.c.h.b16 %v1180
      %v1272 = vunpack.c.l.b16 %v1181
      %v1273 = vunpack.c.h.b16 %v1181
      %v1274 = vunpack.c.l.b16 %v1182
      %v1275 = vunpack.c.h.b16 %v1182
      %v1276 = vunpack.c.l.b16 %v1183
      %v1277 = vunpack.c.h.b16 %v1183
      %v1278 = vunpack.c.l.b16 %v1184
      %v1279 = vunpack.c.h.b16 %v1184
      %v1280 = vunpack.c.l.b16 %v1185
      %v1281 = vunpack.c.h.b16 %v1185
      %v1282 = vpack.c.b16 %v1222, %v1218
      %v1283 = vpack.c.b16 %v1223, %v1219
      %v1284 = vpack.c.b16 %v1224, %v1220
      %v1285 = vpack.c.b16 %v1225, %v1221
      %v1286 = vpack.c.b16 %v1230, %v1226
      %v1287 = vpack.c.b16 %v1231, %v1227
      %v1288 = vpack.c.b16 %v1232, %v1228
      %v1289 = vpack.c.b16 %v1233, %v1229
      %v1290 = vpack.c.b16 %v1238, %v1234
      %v1291 = vpack.c.b16 %v1239, %v1235
      %v1292 = vpack.c.b16 %v1240, %v1236
      %v1293 = vpack.c.b16 %v1241, %v1237
      %v1294 = vpack.c.b16 %v1246, %v1242
      %v1295 = vpack.c.b16 %v1247, %v1243
      %v1296 = vpack.c.b16 %v1248, %v1244
      %v1297 = vpack.c.b16 %v1249, %v1245
      %v1298 = vpack.c.b16 %v1254, %v1250
      %v1299 = vpack.c.b16 %v1255, %v1251
      %v1300 = vpack.c.b16 %v1256, %v1252
      %v1301 = vpack.c.b16 %v1257, %v1253
      %v1302 = vpack.c.b16 %v1262, %v1258
      %v1303 = vpack.c.b16 %v1263, %v1259
      %v1304 = vpack.c.b16 %v1264, %v1260
      %v1305 = vpack.c.b16 %v1265, %v1261
      %v1306 = vpack.c.b16 %v1270, %v1266
      %v1307 = vpack.c.b16 %v1271, %v1267
      %v1308 = vpack.c.b16 %v1272, %v1268
      %v1309 = vpack.c.b16 %v1273, %v1269
      %v1310 = vpack.c.b16 %v1278, %v1274
      %v1311 = vpack.c.b16 %v1279, %v1275
      %v1312 = vpack.c.b16 %v1280, %v1276
      %v1313 = vpack.c.b16 %v1281, %v1277
      %1346 = vmatprep.subr.bf16.mxu0 %v1311
      %1347 = vmatpush1.bf16.msra.mxu0 %v1310
      %1348 = vmatprep.subr.bf16.mxu0 %v1307
      %1349 = vmatpush1.bf16.msra.mxu0 %v1306
      %1350 = vmatprep.subr.bf16.mxu0 %v1303
      %1351 = vmatpush1.bf16.msra.mxu0 %v1302
      %1352 = vmatprep.subr.bf16.mxu0 %v1299
      %1353 = vmatpush1.bf16.msra.mxu0 %v1298
      %1354 = vmatprep.subr.bf16.mxu0 %v1295
      %1355 = vmatpush1.bf16.msra.mxu0 %v1294
      %1356 = vmatprep.subr.bf16.mxu0 %v1291
      %1357 = vmatpush1.bf16.msra.mxu0 %v1290
      %1358 = vmatprep.subr.bf16.mxu0 %v1287
      %1359 = vmatpush1.bf16.msra.mxu0 %v1286
      %1360 = vmatprep.subr.bf16.mxu0 %v1283
      %1361 = vmatpush1.bf16.msra.mxu0 %v1282
      %1362 = vmatprep.subr.bf16.mxu0 0
      %1363 = vmatpush2.bf16.msra.mxu0 0
      %1364 = vmatprep.subr.bf16.mxu0 0
      %1365 = vmatpush2.bf16.msra.mxu0 0
      %1366 = vmatprep.subr.bf16.mxu0 0
      %1367 = vmatpush2.bf16.msra.mxu0 0
      %1368 = vmatprep.subr.bf16.mxu0 0
      %1369 = vmatpush2.bf16.msra.mxu0 0
      %1370 = vmatprep.subr.bf16.mxu0 0
      %1371 = vmatpush2.bf16.msra.mxu0 0
      %1372 = vmatprep.subr.bf16.mxu0 0
      %1373 = vmatpush2.bf16.msra.mxu0 0
      %1374 = vmatprep.subr.bf16.mxu0 0
      %1375 = vmatpush2.bf16.msra.mxu0 0
      %1376 = vmatprep.subr.bf16.mxu0 0
      %1377 = vmatpush2.bf16.msra.mxu0 0
      %1378 = vmatprep.mubr.bf16.mxu0 0
      %1379 = vmatmul.mubr.bf16.gmra.mxu0 %v1153
      %v1380 = vpop.f32.mrf.mxu0
      %v1381 = vadd.f32 0.0, %v1380
      %v1382 = vpop.f32.mrf.mxu0
      %v1383 = vadd.f32 0.0, %v1382
      %v1384 = vpop.f32.mrf.mxu0
      %v1385 = vpop.f32.mrf.mxu0
      %1386 = vdwg.mxu0
      %1387 = vmatprep.subr.bf16.mxu0 %v1313
      %1388 = vmatpush1.bf16.msra.mxu0 %v1312
      %1389 = vmatprep.subr.bf16.mxu0 %v1309
      %1390 = vmatpush1.bf16.msra.mxu0 %v1308
      %1391 = vmatprep.subr.bf16.mxu0 %v1305
      %1392 = vmatpush1.bf16.msra.mxu0 %v1304
      %1393 = vmatprep.subr.bf16.mxu0 %v1301
      %1394 = vmatpush1.bf16.msra.mxu0 %v1300
      %1395 = vmatprep.subr.bf16.mxu0 %v1297
      %1396 = vmatpush1.bf16.msra.mxu0 %v1296
      %1397 = vmatprep.subr.bf16.mxu0 %v1293
      %1398 = vmatpush1.bf16.msra.mxu0 %v1292
      %1399 = vmatprep.subr.bf16.mxu0 %v1289
      %1400 = vmatpush1.bf16.msra.mxu0 %v1288
      %1401 = vmatprep.subr.bf16.mxu0 %v1285
      %1402 = vmatpush1.bf16.msra.mxu0 %v1284
      %1403 = vmatprep.subr.bf16.mxu0 0
      %1404 = vmatpush2.bf16.msra.mxu0 0
      %1405 = vmatprep.subr.bf16.mxu0 0
      %1406 = vmatpush2.bf16.msra.mxu0 0
      %1407 = vmatprep.subr.bf16.mxu0 0
      %1408 = vmatpush2.bf16.msra.mxu0 0
      %1409 = vmatprep.subr.bf16.mxu0 0
      %1410 = vmatpush2.bf16.msra.mxu0 0
      %1411 = vmatprep.subr.bf16.mxu0 0
      %1412 = vmatpush2.bf16.msra.mxu0 0
      %1413 = vmatprep.subr.bf16.mxu0 0
      %1414 = vmatpush2.bf16.msra.mxu0 0
      %1415 = vmatprep.subr.bf16.mxu0 0
      %1416 = vmatpush2.bf16.msra.mxu0 0
      %1417 = vmatprep.subr.bf16.mxu0 0
      %1418 = vmatpush2.bf16.msra.mxu0 0
      %1419 = vmatprep.mubr.bf16.mxu0 0
      %1420 = vmatmul.mubr.bf16.gmra.mxu0 %v1153
      %v1421 = vpop.f32.mrf.mxu0
      %v1422 = vadd.f32 0.0, %v1421
      %v1423 = vpop.f32.mrf.mxu0
      %v1424 = vadd.f32 0.0, %v1423
      %v1425 = vpop.f32.mrf.mxu0
      %v1426 = vpop.f32.mrf.mxu0
      %1427 = vdwg.mxu0
      %v1428 = vadd.f32 %v1148, %v1381
      %v1429 = vadd.f32 %v1149, %v1383
      %v1430 = vadd.f32 %v1150, %v1422
      %v1431 = vadd.f32 %v1151, %v1424
      %v1432 = vmul.f32 %v1428, 0.5
      %v1433 = vtanh.pop %v1432
      %v1434 = vadd.f32 %v1433, 1.0
      %v1435 = vmul.f32 %v1434, 0.5
      %v1436 = vmul.f32 %v1429, 0.5
      %v1437 = vtanh.pop %v1436
      %v1438 = vadd.f32 %v1437, 1.0
      %v1439 = vmul.f32 %v1438, 0.5
      %v1440 = vtanh.pop %v1430
      %v1441 = vmul.f32 %v1431, 0.5
      %v1442 = vtanh.pop %v1441
      %v1443 = vadd.f32 %v1442, 1.0
      %v1444 = vmul.f32 %v1443, 0.5
      %v1445 = vld [vmem:[#allocation5] sm:$0xff]
      %v1446 = vmul.f32 %v1439, %v1445
      %v1447 = vmul.f32 %v1435, %v1440
      %v1448 = vadd.f32 %v1446, %v1447
      %v1449 = vtanh.pop %v1448
      %v1450 = vmul.f32 %v1444, %v1449
      %1451 = vst [vmem:[#allocation5] sm:$0xff] %v1448
      %1452 = vst [vmem:[#allocation4] sm:$0xff] %v1450
      %s1453 = smul.u32 %s1140, 8
      %s1454 = scalar_lea.vmem [#allocation15], %s1453
      %1455 = vst [vmem:[%s1454] sm:$0xff] %v1450
    $region61: #{tpu_custom_call.1} parent=1 // loop_footer
      %s1144 = sadd.s32 1, %s1140
    $region62: #{tpu_custom_call.1} parent=1 // loop_footer_branch
      %1139 = sbr.rel target = $region58
    $region63: #{tpu_custom_call.1} parent=1 // loop_exit
      _
    %v1456 = vld [vmem:[#allocation4] sm:$0xff]
    %s1457 = scalar_lea.vmem [#allocation16], 8
    %1458 = vst [vmem:[%s1457] sm:$0xff] %v1456
    %v1459 = vld [vmem:[#allocation5] sm:$0xff]
    %s1460 = scalar_lea.vmem [#allocation18], 8
    %1461 = vst [vmem:[%s1460] sm:$0xff] %v1459
    // Predicated region
    $region64: #{tpu_custom_call.1} parent=1 // pred_check
      _
    $region65: #{tpu_custom_call.1} parent=1 // pred_check_branch
      %1463 = sbr.rel (0) target = $region67
    $region66: #{tpu_custom_call.1} parent=1 // pred_region
      %s1465 = ssub.s32 1024, 1024
      %1466 = vsyncadd [#allocation8], %s1465
      %s1467 = sshll.u32 [#allocation15], 4
      %s1468 = int_to_ptr.vmem [resolvable:$true] %s1467
      %1473 = dma.vmem_to_hbm [thread:$0]  %s1468, 1024, %s7, [#allocation8], 128, 128, 8
    $region67: #{tpu_custom_call.1} parent=1 // pred_fallthru
      _
    // Predicated region
    $region68: #{tpu_custom_call.1} parent=1 // pred_check
      _
    $region69: #{tpu_custom_call.1} parent=1 // pred_check_branch
      %1475 = sbr.rel (0) target = $region71
    $region70: #{tpu_custom_call.1} parent=1 // pred_region
      %s1477 = ssub.s32 256, 256
      %1478 = vsyncadd [#allocation17], %s1477
      %s1479 = sshll.u32 [#allocation16], 4
      %s1480 = int_to_ptr.vmem [resolvable:$true] %s1479
      %1485 = dma.vmem_to_hbm [thread:$0]  %s1480, 256, %s8, [#allocation17], 128, 128, 8
    $region71: #{tpu_custom_call.1} parent=1 // pred_fallthru
      _
    // Predicated region
    $region72: #{tpu_custom_call.1} parent=1 // pred_check
      _
    $region73: #{tpu_custom_call.1} parent=1 // pred_check_branch
      %1487 = sbr.rel (0) target = $region75
    $region74: #{tpu_custom_call.1} parent=1 // pred_region
      %s1489 = ssub.s32 256, 256
      %1490 = vsyncadd [#allocation17], %s1489
      %s1491 = sshll.u32 [#allocation18], 4
      %s1492 = int_to_ptr.vmem [resolvable:$true] %s1491
      %1497 = dma.vmem_to_hbm [thread:$0]  %s1492, 256, %s9, [#allocation17], 128, 128, 8
    $region75: #{tpu_custom_call.1} parent=1 // pred_fallthru
      _
    // Predicated region
    $region76: #{tpu_custom_call.1} parent=1 // pred_check
      _
    $region77: #{tpu_custom_call.1} parent=1 // pred_check_branch
      %1499 = sbr.rel (0) target = $region79
    $region78: #{tpu_custom_call.1} parent=1 // pred_region
      %1500 = dma.done [#allocation8], 1024
    $region79: #{tpu_custom_call.1} parent=1 // pred_fallthru
      _
    // Predicated region
    $region80: #{tpu_custom_call.1} parent=1 // pred_check
      _
    $region81: #{tpu_custom_call.1} parent=1 // pred_check_branch
      %1502 = sbr.rel (0) target = $region83
    $region82: #{tpu_custom_call.1} parent=1 // pred_region
      %1503 = dma.done [#allocation17], 256
    $region83: #{tpu_custom_call.1} parent=1 // pred_fallthru
      _
    // Predicated region
    $region84: #{tpu_custom_call.1} parent=1 // pred_check
      _
    $region85: #{tpu_custom_call.1} parent=1 // pred_check_branch
      %1505 = sbr.rel (0) target = $region87
    $region86: #{tpu_custom_call.1} parent=1 // pred_region
      %1506 = dma.done [#allocation17], 256
    $region87: #{tpu_custom_call.1} parent=1 // pred_fallthru
      _
    %1507 = vsyncpa [#allocation7], 1
    %1508 = vsyncpa [#allocation10], 1
    %1509 = vsyncpa [#allocation13], 1
    %1510 = vsyncpa [#allocation8], 1
    %1511 = vsyncpa [#allocation17], 1

</llo_original>
